<compile_context>
chip_gen: v7x
topology: tpu7x:2x2x1
jax: 0.10.0
libtpu: 0.0.40
codegen_flags: <defaults>
</compile_context>

<pallas_src>
import jax
import jax.numpy as jnp
import numpy as np
from jax.experimental import pallas as pl
from jax.experimental.pallas import tpu as pltpu  # noqa: F401  (TPU backend)

# ---------------- problem sizes ----------------
B, L, H = 2, 8, 32          # batch, seq len, hidden
NH, HD = 4, 8               # heads, head dim
I = 64                      # intermediate (FFN) size
NUM_LAYERS = 2
NZ = 5                      # number of z_direc / z_landm tokens
EPS = 1e-12

BL = B * L                  # 16
WROW = 3 * H                # 96: lane width of the packed bias table


# ---------------- in-kernel helpers ----------------
def _layernorm(x, g, b):
    u = jnp.mean(x, axis=-1, keepdims=True)
    d = x - u
    s = jnp.mean(d * d, axis=-1, keepdims=True)
    return d * jax.lax.rsqrt(s + EPS) * g + b


def _gelu_tanh(x):
    # 'gelu_new' / tanh-approx GELU (the configured hidden_act).
    c = jnp.float32(0.7978845608028654)  # sqrt(2/pi)
    return 0.5 * x * (1.0 + jnp.tanh(c * (x + 0.044715 * x * x * x)))


# ---------------- single fused kernel ----------------
# args:
#   x_ref     (B*L, H)        txt embeddings, batch folded into sublanes
#   mask_ref  (B*L, B*L)      block-diagonal additive attention mask
#   zsum_ref  (B*L, 2H)       [sum_z_direct | sum_z_landm], pre-broadcast per row
#   w_h_ref   (NL, H, 3H+H+I) per-layer [wqkv | wao | wi] lane-concatenated
#   wo_ref    (NL, I, H)      per-layer FFN output weight
#   wfuse_ref (3H, H)         [wt ; wd ; wl] sublane-stacked fuse weights
#   vecs_ref  (NL*8 + 3, 3H)  bias / LN table (rows padded to 96 lanes)
def fused_forward_kernel(x_ref, mask_ref, zsum_ref, w_h_ref, wo_ref,
                         wfuse_ref, vecs_ref, out_ref):
    f32 = jnp.float32
    x = x_ref[...]                                   # (16, 32)
    mask = mask_ref[...]                             # (16, 16)
    tbl = vecs_ref[...]                              # (19, 96)
    scale = jnp.float32(1.0 / np.sqrt(HD))

    for layer in range(NUM_LAYERS):                  # static unroll over layers
        w_h = w_h_ref[layer]                         # (32, 192)
        wo = wo_ref[layer]                           # (64, 32)
        wqkv = w_h[:, 0:3 * H]                       # (32, 96)
        wao = w_h[:, 3 * H:4 * H]                    # (32, 32)
        wi = w_h[:, 4 * H:4 * H + I]                 # (32, 64)

        r = layer * 8
        bqkv = tbl[r + 0:r + 1, :]                   # (1, 96)
        bi = tbl[r + 1:r + 2, 0:I]                   # (1, 64)
        bao = tbl[r + 2:r + 3, 0:H]
        g1 = tbl[r + 3:r + 4, 0:H]
        be1 = tbl[r + 4:r + 5, 0:H]
        bo = tbl[r + 5:r + 6, 0:H]
        g2 = tbl[r + 6:r + 7, 0:H]
        be2 = tbl[r + 7:r + 8, 0:H]

        # Fused Q/K/V projection over the whole (B*L, H) slab: one MXU pass.
        qkv = jnp.dot(x, wqkv, preferred_element_type=f32) + bqkv     # (16, 96)

        # Attention over the whole slab with a block-diagonal mask; per-head output
        # projection folded in via sublane slices of Wao (no lane concat of contexts).
        attn = None
        for h in range(NH):                          # static unroll over heads
            q_h = qkv[:, h * HD:(h + 1) * HD]                          # (16, 8)
            k_h = qkv[:, H + h * HD:H + (h + 1) * HD]                  # (16, 8)
            v_h = qkv[:, 2 * H + h * HD:2 * H + (h + 1) * HD]          # (16, 8)
            s = jax.lax.dot_general(q_h, k_h, (((1,), (1,)), ((), ())),
                                    preferred_element_type=f32) * scale + mask
            s = s - jnp.max(s, axis=-1, keepdims=True)
            p = jnp.exp(s)
            p = p * pl.reciprocal(jnp.sum(p, axis=-1, keepdims=True), approx=True)
            ctx = jnp.dot(p, v_h, preferred_element_type=f32)          # (16, 8)
            contrib = jnp.dot(ctx, wao[h * HD:(h + 1) * HD, :],
                              preferred_element_type=f32)              # (16, 32)
            attn = contrib if attn is None else attn + contrib
        attn = attn + bao                                              # (16, 32)

        h1 = _layernorm(attn + x, g1, be1)
        inter = _gelu_tanh(jnp.dot(h1, wi, preferred_element_type=f32) + bi)
        ffn = jnp.dot(inter, wo, preferred_element_type=f32) + bo
        x = _layernorm(ffn + h1, g2, be2)

    # ---- back-txt type_1 fusion (do_back_txt=True, do_front_txt=False) ----
    # update_lang_bert=False -> torch .detach(); inference no-op.  dropout: eval -> identity.
    rf = NUM_LAYERS * 8
    b_all = tbl[rf + 0:rf + 1, 0:H]                  # bt + bd + bl combined
    g_f = tbl[rf + 1:rf + 2, 0:H]
    be_f = tbl[rf + 2:rf + 3, 0:H]
    wfuse = wfuse_ref[...]                           # (96, 32)
    wt = wfuse[0:H, :]                               # (32, 32)
    wdl = wfuse[H:3 * H, :]                          # (64, 32)

    y = (jnp.dot(x, wt, preferred_element_type=f32)
         + jnp.dot(zsum_ref[...], wdl, preferred_element_type=f32)
         + b_all)                                    # (16, 32)
    out_ref[...] = _layernorm(y, g_f, be_f).reshape(B, L, H)
    # TODO(synk): do_front_txt / type_2 / 'door'/'add'/'concat' branches are not exercised
    # by this config (do_front_txt=False, do_back_txt_type='type_1').


# ---------------- parameter packing (wrapper side, under jit) ----------------
# per-layer unpacked order:
# 0 wq, 1 bq, 2 wk, 3 bk, 4 wv, 5 bv, 6 wao, 7 bao, 8 g1, 9 be1,
# 10 wi, 11 bi, 12 wo, 13 bo, 14 g2, 15 be2
# fuse unpacked order: 0 wt, 1 bt, 2 wd, 3 bd, 4 wl, 5 bl, 6 gamma, 7 beta
def _pad_row(v):
    return jnp.pad(v, ((0, 0), (0, WROW - v.shape[1])))


def _pack_params(layer_params, fuse_params):
    w_h_list, wo_list, rows = [], [], []
    for lp in layer_params:
        (wq, bq, wk, bk, wv, bv, wao, bao, g1, be1, wi, bi, wo, bo, g2, be2) = lp
        w_h_list.append(jnp.concatenate([wq, wk, wv, wao, wi], axis=1))   # (H, 192)
        wo_list.append(wo)
        rows.append(jnp.concatenate([bq, bk, bv], axis=1))                # (1, 96)
        for v in (bi, bao, g1, be1, bo, g2, be2):
            rows.append(_pad_row(v))
    wt, bt, wd, bd, wl, bl, g_f, be_f = fuse_params
    wfuse = jnp.concatenate([wt, wd, wl], axis=0)                         # (96, 32)
    for v in (bt + bd + bl, g_f, be_f):
        rows.append(_pad_row(v))
    w_h = jnp.stack(w_h_list)                                             # (NL, 32, 192)
    wo = jnp.stack(wo_list)                                               # (NL, 64, 32)
    vecs = jnp.concatenate(rows, axis=0)                                  # (19, 96)
    return w_h, wo, wfuse, vecs


# ---------------- jitted forward: one pallas_call, no grid ----------------
@jax.jit
def language_encoder_do_forward(txt_embeds, txt_masks,
                                z_direc_embeds, z_direc_pzs,
                                z_landm_embeds, z_landm_pzs,
                                layer_params, fuse_params):
    neg = jnp.float32(-10000.0)
    # Block-diagonal additive mask over the folded (B*L, B*L) slab:
    #   within-batch columns carry the txt mask, cross-batch columns are fully masked.
    col_mask = (1.0 - txt_masks.astype(jnp.float32)) * neg                # (B, L)
    same_batch = jnp.eye(B, dtype=bool)[:, None, :, None]                 # (B,1,B,1)
    mask_bd = jnp.where(
        jnp.broadcast_to(same_batch, (B, L, B, L)),
        jnp.broadcast_to(col_mask[None, None, :, :], (B, L, B, L)),
        neg).reshape(BL, BL)

    # Precompute sum_z_direct / sum_z_landm (removes lane-1 operands and in-kernel
    # cross-sublane reduces); pre-broadcast per row and lane-concat into one operand.
    sum_d = jnp.sum(z_direc_embeds * z_direc_pzs.astype(jnp.float32), axis=1)   # (B, H)
    sum_l = jnp.sum(z_landm_embeds * z_landm_pzs.astype(jnp.float32), axis=1)   # (B, H)
    zsum_rows = jnp.repeat(jnp.concatenate([sum_d, sum_l], axis=-1), L, axis=0)  # (B*L, 2H)

    w_h, wo, wfuse, vecs = _pack_params(layer_params, fuse_params)

    call = pl.pallas_call(
        fused_forward_kernel,
        out_shape=jax.ShapeDtypeStruct((B, L, H), jnp.float32),
        # no grid / no BlockSpecs: single invocation, every (tiny) operand whole in VMEM.
    )
    return call(txt_embeds.reshape(BL, H), mask_bd, zsum_rows, w_h, wo, wfuse, vecs)


# ---------------- pure-JAX reference (for correctness check) ----------------
def _ln_ref(x, g, b):
    u = jnp.mean(x, -1, keepdims=True)
    s = jnp.mean((x - u) ** 2, -1, keepdims=True)
    return (x - u) / jnp.sqrt(s + EPS) * g + b


def _roberta_layer_ref(x, ext_mask, p):
    hi = jax.lax.Precision.HIGHEST
    (wq, bq, wk, bk, wv, bv, wao, bao, g1, be1, wi, bi, wo, bo, g2, be2) = p
    q = jnp.matmul(x, wq, precision=hi) + bq
    k = jnp.matmul(x, wk, precision=hi) + bk
    v = jnp.matmul(x, wv, precision=hi) + bv
    qh = q.reshape(B, L, NH, HD).transpose(0, 2, 1, 3)
    kh = k.reshape(B, L, NH, HD).transpose(0, 2, 1, 3)
    vh = v.reshape(B, L, NH, HD).transpose(0, 2, 1, 3)
    s = jnp.einsum('bhqd,bhkd->bhqk', qh, kh, precision=hi) / np.sqrt(HD)
    s = s + ext_mask[:, None, :, :]
    p_attn = jax.nn.softmax(s, axis=-1)
    ctx = jnp.einsum('bhqk,bhkd->bhqd', p_attn, vh, precision=hi)
    ctx = ctx.transpose(0, 2, 1, 3).reshape(B, L, H)
    attn_out = jnp.matmul(ctx, wao, precision=hi) + bao
    h1 = _ln_ref(attn_out + x, g1, be1)
    inter = _gelu_tanh(jnp.matmul(h1, wi, precision=hi) + bi)
    ffn = jnp.matmul(inter, wo, precision=hi) + bo
    return _ln_ref(ffn + h1, g2, be2)


def _forward_ref(txt_embeds, txt_masks, zd, pzd, zl, pzl, layer_params, fuse_params):
    hi = jax.lax.Precision.HIGHEST
    ext_mask = ((1.0 - txt_masks.astype(jnp.float32)) * -10000.0).reshape(B, 1, L)
    x = txt_embeds
    for lp in layer_params:
        x = _roberta_layer_ref(x, ext_mask, lp)
    wt, bt, wd, bd, wl, bl, g, be = fuse_params
    sum_d = jnp.sum(zd * pzd.astype(jnp.float32), axis=1, keepdims=True)
    sum_l = jnp.sum(zl * pzl.astype(jnp.float32), axis=1, keepdims=True)
    y = (jnp.matmul(x, wt, precision=hi) + bt
         + jnp.matmul(sum_d, wd, precision=hi) + bd
         + jnp.matmul(sum_l, wl, precision=hi) + bl)
    return _ln_ref(y, g, be)


# ---------------- parameter init ----------------
_LAYER_PARAM_SHAPES = [
    (H, H), (1, H), (H, H), (1, H), (H, H), (1, H),      # wq,bq,wk,bk,wv,bv
    (H, H), (1, H), (1, H), (1, H),                       # wao,bao, ln1 g,b
    (H, I), (1, I), (I, H), (1, H), (1, H), (1, H),       # wi,bi, wo,bo, ln2 g,b
]

_FUSE_PARAM_SHAPES = [
    (H, H), (1, H), (H, H), (1, H), (H, H), (1, H),       # z_txt, z_direct, z_landm linears
    (1, H), (1, H),                                        # z_concat_layernorm g,b
]


def _init_params(key, shapes, ln_positions=()):
    params = []
    keys = jax.random.split(key, len(shapes))
    for idx, (k, s) in enumerate(zip(keys, shapes)):
        if idx in ln_positions:
            params.append(jnp.ones(s, jnp.float32))       # layernorm gamma = 1
        else:
            params.append(jax.random.normal(k, s, jnp.float32) * 0.02)
    return params


def init_layer_params(key):
    return _init_params(key, _LAYER_PARAM_SHAPES, ln_positions=(8, 14))


def init_fuse_params(key):
    return _init_params(key, _FUSE_PARAM_SHAPES, ln_positions=(6,))


# ---------------- main ----------------
if __name__ == "__main__":
    root = jax.random.PRNGKey(0)
    k_in, k_zd, k_zl, k_pzd, k_pzl, *k_layers = jax.random.split(root, 5 + NUM_LAYERS + 1)
    k_fuse = k_layers[-1]
    k_layers = k_layers[:-1]

    txt_embeds = jax.random.normal(k_in, (B, L, H), jnp.float32)
    txt_masks = jnp.array([[1, 1, 1, 1, 1, 1, 1, 1],
                           [1, 1, 1, 1, 1, 1, 0, 0]], jnp.int32)
    z_direc_embeds = jax.random.normal(k_zd, (B, NZ, H), jnp.float32)
    z_landm_embeds = jax.random.normal(k_zl, (B, NZ, H), jnp.float32)
    z_direc_pzs = jax.nn.softmax(jax.random.normal(k_pzd, (B, NZ, 1), jnp.float32), axis=1)
    z_landm_pzs = jax.nn.softmax(jax.random.normal(k_pzl, (B, NZ, 1), jnp.float32), axis=1)

    layer_params = [init_layer_params(k) for k in k_layers]
    fuse_params = init_fuse_params(k_fuse)

    out = language_encoder_do_forward(txt_embeds, txt_masks,
                                      z_direc_embeds, z_direc_pzs,
                                      z_landm_embeds, z_landm_pzs,
                                      layer_params, fuse_params)
    out = jax.block_until_ready(out)

    ref = _forward_ref(txt_embeds, txt_masks,
                       z_direc_embeds, z_direc_pzs,
                       z_landm_embeds, z_landm_pzs,
                       layer_params, fuse_params)
    ref = jax.block_until_ready(ref)

    assert out.shape == (B, L, H)
    max_diff = float(jnp.max(jnp.abs(out - ref)))
    assert np.isfinite(max_diff) and max_diff < 5e-2, f"mismatch: {max_diff}"
    print("KERNEL_OK")
</pallas_src>

<mosaic_0001>
module attributes {stable_mosaic.version = 11 : i64} {
  func.func @fused_forward_kernel(%arg0: memref<16x32xf32, #tpu.memory_space<vmem>>, %arg1: memref<16x16xf32, #tpu.memory_space<vmem>>, %arg2: memref<16x64xf32, #tpu.memory_space<vmem>>, %arg3: memref<2x32x192xf32, #tpu.memory_space<vmem>>, %arg4: memref<2x64x32xf32, #tpu.memory_space<vmem>>, %arg5: memref<96x32xf32, #tpu.memory_space<vmem>>, %arg6: memref<19x96xf32, #tpu.memory_space<vmem>>, %arg7: memref<2x8x32xf32, #tpu.memory_space<vmem>>) attributes {dimension_semantics = [], scalar_prefetch = 0 : i64, scratch_operands = 0 : i64, tpu.core_type = #tpu.core_type<tc>} {
    %c0 = arith.constant 0 : index
    %c0_0 = arith.constant 0 : index
    %0 = vector.load %arg0[%c0, %c0_0] : memref<16x32xf32, #tpu.memory_space<vmem>>, vector<16x32xf32>
    %c0_1 = arith.constant 0 : index
    %c0_2 = arith.constant 0 : index
    %1 = vector.load %arg1[%c0_1, %c0_2] : memref<16x16xf32, #tpu.memory_space<vmem>>, vector<16x16xf32>
    %c0_3 = arith.constant 0 : index
    %c0_4 = arith.constant 0 : index
    %2 = vector.load %arg6[%c0_3, %c0_4] : memref<19x96xf32, #tpu.memory_space<vmem>>, vector<19x96xf32>
    %c0_5 = arith.constant 0 : index
    %c0_6 = arith.constant 0 : index
    %c0_7 = arith.constant 0 : index
    %3 = vector.load %arg3[%c0_5, %c0_6, %c0_7] : memref<2x32x192xf32, #tpu.memory_space<vmem>>, vector<1x32x192xf32>
    %4 = vector.shape_cast %3 : vector<1x32x192xf32> to vector<32x192xf32>
    %c0_8 = arith.constant 0 : index
    %c0_9 = arith.constant 0 : index
    %c0_10 = arith.constant 0 : index
    %5 = vector.load %arg4[%c0_8, %c0_9, %c0_10] : memref<2x64x32xf32, #tpu.memory_space<vmem>>, vector<1x64x32xf32>
    %6 = vector.shape_cast %5 : vector<1x64x32xf32> to vector<64x32xf32>
    %7 = vector.extract_strided_slice %4 {offsets = [0, 0], sizes = [32, 96], strides = [1, 1]} : vector<32x192xf32> to vector<32x96xf32>
    %8 = vector.extract_strided_slice %4 {offsets = [0, 96], sizes = [32, 32], strides = [1, 1]} : vector<32x192xf32> to vector<32x32xf32>
    %9 = vector.extract_strided_slice %4 {offsets = [0, 128], sizes = [32, 64], strides = [1, 1]} : vector<32x192xf32> to vector<32x64xf32>
    %10 = vector.extract_strided_slice %2 {offsets = [0, 0], sizes = [1, 96], strides = [1, 1]} : vector<19x96xf32> to vector<1x96xf32>
    %11 = vector.extract_strided_slice %2 {offsets = [1, 0], sizes = [1, 64], strides = [1, 1]} : vector<19x96xf32> to vector<1x64xf32>
    %12 = vector.extract_strided_slice %2 {offsets = [2, 0], sizes = [1, 32], strides = [1, 1]} : vector<19x96xf32> to vector<1x32xf32>
    %13 = vector.extract_strided_slice %2 {offsets = [3, 0], sizes = [1, 32], strides = [1, 1]} : vector<19x96xf32> to vector<1x32xf32>
    %14 = vector.extract_strided_slice %2 {offsets = [4, 0], sizes = [1, 32], strides = [1, 1]} : vector<19x96xf32> to vector<1x32xf32>
    %15 = vector.extract_strided_slice %2 {offsets = [5, 0], sizes = [1, 32], strides = [1, 1]} : vector<19x96xf32> to vector<1x32xf32>
    %16 = vector.extract_strided_slice %2 {offsets = [6, 0], sizes = [1, 32], strides = [1, 1]} : vector<19x96xf32> to vector<1x32xf32>
    %17 = vector.extract_strided_slice %2 {offsets = [7, 0], sizes = [1, 32], strides = [1, 1]} : vector<19x96xf32> to vector<1x32xf32>
    %cst = arith.constant dense<0.000000e+00> : vector<16x96xf32>
    %18 = tpu.matmul %0, %7, %cst {dimension_numbers = #tpu.dot_dimension_numbers<[1], [0], [0], [1], [0, 0, 1, 1], [], []>} : vector<16x32xf32>, vector<32x96xf32>, vector<16x96xf32> -> vector<16x96xf32>
    %19 = vector.broadcast %10 : vector<1x96xf32> to vector<16x96xf32>
    %20 = arith.addf %18, %19 : vector<16x96xf32>
    %21 = vector.extract_strided_slice %20 {offsets = [0, 0], sizes = [16, 8], strides = [1, 1]} : vector<16x96xf32> to vector<16x8xf32>
    %22 = vector.extract_strided_slice %20 {offsets = [0, 32], sizes = [16, 8], strides = [1, 1]} : vector<16x96xf32> to vector<16x8xf32>
    %23 = vector.extract_strided_slice %20 {offsets = [0, 64], sizes = [16, 8], strides = [1, 1]} : vector<16x96xf32> to vector<16x8xf32>
    %cst_11 = arith.constant dense<0.000000e+00> : vector<16x16xf32>
    %24 = tpu.matmul %21, %22, %cst_11 {dimension_numbers = #tpu.dot_dimension_numbers<[1], [1], [0], [0], [0, 0, 1, 0], [], []>} : vector<16x8xf32>, vector<16x8xf32>, vector<16x16xf32> -> vector<16x16xf32>
    %cst_12 = arith.constant 0.353553385 : f32
    %25 = vector.broadcast %cst_12 : f32 to vector<16x16xf32>
    %26 = arith.mulf %24, %25 : vector<16x16xf32>
    %27 = arith.addf %26, %1 : vector<16x16xf32>
    %cst_13 = arith.constant dense<0xFF800000> : vector<16xf32>
    %28 = vector.multi_reduction <maximumf>, %27, %cst_13 [1] : vector<16x16xf32> to vector<16xf32>
    %29 = vector.shape_cast %28 : vector<16xf32> to vector<16x1xf32>
    %30 = vector.broadcast %29 : vector<16x1xf32> to vector<16x16xf32>
    %31 = arith.subf %27, %30 : vector<16x16xf32>
    %32 = math.exp %31 : vector<16x16xf32>
    %cst_14 = arith.constant dense<0.000000e+00> : vector<16xf32>
    %33 = vector.multi_reduction <add>, %32, %cst_14 [1] : vector<16x16xf32> to vector<16xf32>
    %34 = vector.shape_cast %33 : vector<16xf32> to vector<16x1xf32>
    %35 = tpu.reciprocal %34 {approx = true} : vector<16x1xf32> -> vector<16x1xf32>
    %36 = vector.broadcast %35 : vector<16x1xf32> to vector<16x16xf32>
    %37 = arith.mulf %32, %36 : vector<16x16xf32>
    %cst_15 = arith.constant dense<0.000000e+00> : vector<16x8xf32>
    %38 = tpu.matmul %37, %23, %cst_15 {dimension_numbers = #tpu.dot_dimension_numbers<[1], [0], [0], [1], [0, 0, 1, 1], [], []>} : vector<16x16xf32>, vector<16x8xf32>, vector<16x8xf32> -> vector<16x8xf32>
    %39 = vector.extract_strided_slice %8 {offsets = [0, 0], sizes = [8, 32], strides = [1, 1]} : vector<32x32xf32> to vector<8x32xf32>
    %cst_16 = arith.constant dense<0.000000e+00> : vector<16x32xf32>
    %40 = tpu.matmul %38, %39, %cst_16 {dimension_numbers = #tpu.dot_dimension_numbers<[1], [0], [0], [1], [0, 0, 1, 1], [], []>} : vector<16x8xf32>, vector<8x32xf32>, vector<16x32xf32> -> vector<16x32xf32>
    %41 = vector.extract_strided_slice %20 {offsets = [0, 8], sizes = [16, 8], strides = [1, 1]} : vector<16x96xf32> to vector<16x8xf32>
    %42 = vector.extract_strided_slice %20 {offsets = [0, 40], sizes = [16, 8], strides = [1, 1]} : vector<16x96xf32> to vector<16x8xf32>
    %43 = vector.extract_strided_slice %20 {offsets = [0, 72], sizes = [16, 8], strides = [1, 1]} : vector<16x96xf32> to vector<16x8xf32>
    %cst_17 = arith.constant dense<0.000000e+00> : vector<16x16xf32>
    %44 = tpu.matmul %41, %42, %cst_17 {dimension_numbers = #tpu.dot_dimension_numbers<[1], [1], [0], [0], [0, 0, 1, 0], [], []>} : vector<16x8xf32>, vector<16x8xf32>, vector<16x16xf32> -> vector<16x16xf32>
    %cst_18 = arith.constant 0.353553385 : f32
    %45 = vector.broadcast %cst_18 : f32 to vector<16x16xf32>
    %46 = arith.mulf %44, %45 : vector<16x16xf32>
    %47 = arith.addf %46, %1 : vector<16x16xf32>
    %cst_19 = arith.constant dense<0xFF800000> : vector<16xf32>
    %48 = vector.multi_reduction <maximumf>, %47, %cst_19 [1] : vector<16x16xf32> to vector<16xf32>
    %49 = vector.shape_cast %48 : vector<16xf32> to vector<16x1xf32>
    %50 = vector.broadcast %49 : vector<16x1xf32> to vector<16x16xf32>
    %51 = arith.subf %47, %50 : vector<16x16xf32>
    %52 = math.exp %51 : vector<16x16xf32>
    %cst_20 = arith.constant dense<0.000000e+00> : vector<16xf32>
    %53 = vector.multi_reduction <add>, %52, %cst_20 [1] : vector<16x16xf32> to vector<16xf32>
    %54 = vector.shape_cast %53 : vector<16xf32> to vector<16x1xf32>
    %55 = tpu.reciprocal %54 {approx = true} : vector<16x1xf32> -> vector<16x1xf32>
    %56 = vector.broadcast %55 : vector<16x1xf32> to vector<16x16xf32>
    %57 = arith.mulf %52, %56 : vector<16x16xf32>
    %cst_21 = arith.constant dense<0.000000e+00> : vector<16x8xf32>
    %58 = tpu.matmul %57, %43, %cst_21 {dimension_numbers = #tpu.dot_dimension_numbers<[1], [0], [0], [1], [0, 0, 1, 1], [], []>} : vector<16x16xf32>, vector<16x8xf32>, vector<16x8xf32> -> vector<16x8xf32>
    %59 = vector.extract_strided_slice %8 {offsets = [8, 0], sizes = [8, 32], strides = [1, 1]} : vector<32x32xf32> to vector<8x32xf32>
    %cst_22 = arith.constant dense<0.000000e+00> : vector<16x32xf32>
    %60 = tpu.matmul %58, %59, %cst_22 {dimension_numbers = #tpu.dot_dimension_numbers<[1], [0], [0], [1], [0, 0, 1, 1], [], []>} : vector<16x8xf32>, vector<8x32xf32>, vector<16x32xf32> -> vector<16x32xf32>
    %61 = arith.addf %40, %60 : vector<16x32xf32>
    %62 = vector.extract_strided_slice %20 {offsets = [0, 16], sizes = [16, 8], strides = [1, 1]} : vector<16x96xf32> to vector<16x8xf32>
    %63 = vector.extract_strided_slice %20 {offsets = [0, 48], sizes = [16, 8], strides = [1, 1]} : vector<16x96xf32> to vector<16x8xf32>
    %64 = vector.extract_strided_slice %20 {offsets = [0, 80], sizes = [16, 8], strides = [1, 1]} : vector<16x96xf32> to vector<16x8xf32>
    %cst_23 = arith.constant dense<0.000000e+00> : vector<16x16xf32>
    %65 = tpu.matmul %62, %63, %cst_23 {dimension_numbers = #tpu.dot_dimension_numbers<[1], [1], [0], [0], [0, 0, 1, 0], [], []>} : vector<16x8xf32>, vector<16x8xf32>, vector<16x16xf32> -> vector<16x16xf32>
    %cst_24 = arith.constant 0.353553385 : f32
    %66 = vector.broadcast %cst_24 : f32 to vector<16x16xf32>
    %67 = arith.mulf %65, %66 : vector<16x16xf32>
    %68 = arith.addf %67, %1 : vector<16x16xf32>
    %cst_25 = arith.constant dense<0xFF800000> : vector<16xf32>
    %69 = vector.multi_reduction <maximumf>, %68, %cst_25 [1] : vector<16x16xf32> to vector<16xf32>
    %70 = vector.shape_cast %69 : vector<16xf32> to vector<16x1xf32>
    %71 = vector.broadcast %70 : vector<16x1xf32> to vector<16x16xf32>
    %72 = arith.subf %68, %71 : vector<16x16xf32>
    %73 = math.exp %72 : vector<16x16xf32>
    %cst_26 = arith.constant dense<0.000000e+00> : vector<16xf32>
    %74 = vector.multi_reduction <add>, %73, %cst_26 [1] : vector<16x16xf32> to vector<16xf32>
    %75 = vector.shape_cast %74 : vector<16xf32> to vector<16x1xf32>
    %76 = tpu.reciprocal %75 {approx = true} : vector<16x1xf32> -> vector<16x1xf32>
    %77 = vector.broadcast %76 : vector<16x1xf32> to vector<16x16xf32>
    %78 = arith.mulf %73, %77 : vector<16x16xf32>
    %cst_27 = arith.constant dense<0.000000e+00> : vector<16x8xf32>
    %79 = tpu.matmul %78, %64, %cst_27 {dimension_numbers = #tpu.dot_dimension_numbers<[1], [0], [0], [1], [0, 0, 1, 1], [], []>} : vector<16x16xf32>, vector<16x8xf32>, vector<16x8xf32> -> vector<16x8xf32>
    %80 = vector.extract_strided_slice %8 {offsets = [16, 0], sizes = [8, 32], strides = [1, 1]} : vector<32x32xf32> to vector<8x32xf32>
    %cst_28 = arith.constant dense<0.000000e+00> : vector<16x32xf32>
    %81 = tpu.matmul %79, %80, %cst_28 {dimension_numbers = #tpu.dot_dimension_numbers<[1], [0], [0], [1], [0, 0, 1, 1], [], []>} : vector<16x8xf32>, vector<8x32xf32>, vector<16x32xf32> -> vector<16x32xf32>
    %82 = arith.addf %61, %81 : vector<16x32xf32>
    %83 = vector.extract_strided_slice %20 {offsets = [0, 24], sizes = [16, 8], strides = [1, 1]} : vector<16x96xf32> to vector<16x8xf32>
    %84 = vector.extract_strided_slice %20 {offsets = [0, 56], sizes = [16, 8], strides = [1, 1]} : vector<16x96xf32> to vector<16x8xf32>
    %85 = vector.extract_strided_slice %20 {offsets = [0, 88], sizes = [16, 8], strides = [1, 1]} : vector<16x96xf32> to vector<16x8xf32>
    %cst_29 = arith.constant dense<0.000000e+00> : vector<16x16xf32>
    %86 = tpu.matmul %83, %84, %cst_29 {dimension_numbers = #tpu.dot_dimension_numbers<[1], [1], [0], [0], [0, 0, 1, 0], [], []>} : vector<16x8xf32>, vector<16x8xf32>, vector<16x16xf32> -> vector<16x16xf32>
    %cst_30 = arith.constant 0.353553385 : f32
    %87 = vector.broadcast %cst_30 : f32 to vector<16x16xf32>
    %88 = arith.mulf %86, %87 : vector<16x16xf32>
    %89 = arith.addf %88, %1 : vector<16x16xf32>
    %cst_31 = arith.constant dense<0xFF800000> : vector<16xf32>
    %90 = vector.multi_reduction <maximumf>, %89, %cst_31 [1] : vector<16x16xf32> to vector<16xf32>
    %91 = vector.shape_cast %90 : vector<16xf32> to vector<16x1xf32>
    %92 = vector.broadcast %91 : vector<16x1xf32> to vector<16x16xf32>
    %93 = arith.subf %89, %92 : vector<16x16xf32>
    %94 = math.exp %93 : vector<16x16xf32>
    %cst_32 = arith.constant dense<0.000000e+00> : vector<16xf32>
    %95 = vector.multi_reduction <add>, %94, %cst_32 [1] : vector<16x16xf32> to vector<16xf32>
    %96 = vector.shape_cast %95 : vector<16xf32> to vector<16x1xf32>
    %97 = tpu.reciprocal %96 {approx = true} : vector<16x1xf32> -> vector<16x1xf32>
    %98 = vector.broadcast %97 : vector<16x1xf32> to vector<16x16xf32>
    %99 = arith.mulf %94, %98 : vector<16x16xf32>
    %cst_33 = arith.constant dense<0.000000e+00> : vector<16x8xf32>
    %100 = tpu.matmul %99, %85, %cst_33 {dimension_numbers = #tpu.dot_dimension_numbers<[1], [0], [0], [1], [0, 0, 1, 1], [], []>} : vector<16x16xf32>, vector<16x8xf32>, vector<16x8xf32> -> vector<16x8xf32>
    %101 = vector.extract_strided_slice %8 {offsets = [24, 0], sizes = [8, 32], strides = [1, 1]} : vector<32x32xf32> to vector<8x32xf32>
    %cst_34 = arith.constant dense<0.000000e+00> : vector<16x32xf32>
    %102 = tpu.matmul %100, %101, %cst_34 {dimension_numbers = #tpu.dot_dimension_numbers<[1], [0], [0], [1], [0, 0, 1, 1], [], []>} : vector<16x8xf32>, vector<8x32xf32>, vector<16x32xf32> -> vector<16x32xf32>
    %103 = arith.addf %82, %102 : vector<16x32xf32>
    %104 = vector.broadcast %12 : vector<1x32xf32> to vector<16x32xf32>
    %105 = arith.addf %103, %104 : vector<16x32xf32>
    %106 = arith.addf %105, %0 : vector<16x32xf32>
    %cst_35 = arith.constant dense<0.000000e+00> : vector<16xf32>
    %107 = vector.multi_reduction <add>, %106, %cst_35 [1] : vector<16x32xf32> to vector<16xf32>
    %108 = vector.shape_cast %107 : vector<16xf32> to vector<16x1xf32>
    %cst_36 = arith.constant 3.200000e+01 : f32
    %109 = vector.broadcast %cst_36 : f32 to vector<16x1xf32>
    %110 = arith.divf %108, %109 : vector<16x1xf32>
    %111 = vector.broadcast %110 : vector<16x1xf32> to vector<16x32xf32>
    %112 = arith.subf %106, %111 : vector<16x32xf32>
    %113 = arith.mulf %112, %112 : vector<16x32xf32>
    %cst_37 = arith.constant dense<0.000000e+00> : vector<16xf32>
    %114 = vector.multi_reduction <add>, %113, %cst_37 [1] : vector<16x32xf32> to vector<16xf32>
    %115 = vector.shape_cast %114 : vector<16xf32> to vector<16x1xf32>
    %cst_38 = arith.constant 3.200000e+01 : f32
    %116 = vector.broadcast %cst_38 : f32 to vector<16x1xf32>
    %117 = arith.divf %115, %116 : vector<16x1xf32>
    %cst_39 = arith.constant 9.99999996E-13 : f32
    %118 = vector.broadcast %cst_39 : f32 to vector<16x1xf32>
    %119 = arith.addf %117, %118 : vector<16x1xf32>
    %120 = math.rsqrt %119 : vector<16x1xf32>
    %121 = vector.broadcast %120 : vector<16x1xf32> to vector<16x32xf32>
    %122 = arith.mulf %112, %121 : vector<16x32xf32>
    %123 = vector.broadcast %13 : vector<1x32xf32> to vector<16x32xf32>
    %124 = arith.mulf %122, %123 : vector<16x32xf32>
    %125 = vector.broadcast %14 : vector<1x32xf32> to vector<16x32xf32>
    %126 = arith.addf %124, %125 : vector<16x32xf32>
    %cst_40 = arith.constant dense<0.000000e+00> : vector<16x64xf32>
    %127 = tpu.matmul %126, %9, %cst_40 {dimension_numbers = #tpu.dot_dimension_numbers<[1], [0], [0], [1], [0, 0, 1, 1], [], []>} : vector<16x32xf32>, vector<32x64xf32>, vector<16x64xf32> -> vector<16x64xf32>
    %128 = vector.broadcast %11 : vector<1x64xf32> to vector<16x64xf32>
    %129 = arith.addf %127, %128 : vector<16x64xf32>
    %cst_41 = arith.constant 5.000000e-01 : f32
    %130 = vector.broadcast %cst_41 : f32 to vector<16x64xf32>
    %131 = arith.mulf %130, %129 : vector<16x64xf32>
    %cst_42 = arith.constant 4.471500e-02 : f32
    %132 = vector.broadcast %cst_42 : f32 to vector<16x64xf32>
    %133 = arith.mulf %132, %129 : vector<16x64xf32>
    %134 = arith.mulf %133, %129 : vector<16x64xf32>
    %135 = arith.mulf %134, %129 : vector<16x64xf32>
    %136 = arith.addf %129, %135 : vector<16x64xf32>
    %cst_43 = arith.constant 0.797884583 : f32
    %137 = vector.broadcast %cst_43 : f32 to vector<16x64xf32>
    %138 = arith.mulf %137, %136 : vector<16x64xf32>
    %139 = math.tanh %138 : vector<16x64xf32>
    %cst_44 = arith.constant 1.000000e+00 : f32
    %140 = vector.broadcast %cst_44 : f32 to vector<16x64xf32>
    %141 = arith.addf %140, %139 : vector<16x64xf32>
    %142 = arith.mulf %131, %141 : vector<16x64xf32>
    %cst_45 = arith.constant dense<0.000000e+00> : vector<16x32xf32>
    %143 = tpu.matmul %142, %6, %cst_45 {dimension_numbers = #tpu.dot_dimension_numbers<[1], [0], [0], [1], [0, 0, 1, 1], [], []>} : vector<16x64xf32>, vector<64x32xf32>, vector<16x32xf32> -> vector<16x32xf32>
    %144 = vector.broadcast %15 : vector<1x32xf32> to vector<16x32xf32>
    %145 = arith.addf %143, %144 : vector<16x32xf32>
    %146 = arith.addf %145, %126 : vector<16x32xf32>
    %cst_46 = arith.constant dense<0.000000e+00> : vector<16xf32>
    %147 = vector.multi_reduction <add>, %146, %cst_46 [1] : vector<16x32xf32> to vector<16xf32>
    %148 = vector.shape_cast %147 : vector<16xf32> to vector<16x1xf32>
    %cst_47 = arith.constant 3.200000e+01 : f32
    %149 = vector.broadcast %cst_47 : f32 to vector<16x1xf32>
    %150 = arith.divf %148, %149 : vector<16x1xf32>
    %151 = vector.broadcast %150 : vector<16x1xf32> to vector<16x32xf32>
    %152 = arith.subf %146, %151 : vector<16x32xf32>
    %153 = arith.mulf %152, %152 : vector<16x32xf32>
    %cst_48 = arith.constant dense<0.000000e+00> : vector<16xf32>
    %154 = vector.multi_reduction <add>, %153, %cst_48 [1] : vector<16x32xf32> to vector<16xf32>
    %155 = vector.shape_cast %154 : vector<16xf32> to vector<16x1xf32>
    %cst_49 = arith.constant 3.200000e+01 : f32
    %156 = vector.broadcast %cst_49 : f32 to vector<16x1xf32>
    %157 = arith.divf %155, %156 : vector<16x1xf32>
    %cst_50 = arith.constant 9.99999996E-13 : f32
    %158 = vector.broadcast %cst_50 : f32 to vector<16x1xf32>
    %159 = arith.addf %157, %158 : vector<16x1xf32>
    %160 = math.rsqrt %159 : vector<16x1xf32>
    %161 = vector.broadcast %160 : vector<16x1xf32> to vector<16x32xf32>
    %162 = arith.mulf %152, %161 : vector<16x32xf32>
    %163 = vector.broadcast %16 : vector<1x32xf32> to vector<16x32xf32>
    %164 = arith.mulf %162, %163 : vector<16x32xf32>
    %165 = vector.broadcast %17 : vector<1x32xf32> to vector<16x32xf32>
    %166 = arith.addf %164, %165 : vector<16x32xf32>
    %c1 = arith.constant 1 : index
    %c0_51 = arith.constant 0 : index
    %c0_52 = arith.constant 0 : index
    %167 = vector.load %arg3[%c1, %c0_51, %c0_52] : memref<2x32x192xf32, #tpu.memory_space<vmem>>, vector<1x32x192xf32>
    %168 = vector.shape_cast %167 : vector<1x32x192xf32> to vector<32x192xf32>
    %c1_53 = arith.constant 1 : index
    %c0_54 = arith.constant 0 : index
    %c0_55 = arith.constant 0 : index
    %169 = vector.load %arg4[%c1_53, %c0_54, %c0_55] : memref<2x64x32xf32, #tpu.memory_space<vmem>>, vector<1x64x32xf32>
    %170 = vector.shape_cast %169 : vector<1x64x32xf32> to vector<64x32xf32>
    %171 = vector.extract_strided_slice %168 {offsets = [0, 0], sizes = [32, 96], strides = [1, 1]} : vector<32x192xf32> to vector<32x96xf32>
    %172 = vector.extract_strided_slice %168 {offsets = [0, 96], sizes = [32, 32], strides = [1, 1]} : vector<32x192xf32> to vector<32x32xf32>
    %173 = vector.extract_strided_slice %168 {offsets = [0, 128], sizes = [32, 64], strides = [1, 1]} : vector<32x192xf32> to vector<32x64xf32>
    %174 = vector.extract_strided_slice %2 {offsets = [8, 0], sizes = [1, 96], strides = [1, 1]} : vector<19x96xf32> to vector<1x96xf32>
    %175 = vector.extract_strided_slice %2 {offsets = [9, 0], sizes = [1, 64], strides = [1, 1]} : vector<19x96xf32> to vector<1x64xf32>
    %176 = vector.extract_strided_slice %2 {offsets = [10, 0], sizes = [1, 32], strides = [1, 1]} : vector<19x96xf32> to vector<1x32xf32>
    %177 = vector.extract_strided_slice %2 {offsets = [11, 0], sizes = [1, 32], strides = [1, 1]} : vector<19x96xf32> to vector<1x32xf32>
    %178 = vector.extract_strided_slice %2 {offsets = [12, 0], sizes = [1, 32], strides = [1, 1]} : vector<19x96xf32> to vector<1x32xf32>
    %179 = vector.extract_strided_slice %2 {offsets = [13, 0], sizes = [1, 32], strides = [1, 1]} : vector<19x96xf32> to vector<1x32xf32>
    %180 = vector.extract_strided_slice %2 {offsets = [14, 0], sizes = [1, 32], strides = [1, 1]} : vector<19x96xf32> to vector<1x32xf32>
    %181 = vector.extract_strided_slice %2 {offsets = [15, 0], sizes = [1, 32], strides = [1, 1]} : vector<19x96xf32> to vector<1x32xf32>
    %cst_56 = arith.constant dense<0.000000e+00> : vector<16x96xf32>
    %182 = tpu.matmul %166, %171, %cst_56 {dimension_numbers = #tpu.dot_dimension_numbers<[1], [0], [0], [1], [0, 0, 1, 1], [], []>} : vector<16x32xf32>, vector<32x96xf32>, vector<16x96xf32> -> vector<16x96xf32>
    %183 = vector.broadcast %174 : vector<1x96xf32> to vector<16x96xf32>
    %184 = arith.addf %182, %183 : vector<16x96xf32>
    %185 = vector.extract_strided_slice %184 {offsets = [0, 0], sizes = [16, 8], strides = [1, 1]} : vector<16x96xf32> to vector<16x8xf32>
    %186 = vector.extract_strided_slice %184 {offsets = [0, 32], sizes = [16, 8], strides = [1, 1]} : vector<16x96xf32> to vector<16x8xf32>
    %187 = vector.extract_strided_slice %184 {offsets = [0, 64], sizes = [16, 8], strides = [1, 1]} : vector<16x96xf32> to vector<16x8xf32>
    %cst_57 = arith.constant dense<0.000000e+00> : vector<16x16xf32>
    %188 = tpu.matmul %185, %186, %cst_57 {dimension_numbers = #tpu.dot_dimension_numbers<[1], [1], [0], [0], [0, 0, 1, 0], [], []>} : vector<16x8xf32>, vector<16x8xf32>, vector<16x16xf32> -> vector<16x16xf32>
    %cst_58 = arith.constant 0.353553385 : f32
    %189 = vector.broadcast %cst_58 : f32 to vector<16x16xf32>
    %190 = arith.mulf %188, %189 : vector<16x16xf32>
    %191 = arith.addf %190, %1 : vector<16x16xf32>
    %cst_59 = arith.constant dense<0xFF800000> : vector<16xf32>
    %192 = vector.multi_reduction <maximumf>, %191, %cst_59 [1] : vector<16x16xf32> to vector<16xf32>
    %193 = vector.shape_cast %192 : vector<16xf32> to vector<16x1xf32>
    %194 = vector.broadcast %193 : vector<16x1xf32> to vector<16x16xf32>
    %195 = arith.subf %191, %194 : vector<16x16xf32>
    %196 = math.exp %195 : vector<16x16xf32>
    %cst_60 = arith.constant dense<0.000000e+00> : vector<16xf32>
    %197 = vector.multi_reduction <add>, %196, %cst_60 [1] : vector<16x16xf32> to vector<16xf32>
    %198 = vector.shape_cast %197 : vector<16xf32> to vector<16x1xf32>
    %199 = tpu.reciprocal %198 {approx = true} : vector<16x1xf32> -> vector<16x1xf32>
    %200 = vector.broadcast %199 : vector<16x1xf32> to vector<16x16xf32>
    %201 = arith.mulf %196, %200 : vector<16x16xf32>
    %cst_61 = arith.constant dense<0.000000e+00> : vector<16x8xf32>
    %202 = tpu.matmul %201, %187, %cst_61 {dimension_numbers = #tpu.dot_dimension_numbers<[1], [0], [0], [1], [0, 0, 1, 1], [], []>} : vector<16x16xf32>, vector<16x8xf32>, vector<16x8xf32> -> vector<16x8xf32>
    %203 = vector.extract_strided_slice %172 {offsets = [0, 0], sizes = [8, 32], strides = [1, 1]} : vector<32x32xf32> to vector<8x32xf32>
    %cst_62 = arith.constant dense<0.000000e+00> : vector<16x32xf32>
    %204 = tpu.matmul %202, %203, %cst_62 {dimension_numbers = #tpu.dot_dimension_numbers<[1], [0], [0], [1], [0, 0, 1, 1], [], []>} : vector<16x8xf32>, vector<8x32xf32>, vector<16x32xf32> -> vector<16x32xf32>
    %205 = vector.extract_strided_slice %184 {offsets = [0, 8], sizes = [16, 8], strides = [1, 1]} : vector<16x96xf32> to vector<16x8xf32>
    %206 = vector.extract_strided_slice %184 {offsets = [0, 40], sizes = [16, 8], strides = [1, 1]} : vector<16x96xf32> to vector<16x8xf32>
    %207 = vector.extract_strided_slice %184 {offsets = [0, 72], sizes = [16, 8], strides = [1, 1]} : vector<16x96xf32> to vector<16x8xf32>
    %cst_63 = arith.constant dense<0.000000e+00> : vector<16x16xf32>
    %208 = tpu.matmul %205, %206, %cst_63 {dimension_numbers = #tpu.dot_dimension_numbers<[1], [1], [0], [0], [0, 0, 1, 0], [], []>} : vector<16x8xf32>, vector<16x8xf32>, vector<16x16xf32> -> vector<16x16xf32>
    %cst_64 = arith.constant 0.353553385 : f32
    %209 = vector.broadcast %cst_64 : f32 to vector<16x16xf32>
    %210 = arith.mulf %208, %209 : vector<16x16xf32>
    %211 = arith.addf %210, %1 : vector<16x16xf32>
    %cst_65 = arith.constant dense<0xFF800000> : vector<16xf32>
    %212 = vector.multi_reduction <maximumf>, %211, %cst_65 [1] : vector<16x16xf32> to vector<16xf32>
    %213 = vector.shape_cast %212 : vector<16xf32> to vector<16x1xf32>
    %214 = vector.broadcast %213 : vector<16x1xf32> to vector<16x16xf32>
    %215 = arith.subf %211, %214 : vector<16x16xf32>
    %216 = math.exp %215 : vector<16x16xf32>
    %cst_66 = arith.constant dense<0.000000e+00> : vector<16xf32>
    %217 = vector.multi_reduction <add>, %216, %cst_66 [1] : vector<16x16xf32> to vector<16xf32>
    %218 = vector.shape_cast %217 : vector<16xf32> to vector<16x1xf32>
    %219 = tpu.reciprocal %218 {approx = true} : vector<16x1xf32> -> vector<16x1xf32>
    %220 = vector.broadcast %219 : vector<16x1xf32> to vector<16x16xf32>
    %221 = arith.mulf %216, %220 : vector<16x16xf32>
    %cst_67 = arith.constant dense<0.000000e+00> : vector<16x8xf32>
    %222 = tpu.matmul %221, %207, %cst_67 {dimension_numbers = #tpu.dot_dimension_numbers<[1], [0], [0], [1], [0, 0, 1, 1], [], []>} : vector<16x16xf32>, vector<16x8xf32>, vector<16x8xf32> -> vector<16x8xf32>
    %223 = vector.extract_strided_slice %172 {offsets = [8, 0], sizes = [8, 32], strides = [1, 1]} : vector<32x32xf32> to vector<8x32xf32>
    %cst_68 = arith.constant dense<0.000000e+00> : vector<16x32xf32>
    %224 = tpu.matmul %222, %223, %cst_68 {dimension_numbers = #tpu.dot_dimension_numbers<[1], [0], [0], [1], [0, 0, 1, 1], [], []>} : vector<16x8xf32>, vector<8x32xf32>, vector<16x32xf32> -> vector<16x32xf32>
    %225 = arith.addf %204, %224 : vector<16x32xf32>
    %226 = vector.extract_strided_slice %184 {offsets = [0, 16], sizes = [16, 8], strides = [1, 1]} : vector<16x96xf32> to vector<16x8xf32>
    %227 = vector.extract_strided_slice %184 {offsets = [0, 48], sizes = [16, 8], strides = [1, 1]} : vector<16x96xf32> to vector<16x8xf32>
    %228 = vector.extract_strided_slice %184 {offsets = [0, 80], sizes = [16, 8], strides = [1, 1]} : vector<16x96xf32> to vector<16x8xf32>
    %cst_69 = arith.constant dense<0.000000e+00> : vector<16x16xf32>
    %229 = tpu.matmul %226, %227, %cst_69 {dimension_numbers = #tpu.dot_dimension_numbers<[1], [1], [0], [0], [0, 0, 1, 0], [], []>} : vector<16x8xf32>, vector<16x8xf32>, vector<16x16xf32> -> vector<16x16xf32>
    %cst_70 = arith.constant 0.353553385 : f32
    %230 = vector.broadcast %cst_70 : f32 to vector<16x16xf32>
    %231 = arith.mulf %229, %230 : vector<16x16xf32>
    %232 = arith.addf %231, %1 : vector<16x16xf32>
    %cst_71 = arith.constant dense<0xFF800000> : vector<16xf32>
    %233 = vector.multi_reduction <maximumf>, %232, %cst_71 [1] : vector<16x16xf32> to vector<16xf32>
    %234 = vector.shape_cast %233 : vector<16xf32> to vector<16x1xf32>
    %235 = vector.broadcast %234 : vector<16x1xf32> to vector<16x16xf32>
    %236 = arith.subf %232, %235 : vector<16x16xf32>
    %237 = math.exp %236 : vector<16x16xf32>
    %cst_72 = arith.constant dense<0.000000e+00> : vector<16xf32>
    %238 = vector.multi_reduction <add>, %237, %cst_72 [1] : vector<16x16xf32> to vector<16xf32>
    %239 = vector.shape_cast %238 : vector<16xf32> to vector<16x1xf32>
    %240 = tpu.reciprocal %239 {approx = true} : vector<16x1xf32> -> vector<16x1xf32>
    %241 = vector.broadcast %240 : vector<16x1xf32> to vector<16x16xf32>
    %242 = arith.mulf %237, %241 : vector<16x16xf32>
    %cst_73 = arith.constant dense<0.000000e+00> : vector<16x8xf32>
    %243 = tpu.matmul %242, %228, %cst_73 {dimension_numbers = #tpu.dot_dimension_numbers<[1], [0], [0], [1], [0, 0, 1, 1], [], []>} : vector<16x16xf32>, vector<16x8xf32>, vector<16x8xf32> -> vector<16x8xf32>
    %244 = vector.extract_strided_slice %172 {offsets = [16, 0], sizes = [8, 32], strides = [1, 1]} : vector<32x32xf32> to vector<8x32xf32>
    %cst_74 = arith.constant dense<0.000000e+00> : vector<16x32xf32>
    %245 = tpu.matmul %243, %244, %cst_74 {dimension_numbers = #tpu.dot_dimension_numbers<[1], [0], [0], [1], [0, 0, 1, 1], [], []>} : vector<16x8xf32>, vector<8x32xf32>, vector<16x32xf32> -> vector<16x32xf32>
    %246 = arith.addf %225, %245 : vector<16x32xf32>
    %247 = vector.extract_strided_slice %184 {offsets = [0, 24], sizes = [16, 8], strides = [1, 1]} : vector<16x96xf32> to vector<16x8xf32>
    %248 = vector.extract_strided_slice %184 {offsets = [0, 56], sizes = [16, 8], strides = [1, 1]} : vector<16x96xf32> to vector<16x8xf32>
    %249 = vector.extract_strided_slice %184 {offsets = [0, 88], sizes = [16, 8], strides = [1, 1]} : vector<16x96xf32> to vector<16x8xf32>
    %cst_75 = arith.constant dense<0.000000e+00> : vector<16x16xf32>
    %250 = tpu.matmul %247, %248, %cst_75 {dimension_numbers = #tpu.dot_dimension_numbers<[1], [1], [0], [0], [0, 0, 1, 0], [], []>} : vector<16x8xf32>, vector<16x8xf32>, vector<16x16xf32> -> vector<16x16xf32>
    %cst_76 = arith.constant 0.353553385 : f32
    %251 = vector.broadcast %cst_76 : f32 to vector<16x16xf32>
    %252 = arith.mulf %250, %251 : vector<16x16xf32>
    %253 = arith.addf %252, %1 : vector<16x16xf32>
    %cst_77 = arith.constant dense<0xFF800000> : vector<16xf32>
    %254 = vector.multi_reduction <maximumf>, %253, %cst_77 [1] : vector<16x16xf32> to vector<16xf32>
    %255 = vector.shape_cast %254 : vector<16xf32> to vector<16x1xf32>
    %256 = vector.broadcast %255 : vector<16x1xf32> to vector<16x16xf32>
    %257 = arith.subf %253, %256 : vector<16x16xf32>
    %258 = math.exp %257 : vector<16x16xf32>
    %cst_78 = arith.constant dense<0.000000e+00> : vector<16xf32>
    %259 = vector.multi_reduction <add>, %258, %cst_78 [1] : vector<16x16xf32> to vector<16xf32>
    %260 = vector.shape_cast %259 : vector<16xf32> to vector<16x1xf32>
    %261 = tpu.reciprocal %260 {approx = true} : vector<16x1xf32> -> vector<16x1xf32>
    %262 = vector.broadcast %261 : vector<16x1xf32> to vector<16x16xf32>
    %263 = arith.mulf %258, %262 : vector<16x16xf32>
    %cst_79 = arith.constant dense<0.000000e+00> : vector<16x8xf32>
    %264 = tpu.matmul %263, %249, %cst_79 {dimension_numbers = #tpu.dot_dimension_numbers<[1], [0], [0], [1], [0, 0, 1, 1], [], []>} : vector<16x16xf32>, vector<16x8xf32>, vector<16x8xf32> -> vector<16x8xf32>
    %265 = vector.extract_strided_slice %172 {offsets = [24, 0], sizes = [8, 32], strides = [1, 1]} : vector<32x32xf32> to vector<8x32xf32>
    %cst_80 = arith.constant dense<0.000000e+00> : vector<16x32xf32>
    %266 = tpu.matmul %264, %265, %cst_80 {dimension_numbers = #tpu.dot_dimension_numbers<[1], [0], [0], [1], [0, 0, 1, 1], [], []>} : vector<16x8xf32>, vector<8x32xf32>, vector<16x32xf32> -> vector<16x32xf32>
    %267 = arith.addf %246, %266 : vector<16x32xf32>
    %268 = vector.broadcast %176 : vector<1x32xf32> to vector<16x32xf32>
    %269 = arith.addf %267, %268 : vector<16x32xf32>
    %270 = arith.addf %269, %166 : vector<16x32xf32>
    %cst_81 = arith.constant dense<0.000000e+00> : vector<16xf32>
    %271 = vector.multi_reduction <add>, %270, %cst_81 [1] : vector<16x32xf32> to vector<16xf32>
    %272 = vector.shape_cast %271 : vector<16xf32> to vector<16x1xf32>
    %cst_82 = arith.constant 3.200000e+01 : f32
    %273 = vector.broadcast %cst_82 : f32 to vector<16x1xf32>
    %274 = arith.divf %272, %273 : vector<16x1xf32>
    %275 = vector.broadcast %274 : vector<16x1xf32> to vector<16x32xf32>
    %276 = arith.subf %270, %275 : vector<16x32xf32>
    %277 = arith.mulf %276, %276 : vector<16x32xf32>
    %cst_83 = arith.constant dense<0.000000e+00> : vector<16xf32>
    %278 = vector.multi_reduction <add>, %277, %cst_83 [1] : vector<16x32xf32> to vector<16xf32>
    %279 = vector.shape_cast %278 : vector<16xf32> to vector<16x1xf32>
    %cst_84 = arith.constant 3.200000e+01 : f32
    %280 = vector.broadcast %cst_84 : f32 to vector<16x1xf32>
    %281 = arith.divf %279, %280 : vector<16x1xf32>
    %cst_85 = arith.constant 9.99999996E-13 : f32
    %282 = vector.broadcast %cst_85 : f32 to vector<16x1xf32>
    %283 = arith.addf %281, %282 : vector<16x1xf32>
    %284 = math.rsqrt %283 : vector<16x1xf32>
    %285 = vector.broadcast %284 : vector<16x1xf32> to vector<16x32xf32>
    %286 = arith.mulf %276, %285 : vector<16x32xf32>
    %287 = vector.broadcast %177 : vector<1x32xf32> to vector<16x32xf32>
    %288 = arith.mulf %286, %287 : vector<16x32xf32>
    %289 = vector.broadcast %178 : vector<1x32xf32> to vector<16x32xf32>
    %290 = arith.addf %288, %289 : vector<16x32xf32>
    %cst_86 = arith.constant dense<0.000000e+00> : vector<16x64xf32>
    %291 = tpu.matmul %290, %173, %cst_86 {dimension_numbers = #tpu.dot_dimension_numbers<[1], [0], [0], [1], [0, 0, 1, 1], [], []>} : vector<16x32xf32>, vector<32x64xf32>, vector<16x64xf32> -> vector<16x64xf32>
    %292 = vector.broadcast %175 : vector<1x64xf32> to vector<16x64xf32>
    %293 = arith.addf %291, %292 : vector<16x64xf32>
    %cst_87 = arith.constant 5.000000e-01 : f32
    %294 = vector.broadcast %cst_87 : f32 to vector<16x64xf32>
    %295 = arith.mulf %294, %293 : vector<16x64xf32>
    %cst_88 = arith.constant 4.471500e-02 : f32
    %296 = vector.broadcast %cst_88 : f32 to vector<16x64xf32>
    %297 = arith.mulf %296, %293 : vector<16x64xf32>
    %298 = arith.mulf %297, %293 : vector<16x64xf32>
    %299 = arith.mulf %298, %293 : vector<16x64xf32>
    %300 = arith.addf %293, %299 : vector<16x64xf32>
    %cst_89 = arith.constant 0.797884583 : f32
    %301 = vector.broadcast %cst_89 : f32 to vector<16x64xf32>
    %302 = arith.mulf %301, %300 : vector<16x64xf32>
    %303 = math.tanh %302 : vector<16x64xf32>
    %cst_90 = arith.constant 1.000000e+00 : f32
    %304 = vector.broadcast %cst_90 : f32 to vector<16x64xf32>
    %305 = arith.addf %304, %303 : vector<16x64xf32>
    %306 = arith.mulf %295, %305 : vector<16x64xf32>
    %cst_91 = arith.constant dense<0.000000e+00> : vector<16x32xf32>
    %307 = tpu.matmul %306, %170, %cst_91 {dimension_numbers = #tpu.dot_dimension_numbers<[1], [0], [0], [1], [0, 0, 1, 1], [], []>} : vector<16x64xf32>, vector<64x32xf32>, vector<16x32xf32> -> vector<16x32xf32>
    %308 = vector.broadcast %179 : vector<1x32xf32> to vector<16x32xf32>
    %309 = arith.addf %307, %308 : vector<16x32xf32>
    %310 = arith.addf %309, %290 : vector<16x32xf32>
    %cst_92 = arith.constant dense<0.000000e+00> : vector<16xf32>
    %311 = vector.multi_reduction <add>, %310, %cst_92 [1] : vector<16x32xf32> to vector<16xf32>
    %312 = vector.shape_cast %311 : vector<16xf32> to vector<16x1xf32>
    %cst_93 = arith.constant 3.200000e+01 : f32
    %313 = vector.broadcast %cst_93 : f32 to vector<16x1xf32>
    %314 = arith.divf %312, %313 : vector<16x1xf32>
    %315 = vector.broadcast %314 : vector<16x1xf32> to vector<16x32xf32>
    %316 = arith.subf %310, %315 : vector<16x32xf32>
    %317 = arith.mulf %316, %316 : vector<16x32xf32>
    %cst_94 = arith.constant dense<0.000000e+00> : vector<16xf32>
    %318 = vector.multi_reduction <add>, %317, %cst_94 [1] : vector<16x32xf32> to vector<16xf32>
    %319 = vector.shape_cast %318 : vector<16xf32> to vector<16x1xf32>
    %cst_95 = arith.constant 3.200000e+01 : f32
    %320 = vector.broadcast %cst_95 : f32 to vector<16x1xf32>
    %321 = arith.divf %319, %320 : vector<16x1xf32>
    %cst_96 = arith.constant 9.99999996E-13 : f32
    %322 = vector.broadcast %cst_96 : f32 to vector<16x1xf32>
    %323 = arith.addf %321, %322 : vector<16x1xf32>
    %324 = math.rsqrt %323 : vector<16x1xf32>
    %325 = vector.broadcast %324 : vector<16x1xf32> to vector<16x32xf32>
    %326 = arith.mulf %316, %325 : vector<16x32xf32>
    %327 = vector.broadcast %180 : vector<1x32xf32> to vector<16x32xf32>
    %328 = arith.mulf %326, %327 : vector<16x32xf32>
    %329 = vector.broadcast %181 : vector<1x32xf32> to vector<16x32xf32>
    %330 = arith.addf %328, %329 : vector<16x32xf32>
    %331 = vector.extract_strided_slice %2 {offsets = [16, 0], sizes = [1, 32], strides = [1, 1]} : vector<19x96xf32> to vector<1x32xf32>
    %332 = vector.extract_strided_slice %2 {offsets = [17, 0], sizes = [1, 32], strides = [1, 1]} : vector<19x96xf32> to vector<1x32xf32>
    %333 = vector.extract_strided_slice %2 {offsets = [18, 0], sizes = [1, 32], strides = [1, 1]} : vector<19x96xf32> to vector<1x32xf32>
    %c0_97 = arith.constant 0 : index
    %c0_98 = arith.constant 0 : index
    %334 = vector.load %arg5[%c0_97, %c0_98] : memref<96x32xf32, #tpu.memory_space<vmem>>, vector<96x32xf32>
    %335 = vector.extract_strided_slice %334 {offsets = [0, 0], sizes = [32, 32], strides = [1, 1]} : vector<96x32xf32> to vector<32x32xf32>
    %336 = vector.extract_strided_slice %334 {offsets = [32, 0], sizes = [64, 32], strides = [1, 1]} : vector<96x32xf32> to vector<64x32xf32>
    %cst_99 = arith.constant dense<0.000000e+00> : vector<16x32xf32>
    %337 = tpu.matmul %330, %335, %cst_99 {dimension_numbers = #tpu.dot_dimension_numbers<[1], [0], [0], [1], [0, 0, 1, 1], [], []>} : vector<16x32xf32>, vector<32x32xf32>, vector<16x32xf32> -> vector<16x32xf32>
    %c0_100 = arith.constant 0 : index
    %c0_101 = arith.constant 0 : index
    %338 = vector.load %arg2[%c0_100, %c0_101] : memref<16x64xf32, #tpu.memory_space<vmem>>, vector<16x64xf32>
    %cst_102 = arith.constant dense<0.000000e+00> : vector<16x32xf32>
    %339 = tpu.matmul %338, %336, %cst_102 {dimension_numbers = #tpu.dot_dimension_numbers<[1], [0], [0], [1], [0, 0, 1, 1], [], []>} : vector<16x64xf32>, vector<64x32xf32>, vector<16x32xf32> -> vector<16x32xf32>
    %340 = arith.addf %337, %339 : vector<16x32xf32>
    %341 = vector.broadcast %331 : vector<1x32xf32> to vector<16x32xf32>
    %342 = arith.addf %340, %341 : vector<16x32xf32>
    %cst_103 = arith.constant dense<0.000000e+00> : vector<16xf32>
    %343 = vector.multi_reduction <add>, %342, %cst_103 [1] : vector<16x32xf32> to vector<16xf32>
    %344 = vector.shape_cast %343 : vector<16xf32> to vector<16x1xf32>
    %cst_104 = arith.constant 3.200000e+01 : f32
    %345 = vector.broadcast %cst_104 : f32 to vector<16x1xf32>
    %346 = arith.divf %344, %345 : vector<16x1xf32>
    %347 = vector.broadcast %346 : vector<16x1xf32> to vector<16x32xf32>
    %348 = arith.subf %342, %347 : vector<16x32xf32>
    %349 = arith.mulf %348, %348 : vector<16x32xf32>
    %cst_105 = arith.constant dense<0.000000e+00> : vector<16xf32>
    %350 = vector.multi_reduction <add>, %349, %cst_105 [1] : vector<16x32xf32> to vector<16xf32>
    %351 = vector.shape_cast %350 : vector<16xf32> to vector<16x1xf32>
    %cst_106 = arith.constant 3.200000e+01 : f32
    %352 = vector.broadcast %cst_106 : f32 to vector<16x1xf32>
    %353 = arith.divf %351, %352 : vector<16x1xf32>
    %cst_107 = arith.constant 9.99999996E-13 : f32
    %354 = vector.broadcast %cst_107 : f32 to vector<16x1xf32>
    %355 = arith.addf %353, %354 : vector<16x1xf32>
    %356 = math.rsqrt %355 : vector<16x1xf32>
    %357 = vector.broadcast %356 : vector<16x1xf32> to vector<16x32xf32>
    %358 = arith.mulf %348, %357 : vector<16x32xf32>
    %359 = vector.broadcast %332 : vector<1x32xf32> to vector<16x32xf32>
    %360 = arith.mulf %358, %359 : vector<16x32xf32>
    %361 = vector.broadcast %333 : vector<1x32xf32> to vector<16x32xf32>
    %362 = arith.addf %360, %361 : vector<16x32xf32>
    %363 = vector.shape_cast %362 : vector<16x32xf32> to vector<2x8x32xf32>
    %c0_108 = arith.constant 0 : index
    %c0_109 = arith.constant 0 : index
    %c0_110 = arith.constant 0 : index
    %364 = vector.load %arg7[%c0_108, %c0_109, %c0_110] : memref<2x8x32xf32, #tpu.memory_space<vmem>>, vector<2x8x32xf32>
    tpu.vector_store %arg7[%c0_108, %c0_109, %c0_110], %363 {strides = array<i32>} : memref<2x8x32xf32, #tpu.memory_space<vmem>>, vector<2x8x32xf32>,
    return
  }
}

</mosaic_0001>

<llo_original>
// kernel: language_encoder_do_forward.1
$region0: #{language_encoder_do_forward.1}
  #allocation0 [shape = 'u32[]', space=smem, size = 0x4, offset = 0x4, fixed_abs, tag = 'smem constant byte address 0x4 - core index']
  #allocation1 [shape = 'u32[144,128]{1,0:T(1,128)}', space=vmem, size = 0x12000, scoped, tag = 'internal scratch']
  %s0 = inlined_call_operand.vmem [shape: f32[16,32], index: 0, kind: input, shape index: {}]
  %s1 = inlined_call_operand.vmem [shape: f32[16,16], index: 1, kind: input, shape index: {}]
  %s2 = inlined_call_operand.vmem [shape: f32[16,64], index: 2, kind: input, shape index: {}]
  %s3 = inlined_call_operand.vmem [shape: f32[2,32,192], index: 3, kind: input, shape index: {}]
  %s4 = inlined_call_operand.vmem [shape: f32[2,64,32], index: 4, kind: input, shape index: {}]
  %s5 = inlined_call_operand.vmem [shape: f32[96,32], index: 5, kind: input, shape index: {}]
  %s6 = inlined_call_operand.vmem [shape: f32[19,96], index: 6, kind: input, shape index: {}]
  %s7 = inlined_call_operand.hbm [shape: f32[2,8,32], index: 7, kind: output, shape index: {}]
  %s8 = sld [smem:[#allocation0]]
  $region38: #{language_encoder_do_forward.1} parent=0
    _
  %s10 = ssub.s32 1, %s8
  %s11 = scalar_select 0, %s10, %s8
  $region1: #{language_encoder_do_forward.1} parent=0
    #allocation2 [shape = 'u8[8192]{0}', space=vmem, size = 0x2000, scoped, tag = 'output window, operand 0, single buffered']
    #allocation3 [shape = 's32[1]{0}', space=sflag, size = 0x4, scoped, tag = 'scoped memory for language_encoder_do_forward.1']
    %12 = vsyncpa [#allocation3], 0
    // Predicated region
    $region2: #{language_encoder_do_forward.1} parent=1 // pred_check
      _
    $region3: #{language_encoder_do_forward.1} parent=1 // pred_check_branch
      %14 = sbr.rel (0) target = $region5
    $region4: #{language_encoder_do_forward.1} parent=1 // pred_region
      _
    $region5: #{language_encoder_do_forward.1} parent=1 // pred_fallthru
      _
    // Predicated region
    $region6: #{language_encoder_do_forward.1} parent=1 // pred_check
      _
    $region7: #{language_encoder_do_forward.1} parent=1 // pred_check_branch
      %16 = sbr.rel (0) target = $region9
    $region8: #{language_encoder_do_forward.1} parent=1 // pred_region
      _
    $region9: #{language_encoder_do_forward.1} parent=1 // pred_fallthru
      _
    // Predicated region
    $region10: #{language_encoder_do_forward.1} parent=1 // pred_check
      _
    $region11: #{language_encoder_do_forward.1} parent=1 // pred_check_branch
      %18 = sbr.rel (0) target = $region13
    $region12: #{language_encoder_do_forward.1} parent=1 // pred_region
      _
    $region13: #{language_encoder_do_forward.1} parent=1 // pred_fallthru
      _
    // Predicated region
    $region14: #{language_encoder_do_forward.1} parent=1 // pred_check
      _
    $region15: #{language_encoder_do_forward.1} parent=1 // pred_check_branch
      %20 = sbr.rel (0) target = $region17
    $region16: #{language_encoder_do_forward.1} parent=1 // pred_region
      _
    $region17: #{language_encoder_do_forward.1} parent=1 // pred_fallthru
      _
    // Predicated region
    $region18: #{language_encoder_do_forward.1} parent=1 // pred_check
      _
    $region19: #{language_encoder_do_forward.1} parent=1 // pred_check_branch
      %22 = sbr.rel (0) target = $region21
    $region20: #{language_encoder_do_forward.1} parent=1 // pred_region
      _
    $region21: #{language_encoder_do_forward.1} parent=1 // pred_fallthru
      _
    // Predicated region
    $region22: #{language_encoder_do_forward.1} parent=1 // pred_check
      _
    $region23: #{language_encoder_do_forward.1} parent=1 // pred_check_branch
      %24 = sbr.rel (0) target = $region25
    $region24: #{language_encoder_do_forward.1} parent=1 // pred_region
      _
    $region25: #{language_encoder_do_forward.1} parent=1 // pred_fallthru
      _
    // Predicated region
    $region26: #{language_encoder_do_forward.1} parent=1 // pred_check
      _
    $region27: #{language_encoder_do_forward.1} parent=1 // pred_check_branch
      %26 = sbr.rel (0) target = $region29
    $region28: #{language_encoder_do_forward.1} parent=1 // pred_region
      _
    $region29: #{language_encoder_do_forward.1} parent=1 // pred_fallthru
      _
    %v27 = vld [vmem:[%s0] sm:$0xff]
    %v28 = vld [vmem:[%s0 + $0x8] sm:$0xff]
    %v29 = vld [vmem:[%s1] sm:$0xff]
    %v30 = vld [vmem:[%s1 + $0x8] sm:$0xff]
    %v31 = vld [vmem:[%s6] sm:$0xff]
    %v32 = vld [vmem:[%s6 + $0x8] sm:$0xff]
    %v33 = vld [vmem:[%s6 + $0x10] sm:$0x7]
    %v34 = vld [vmem:[%s3] sm:$0xff]
    %v35 = vld [vmem:[%s3 + $0x8] sm:$0xff]
    %v36 = vld [vmem:[%s3 + $0x10] sm:$0xff]
    %v37 = vld [vmem:[%s3 + $0x18] sm:$0xff]
    %v38 = vld [vmem:[%s3 + $0x20] sm:$0xff]
    %v39 = vld [vmem:[%s3 + $0x28] sm:$0xff]
    %v40 = vld [vmem:[%s3 + $0x30] sm:$0xff]
    %v41 = vld [vmem:[%s3 + $0x38] sm:$0xff]
    %v42 = vld [vmem:[%s4] sm:$0xff]
    %v43 = vld [vmem:[%s4 + $0x8] sm:$0xff]
    %v44 = vld [vmem:[%s4 + $0x10] sm:$0xff]
    %v45 = vld [vmem:[%s4 + $0x18] sm:$0xff]
    %v46 = vld [vmem:[%s4 + $0x20] sm:$0xff]
    %v47 = vld [vmem:[%s4 + $0x28] sm:$0xff]
    %v48 = vld [vmem:[%s4 + $0x30] sm:$0xff]
    %v49 = vld [vmem:[%s4 + $0x38] sm:$0xff]
    %v50 = vlaneseq
    %v51 = vshrl.u32 %v50, 7
    %v52 = vsub.s32 0, %v51
    %v53 = vrot.slane %v31, %v52
    %vm54 = vcmask 261120
    %v56 = vsel %vm54, %v27, 0
    %v59 = vsel %vm54, %v28, 0
    %61 = vmatprep.subr.mxu0 0.0
    %62 = vmatpush1.msra.mxu0 %v34
    %63 = vmatprep.subr.mxu0 0.0
    %64 = vmatpush1.msra.mxu0 %v36
    %65 = vmatprep.subr.mxu0 0.0
    %66 = vmatpush1.msra.mxu0 %v38
    %67 = vmatprep.subr.mxu0 0.0
    %68 = vmatpush1.msra.mxu0 %v40
    %69 = vmatprep.subr.mxu0 0.0
    %70 = vmatpush1.msra.mxu0 0.0
    %71 = vmatprep.subr.mxu0 0.0
    %72 = vmatpush1.msra.mxu0 0.0
    %73 = vmatprep.subr.mxu0 0.0
    %74 = vmatpush1.msra.mxu0 0.0
    %75 = vmatprep.subr.mxu0 0.0
    %76 = vmatpush1.msra.mxu0 0.0
    %77 = vmatprep.subr.mxu0 0.0
    %78 = vmatpush1.msra.mxu0 0.0
    %79 = vmatprep.subr.mxu0 0.0
    %80 = vmatpush1.msra.mxu0 0.0
    %81 = vmatprep.subr.mxu0 0.0
    %82 = vmatpush1.msra.mxu0 0.0
    %83 = vmatprep.subr.mxu0 0.0
    %84 = vmatpush1.msra.mxu0 0.0
    %85 = vmatprep.subr.mxu0 0.0
    %86 = vmatpush1.msra.mxu0 0.0
    %87 = vmatprep.subr.mxu0 0.0
    %88 = vmatpush1.msra.mxu0 0.0
    %89 = vmatprep.subr.mxu0 0.0
    %90 = vmatpush1.msra.mxu0 0.0
    %91 = vmatprep.subr.mxu0 0.0
    %92 = vmatpush1.msra.mxu0 0.0
    %93 = vmatprep.subr.mxu0 0.0
    %94 = vmatpush1.msra.mxu0 0.0
    %95 = vmatprep.subr.mxu0 0.0
    %96 = vmatpush1.msra.mxu0 0.0
    %97 = vmatprep.subr.mxu0 0.0
    %98 = vmatpush1.msra.mxu0 0.0
    %99 = vmatprep.subr.mxu0 0.0
    %100 = vmatpush1.msra.mxu0 0.0
    %101 = vmatprep.subr.mxu0 0.0
    %102 = vmatpush1.msra.mxu0 0.0
    %103 = vmatprep.subr.mxu0 0.0
    %104 = vmatpush1.msra.mxu0 0.0
    %105 = vmatprep.subr.mxu0 0.0
    %106 = vmatpush1.msra.mxu0 0.0
    %107 = vmatprep.subr.mxu0 0.0
    %108 = vmatpush1.msra.mxu0 0.0
    %109 = vmatprep.subr.mxu0 0.0
    %110 = vmatpush1.msra.mxu0 0.0
    %111 = vmatprep.subr.mxu0 0.0
    %112 = vmatpush1.msra.mxu0 0.0
    %113 = vmatprep.subr.mxu0 0.0
    %114 = vmatpush1.msra.mxu0 0.0
    %115 = vmatprep.subr.mxu0 0.0
    %116 = vmatpush1.msra.mxu0 0.0
    %117 = vmatprep.subr.mxu0 0.0
    %118 = vmatpush1.msra.mxu0 0.0
    %119 = vmatprep.subr.mxu0 0.0
    %120 = vmatpush1.msra.mxu0 0.0
    %121 = vmatprep.subr.mxu0 0.0
    %122 = vmatpush1.msra.mxu0 0.0
    %123 = vmatprep.subr.mxu0 0.0
    %124 = vmatpush1.msra.mxu0 0.0
    %125 = vmatprep.mubr.f32.mxu0 0.0
    %126 = vmatmul.mubr.f32.gmra.mrb[0].mxu0 %v56
    %v127 = vpop.f32.mrb[0].mxu0
    %v128 = vadd.f32 %v53, %v127
    %v129 = vpop.f32.mrb[0].mxu0
    %130 = vmatprep.mubr.f32.mxu0 0.0
    %131 = vmatmul.mubr.f32.gmra.mrb[0].mxu0 %v59
    %v132 = vpop.f32.mrb[0].mxu0
    %v133 = vadd.f32 %v53, %v132
    %v134 = vpop.f32.mrb[0].mxu0
    %135 = vdwg.mxu0
    %138 = vrot.lane.b32.xlu0 %v128, 96
    %v139 = vpop.permute.xlu0 %138
    %140 = vrot.lane.b32.xlu0 %v133, 96
    %v141 = vpop.permute.xlu0 %140
    %vm142 = vcmask 64512
    %v143 = vsel %vm142, %v128, 0
    %v145 = vsel %vm142, %v133, 0
    %v147 = vsel %vm142, %v139, 0
    %v149 = vsel %vm142, %v141, 0
    %151 = vmatprep.subr.mxu0 0.0
    %152 = vmatpush1.xpose.msra.mxu0 %v147
    %153 = vmatprep.subr.mxu0 0.0
    %154 = vmatpush1.xpose.msra.mxu0 %v149
    %155 = vmatprep.subr.mxu0 0.0
    %156 = vmatpush1.xpose.msra.mxu0 0.0
    %157 = vmatprep.subr.mxu0 0.0
    %158 = vmatpush1.xpose.msra.mxu0 0.0
    %159 = vmatprep.subr.mxu0 0.0
    %160 = vmatpush1.xpose.msra.mxu0 0.0
    %161 = vmatprep.subr.mxu0 0.0
    %162 = vmatpush1.xpose.msra.mxu0 0.0
    %163 = vmatprep.subr.mxu0 0.0
    %164 = vmatpush1.xpose.msra.mxu0 0.0
    %165 = vmatprep.subr.mxu0 0.0
    %166 = vmatpush1.xpose.msra.mxu0 0.0
    %167 = vmatprep.subr.mxu0 0.0
    %168 = vmatpush1.xpose.msra.mxu0 0.0
    %169 = vmatprep.subr.mxu0 0.0
    %170 = vmatpush1.xpose.msra.mxu0 0.0
    %171 = vmatprep.subr.mxu0 0.0
    %172 = vmatpush1.xpose.msra.mxu0 0.0
    %173 = vmatprep.subr.mxu0 0.0
    %174 = vmatpush1.xpose.msra.mxu0 0.0
    %175 = vmatprep.subr.mxu0 0.0
    %176 = vmatpush1.xpose.msra.mxu0 0.0
    %177 = vmatprep.subr.mxu0 0.0
    %178 = vmatpush1.xpose.msra.mxu0 0.0
    %179 = vmatprep.subr.mxu0 0.0
    %180 = vmatpush1.xpose.msra.mxu0 0.0
    %181 = vmatprep.subr.mxu0 0.0
    %182 = vmatpush1.xpose.msra.mxu0 0.0
    %183 = vmatprep.subr.mxu0 0.0
    %184 = vmatpush1.xpose.msra.mxu0 0.0
    %185 = vmatprep.subr.mxu0 0.0
    %186 = vmatpush1.xpose.msra.mxu0 0.0
    %187 = vmatprep.subr.mxu0 0.0
    %188 = vmatpush1.xpose.msra.mxu0 0.0
    %189 = vmatprep.subr.mxu0 0.0
    %190 = vmatpush1.xpose.msra.mxu0 0.0
    %191 = vmatprep.subr.mxu0 0.0
    %192 = vmatpush1.xpose.msra.mxu0 0.0
    %193 = vmatprep.subr.mxu0 0.0
    %194 = vmatpush1.xpose.msra.mxu0 0.0
    %195 = vmatprep.subr.mxu0 0.0
    %196 = vmatpush1.xpose.msra.mxu0 0.0
    %197 = vmatprep.subr.mxu0 0.0
    %198 = vmatpush1.xpose.msra.mxu0 0.0
    %199 = vmatprep.subr.mxu0 0.0
    %200 = vmatpush1.xpose.msra.mxu0 0.0
    %201 = vmatprep.subr.mxu0 0.0
    %202 = vmatpush1.xpose.msra.mxu0 0.0
    %203 = vmatprep.subr.mxu0 0.0
    %204 = vmatpush1.xpose.msra.mxu0 0.0
    %205 = vmatprep.subr.mxu0 0.0
    %206 = vmatpush1.xpose.msra.mxu0 0.0
    %207 = vmatprep.subr.mxu0 0.0
    %208 = vmatpush1.xpose.msra.mxu0 0.0
    %209 = vmatprep.subr.mxu0 0.0
    %210 = vmatpush1.xpose.msra.mxu0 0.0
    %211 = vmatprep.subr.mxu0 0.0
    %212 = vmatpush1.xpose.msra.mxu0 0.0
    %213 = vmatprep.subr.mxu0 0.0
    %214 = vmatpush1.xpose.msra.mxu0 0.0
    %215 = vmatprep.mubr.f32.mxu0 0.0
    %216 = vmatmul.mubr.f32.gmra.mrb[0].mxu0 %v143
    %v217 = vpop.f32.mrb[0].mxu0
    %v218 = vadd.f32 0.0, %v217
    %v219 = vpop.f32.mrb[0].mxu0
    %220 = vmatprep.mubr.f32.mxu0 0.0
    %221 = vmatmul.mubr.f32.gmra.mrb[0].mxu0 %v145
    %v222 = vpop.f32.mrb[0].mxu0
    %v223 = vadd.f32 0.0, %v222
    %v224 = vpop.f32.mrb[0].mxu0
    %225 = vdwg.mxu0
    %v226 = vmul.f32 %v218, 0.35355338
    %v227 = vmul.f32 %v223, 0.35355338
    %v228 = vadd.f32 %v226, %v29
    %v229 = vadd.f32 %v227, %v30
    %vm230 = vcmask 130048
    %v231 = vsel %vm230, %v228, -inf
    %232 = vmax.xlane.f32.xlu0 %v231
    %v233 = vpop.xlane.xlu0 %232
    %v234 = vsel %vm230, %v229, -inf
    %235 = vmax.xlane.f32.xlu0 %v234
    %v236 = vpop.xlane.xlu0 %235
    %v237 = vsub.f32 %v228, %v233
    %v238 = vsub.f32 %v229, %v236
    %v239 = vmul.f32 %v237, 1.442695
    %v240 = vpow.pop %v239
    %v241 = vmul.f32 %v238, 1.442695
    %v242 = vpow.pop %v241
    %v243 = vsel %vm230, %v240, 0.0
    %244 = vadd.xlane.f32.xlu0 %v243
    %v245 = vpop.xlane.xlu0 %244
    %v246 = vsel %vm230, %v242, 0.0
    %247 = vadd.xlane.f32.xlu0 %v246
    %v248 = vpop.xlane.xlu0 %247
    %v249 = vrcp.pop %v245
    %v250 = vrcp.pop %v248
    %v251 = vmul.f32 %v240, %v249
    %v252 = vmul.f32 %v242, %v250
    %253 = vrot.lane.b32.xlu0 %v128, 64
    %v254 = vpop.permute.xlu0 %253
    %255 = vrot.lane.b32.xlu0 %v133, 64
    %v256 = vpop.permute.xlu0 %255
    %v260 = vsel %vm230, %v251, 0
    %v263 = vsel %vm230, %v252, 0
    %265 = vmatprep.subr.mxu0 0.0
    %266 = vmatpush1.msra.mxu0 %v254
    %267 = vmatprep.subr.mxu0 0.0
    %268 = vmatpush1.msra.mxu0 %v256
    %269 = vmatprep.subr.mxu0 0.0
    %270 = vmatpush1.msra.mxu0 0.0
    %271 = vmatprep.subr.mxu0 0.0
    %272 = vmatpush1.msra.mxu0 0.0
    %273 = vmatprep.subr.mxu0 0.0
    %274 = vmatpush1.msra.mxu0 0.0
    %275 = vmatprep.subr.mxu0 0.0
    %276 = vmatpush1.msra.mxu0 0.0
    %277 = vmatprep.subr.mxu0 0.0
    %278 = vmatpush1.msra.mxu0 0.0
    %279 = vmatprep.subr.mxu0 0.0
    %280 = vmatpush1.msra.mxu0 0.0
    %281 = vmatprep.subr.mxu0 0.0
    %282 = vmatpush1.msra.mxu0 0.0
    %283 = vmatprep.subr.mxu0 0.0
    %284 = vmatpush1.msra.mxu0 0.0
    %285 = vmatprep.subr.mxu0 0.0
    %286 = vmatpush1.msra.mxu0 0.0
    %287 = vmatprep.subr.mxu0 0.0
    %288 = vmatpush1.msra.mxu0 0.0
    %289 = vmatprep.subr.mxu0 0.0
    %290 = vmatpush1.msra.mxu0 0.0
    %291 = vmatprep.subr.mxu0 0.0
    %292 = vmatpush1.msra.mxu0 0.0
    %293 = vmatprep.subr.mxu0 0.0
    %294 = vmatpush1.msra.mxu0 0.0
    %295 = vmatprep.subr.mxu0 0.0
    %296 = vmatpush1.msra.mxu0 0.0
    %297 = vmatprep.subr.mxu0 0.0
    %298 = vmatpush1.msra.mxu0 0.0
    %299 = vmatprep.subr.mxu0 0.0
    %300 = vmatpush1.msra.mxu0 0.0
    %301 = vmatprep.subr.mxu0 0.0
    %302 = vmatpush1.msra.mxu0 0.0
    %303 = vmatprep.subr.mxu0 0.0
    %304 = vmatpush1.msra.mxu0 0.0
    %305 = vmatprep.subr.mxu0 0.0
    %306 = vmatpush1.msra.mxu0 0.0
    %307 = vmatprep.subr.mxu0 0.0
    %308 = vmatpush1.msra.mxu0 0.0
    %309 = vmatprep.subr.mxu0 0.0
    %310 = vmatpush1.msra.mxu0 0.0
    %311 = vmatprep.subr.mxu0 0.0
    %312 = vmatpush1.msra.mxu0 0.0
    %313 = vmatprep.subr.mxu0 0.0
    %314 = vmatpush1.msra.mxu0 0.0
    %315 = vmatprep.subr.mxu0 0.0
    %316 = vmatpush1.msra.mxu0 0.0
    %317 = vmatprep.subr.mxu0 0.0
    %318 = vmatpush1.msra.mxu0 0.0
    %319 = vmatprep.subr.mxu0 0.0
    %320 = vmatpush1.msra.mxu0 0.0
    %321 = vmatprep.subr.mxu0 0.0
    %322 = vmatpush1.msra.mxu0 0.0
    %323 = vmatprep.subr.mxu0 0.0
    %324 = vmatpush1.msra.mxu0 0.0
    %325 = vmatprep.subr.mxu0 0.0
    %326 = vmatpush1.msra.mxu0 0.0
    %327 = vmatprep.subr.mxu0 0.0
    %328 = vmatpush1.msra.mxu0 0.0
    %329 = vmatprep.mubr.f32.mxu0 0.0
    %330 = vmatmul.mubr.f32.gmra.mrb[0].mxu0 %v260
    %v331 = vpop.f32.mrb[0].mxu0
    %v332 = vadd.f32 0.0, %v331
    %v333 = vpop.f32.mrb[0].mxu0
    %334 = vmatprep.mubr.f32.mxu0 0.0
    %335 = vmatmul.mubr.f32.gmra.mrb[0].mxu0 %v263
    %v336 = vpop.f32.mrb[0].mxu0
    %v337 = vadd.f32 0.0, %v336
    %v338 = vpop.f32.mrb[0].mxu0
    %339 = vdwg.mxu0
    %340 = vrot.lane.b32.xlu0 %v128, 120
    %v341 = vpop.permute.xlu0 %340
    %342 = vrot.lane.b32.xlu0 %v133, 120
    %v343 = vpop.permute.xlu0 %342
    %344 = vrot.lane.b32.xlu0 %v128, 88
    %v345 = vpop.permute.xlu0 %344
    %346 = vrot.lane.b32.xlu0 %v133, 88
    %v347 = vpop.permute.xlu0 %346
    %v348 = vsel %vm142, %v341, 0
    %v350 = vsel %vm142, %v343, 0
    %v352 = vsel %vm142, %v345, 0
    %v354 = vsel %vm142, %v347, 0
    %356 = vmatprep.subr.mxu0 0.0
    %357 = vmatpush1.xpose.msra.mxu0 %v352
    %358 = vmatprep.subr.mxu0 0.0
    %359 = vmatpush1.xpose.msra.mxu0 %v354
    %360 = vmatprep.subr.mxu0 0.0
    %361 = vmatpush1.xpose.msra.mxu0 0.0
    %362 = vmatprep.subr.mxu0 0.0
    %363 = vmatpush1.xpose.msra.mxu0 0.0
    %364 = vmatprep.subr.mxu0 0.0
    %365 = vmatpush1.xpose.msra.mxu0 0.0
    %366 = vmatprep.subr.mxu0 0.0
    %367 = vmatpush1.xpose.msra.mxu0 0.0
    %368 = vmatprep.subr.mxu0 0.0
    %369 = vmatpush1.xpose.msra.mxu0 0.0
    %370 = vmatprep.subr.mxu0 0.0
    %371 = vmatpush1.xpose.msra.mxu0 0.0
    %372 = vmatprep.subr.mxu0 0.0
    %373 = vmatpush1.xpose.msra.mxu0 0.0
    %374 = vmatprep.subr.mxu0 0.0
    %375 = vmatpush1.xpose.msra.mxu0 0.0
    %376 = vmatprep.subr.mxu0 0.0
    %377 = vmatpush1.xpose.msra.mxu0 0.0
    %378 = vmatprep.subr.mxu0 0.0
    %379 = vmatpush1.xpose.msra.mxu0 0.0
    %380 = vmatprep.subr.mxu0 0.0
    %381 = vmatpush1.xpose.msra.mxu0 0.0
    %382 = vmatprep.subr.mxu0 0.0
    %383 = vmatpush1.xpose.msra.mxu0 0.0
    %384 = vmatprep.subr.mxu0 0.0
    %385 = vmatpush1.xpose.msra.mxu0 0.0
    %386 = vmatprep.subr.mxu0 0.0
    %387 = vmatpush1.xpose.msra.mxu0 0.0
    %388 = vmatprep.subr.mxu0 0.0
    %389 = vmatpush1.xpose.msra.mxu0 0.0
    %390 = vmatprep.subr.mxu0 0.0
    %391 = vmatpush1.xpose.msra.mxu0 0.0
    %392 = vmatprep.subr.mxu0 0.0
    %393 = vmatpush1.xpose.msra.mxu0 0.0
    %394 = vmatprep.subr.mxu0 0.0
    %395 = vmatpush1.xpose.msra.mxu0 0.0
    %396 = vmatprep.subr.mxu0 0.0
    %397 = vmatpush1.xpose.msra.mxu0 0.0
    %398 = vmatprep.subr.mxu0 0.0
    %399 = vmatpush1.xpose.msra.mxu0 0.0
    %400 = vmatprep.subr.mxu0 0.0
    %401 = vmatpush1.xpose.msra.mxu0 0.0
    %402 = vmatprep.subr.mxu0 0.0
    %403 = vmatpush1.xpose.msra.mxu0 0.0
    %404 = vmatprep.subr.mxu0 0.0
    %405 = vmatpush1.xpose.msra.mxu0 0.0
    %406 = vmatprep.subr.mxu0 0.0
    %407 = vmatpush1.xpose.msra.mxu0 0.0
    %408 = vmatprep.subr.mxu0 0.0
    %409 = vmatpush1.xpose.msra.mxu0 0.0
    %410 = vmatprep.subr.mxu0 0.0
    %411 = vmatpush1.xpose.msra.mxu0 0.0
    %412 = vmatprep.subr.mxu0 0.0
    %413 = vmatpush1.xpose.msra.mxu0 0.0
    %414 = vmatprep.subr.mxu0 0.0
    %415 = vmatpush1.xpose.msra.mxu0 0.0
    %416 = vmatprep.subr.mxu0 0.0
    %417 = vmatpush1.xpose.msra.mxu0 0.0
    %418 = vmatprep.subr.mxu0 0.0
    %419 = vmatpush1.xpose.msra.mxu0 0.0
    %420 = vmatprep.mubr.f32.mxu0 0.0
    %421 = vmatmul.mubr.f32.gmra.mrb[0].mxu0 %v348
    %v422 = vpop.f32.mrb[0].mxu0
    %v423 = vadd.f32 0.0, %v422
    %v424 = vpop.f32.mrb[0].mxu0
    %425 = vmatprep.mubr.f32.mxu0 0.0
    %426 = vmatmul.mubr.f32.gmra.mrb[0].mxu0 %v350
    %v427 = vpop.f32.mrb[0].mxu0
    %v428 = vadd.f32 0.0, %v427
    %v429 = vpop.f32.mrb[0].mxu0
    %430 = vdwg.mxu0
    %v431 = vmul.f32 %v423, 0.35355338
    %v432 = vmul.f32 %v428, 0.35355338
    %v433 = vadd.f32 %v431, %v29
    %v434 = vadd.f32 %v432, %v30
    %v435 = vsel %vm230, %v433, -inf
    %436 = vmax.xlane.f32.xlu0 %v435
    %v437 = vpop.xlane.xlu0 %436
    %v438 = vsel %vm230, %v434, -inf
    %439 = vmax.xlane.f32.xlu0 %v438
    %v440 = vpop.xlane.xlu0 %439
    %v441 = vsub.f32 %v433, %v437
    %v442 = vsub.f32 %v434, %v440
    %v443 = vmul.f32 %v441, 1.442695
    %v444 = vpow.pop %v443
    %v445 = vmul.f32 %v442, 1.442695
    %v446 = vpow.pop %v445
    %v447 = vsel %vm230, %v444, 0.0
    %448 = vadd.xlane.f32.xlu0 %v447
    %v449 = vpop.xlane.xlu0 %448
    %v450 = vsel %vm230, %v446, 0.0
    %451 = vadd.xlane.f32.xlu0 %v450
    %v452 = vpop.xlane.xlu0 %451
    %v453 = vrcp.pop %v449
    %v454 = vrcp.pop %v452
    %v455 = vmul.f32 %v444, %v453
    %v456 = vmul.f32 %v446, %v454
    %457 = vrot.lane.b32.xlu0 %v128, 56
    %v458 = vpop.permute.xlu0 %457
    %459 = vrot.lane.b32.xlu0 %v133, 56
    %v460 = vpop.permute.xlu0 %459
    %v464 = vsel %vm230, %v455, 0
    %v467 = vsel %vm230, %v456, 0
    %469 = vmatprep.subr.mxu0 0.0
    %470 = vmatpush1.msra.mxu0 %v458
    %471 = vmatprep.subr.mxu0 0.0
    %472 = vmatpush1.msra.mxu0 %v460
    %473 = vmatprep.subr.mxu0 0.0
    %474 = vmatpush1.msra.mxu0 0.0
    %475 = vmatprep.subr.mxu0 0.0
    %476 = vmatpush1.msra.mxu0 0.0
    %477 = vmatprep.subr.mxu0 0.0
    %478 = vmatpush1.msra.mxu0 0.0
    %479 = vmatprep.subr.mxu0 0.0
    %480 = vmatpush1.msra.mxu0 0.0
    %481 = vmatprep.subr.mxu0 0.0
    %482 = vmatpush1.msra.mxu0 0.0
    %483 = vmatprep.subr.mxu0 0.0
    %484 = vmatpush1.msra.mxu0 0.0
    %485 = vmatprep.subr.mxu0 0.0
    %486 = vmatpush1.msra.mxu0 0.0
    %487 = vmatprep.subr.mxu0 0.0
    %488 = vmatpush1.msra.mxu0 0.0
    %489 = vmatprep.subr.mxu0 0.0
    %490 = vmatpush1.msra.mxu0 0.0
    %491 = vmatprep.subr.mxu0 0.0
    %492 = vmatpush1.msra.mxu0 0.0
    %493 = vmatprep.subr.mxu0 0.0
    %494 = vmatpush1.msra.mxu0 0.0
    %495 = vmatprep.subr.mxu0 0.0
    %496 = vmatpush1.msra.mxu0 0.0
    %497 = vmatprep.subr.mxu0 0.0
    %498 = vmatpush1.msra.mxu0 0.0
    %499 = vmatprep.subr.mxu0 0.0
    %500 = vmatpush1.msra.mxu0 0.0
    %501 = vmatprep.subr.mxu0 0.0
    %502 = vmatpush1.msra.mxu0 0.0
    %503 = vmatprep.subr.mxu0 0.0
    %504 = vmatpush1.msra.mxu0 0.0
    %505 = vmatprep.subr.mxu0 0.0
    %506 = vmatpush1.msra.mxu0 0.0
    %507 = vmatprep.subr.mxu0 0.0
    %508 = vmatpush1.msra.mxu0 0.0
    %509 = vmatprep.subr.mxu0 0.0
    %510 = vmatpush1.msra.mxu0 0.0
    %511 = vmatprep.subr.mxu0 0.0
    %512 = vmatpush1.msra.mxu0 0.0
    %513 = vmatprep.subr.mxu0 0.0
    %514 = vmatpush1.msra.mxu0 0.0
    %515 = vmatprep.subr.mxu0 0.0
    %516 = vmatpush1.msra.mxu0 0.0
    %517 = vmatprep.subr.mxu0 0.0
    %518 = vmatpush1.msra.mxu0 0.0
    %519 = vmatprep.subr.mxu0 0.0
    %520 = vmatpush1.msra.mxu0 0.0
    %521 = vmatprep.subr.mxu0 0.0
    %522 = vmatpush1.msra.mxu0 0.0
    %523 = vmatprep.subr.mxu0 0.0
    %524 = vmatpush1.msra.mxu0 0.0
    %525 = vmatprep.subr.mxu0 0.0
    %526 = vmatpush1.msra.mxu0 0.0
    %527 = vmatprep.subr.mxu0 0.0
    %528 = vmatpush1.msra.mxu0 0.0
    %529 = vmatprep.subr.mxu0 0.0
    %530 = vmatpush1.msra.mxu0 0.0
    %531 = vmatprep.subr.mxu0 0.0
    %532 = vmatpush1.msra.mxu0 0.0
    %533 = vmatprep.mubr.f32.mxu0 0.0
    %534 = vmatmul.mubr.f32.gmra.mrb[0].mxu0 %v464
    %v535 = vpop.f32.mrb[0].mxu0
    %v536 = vadd.f32 0.0, %v535
    %v537 = vpop.f32.mrb[0].mxu0
    %538 = vmatprep.mubr.f32.mxu0 0.0
    %539 = vmatmul.mubr.f32.gmra.mrb[0].mxu0 %v467
    %v540 = vpop.f32.mrb[0].mxu0
    %v541 = vadd.f32 0.0, %v540
    %v542 = vpop.f32.mrb[0].mxu0
    %543 = vdwg.mxu0
    %545 = vrot.lane.b32.xlu0 %v36, 32
    %v546 = vpop.permute.xlu0 %545
    %v549 = vsel %vm142, %v536, 0
    %v552 = vsel %vm142, %v541, 0
    %554 = vmatprep.subr.mxu0 0.0
    %555 = vmatpush1.msra.mxu0 %v546
    %556 = vmatprep.subr.mxu0 0.0
    %557 = vmatpush1.msra.mxu0 0.0
    %558 = vmatprep.subr.mxu0 0.0
    %559 = vmatpush1.msra.mxu0 0.0
    %560 = vmatprep.subr.mxu0 0.0
    %561 = vmatpush1.msra.mxu0 0.0
    %562 = vmatprep.subr.mxu0 0.0
    %563 = vmatpush1.msra.mxu0 0.0
    %564 = vmatprep.subr.mxu0 0.0
    %565 = vmatpush1.msra.mxu0 0.0
    %566 = vmatprep.subr.mxu0 0.0
    %567 = vmatpush1.msra.mxu0 0.0
    %568 = vmatprep.subr.mxu0 0.0
    %569 = vmatpush1.msra.mxu0 0.0
    %570 = vmatprep.subr.mxu0 0.0
    %571 = vmatpush1.msra.mxu0 0.0
    %572 = vmatprep.subr.mxu0 0.0
    %573 = vmatpush1.msra.mxu0 0.0
    %574 = vmatprep.subr.mxu0 0.0
    %575 = vmatpush1.msra.mxu0 0.0
    %576 = vmatprep.subr.mxu0 0.0
    %577 = vmatpush1.msra.mxu0 0.0
    %578 = vmatprep.subr.mxu0 0.0
    %579 = vmatpush1.msra.mxu0 0.0
    %580 = vmatprep.subr.mxu0 0.0
    %581 = vmatpush1.msra.mxu0 0.0
    %582 = vmatprep.subr.mxu0 0.0
    %583 = vmatpush1.msra.mxu0 0.0
    %584 = vmatprep.subr.mxu0 0.0
    %585 = vmatpush1.msra.mxu0 0.0
    %586 = vmatprep.subr.mxu0 0.0
    %587 = vmatpush1.msra.mxu0 0.0
    %588 = vmatprep.subr.mxu0 0.0
    %589 = vmatpush1.msra.mxu0 0.0
    %590 = vmatprep.subr.mxu0 0.0
    %591 = vmatpush1.msra.mxu0 0.0
    %592 = vmatprep.subr.mxu0 0.0
    %593 = vmatpush1.msra.mxu0 0.0
    %594 = vmatprep.subr.mxu0 0.0
    %595 = vmatpush1.msra.mxu0 0.0
    %596 = vmatprep.subr.mxu0 0.0
    %597 = vmatpush1.msra.mxu0 0.0
    %598 = vmatprep.subr.mxu0 0.0
    %599 = vmatpush1.msra.mxu0 0.0
    %600 = vmatprep.subr.mxu0 0.0
    %601 = vmatpush1.msra.mxu0 0.0
    %602 = vmatprep.subr.mxu0 0.0
    %603 = vmatpush1.msra.mxu0 0.0
    %604 = vmatprep.subr.mxu0 0.0
    %605 = vmatpush1.msra.mxu0 0.0
    %606 = vmatprep.subr.mxu0 0.0
    %607 = vmatpush1.msra.mxu0 0.0
    %608 = vmatprep.subr.mxu0 0.0
    %609 = vmatpush1.msra.mxu0 0.0
    %610 = vmatprep.subr.mxu0 0.0
    %611 = vmatpush1.msra.mxu0 0.0
    %612 = vmatprep.subr.mxu0 0.0
    %613 = vmatpush1.msra.mxu0 0.0
    %614 = vmatprep.subr.mxu0 0.0
    %615 = vmatpush1.msra.mxu0 0.0
    %616 = vmatprep.subr.mxu0 0.0
    %617 = vmatpush1.msra.mxu0 0.0
    %618 = vmatprep.mubr.f32.mxu0 0.0
    %619 = vmatmul.mubr.f32.gmra.mrb[0].mxu0 %v549
    %v620 = vpop.f32.mrb[0].mxu0
    %v621 = vadd.f32 0.0, %v620
    %v622 = vpop.f32.mrb[0].mxu0
    %623 = vmatprep.mubr.f32.mxu0 0.0
    %624 = vmatmul.mubr.f32.gmra.mrb[0].mxu0 %v552
    %v625 = vpop.f32.mrb[0].mxu0
    %v626 = vadd.f32 0.0, %v625
    %v627 = vpop.f32.mrb[0].mxu0
    %628 = vdwg.mxu0
    %630 = vrot.lane.b32.xlu0 %v34, 32
    %v631 = vpop.permute.xlu0 %630
    %v634 = vsel %vm142, %v332, 0
    %v637 = vsel %vm142, %v337, 0
    %639 = vmatprep.subr.mxu0 0.0
    %640 = vmatpush1.msra.mxu0 %v631
    %641 = vmatprep.subr.mxu0 0.0
    %642 = vmatpush1.msra.mxu0 0.0
    %643 = vmatprep.subr.mxu0 0.0
    %644 = vmatpush1.msra.mxu0 0.0
    %645 = vmatprep.subr.mxu0 0.0
    %646 = vmatpush1.msra.mxu0 0.0
    %647 = vmatprep.subr.mxu0 0.0
    %648 = vmatpush1.msra.mxu0 0.0
    %649 = vmatprep.subr.mxu0 0.0
    %650 = vmatpush1.msra.mxu0 0.0
    %651 = vmatprep.subr.mxu0 0.0
    %652 = vmatpush1.msra.mxu0 0.0
    %653 = vmatprep.subr.mxu0 0.0
    %654 = vmatpush1.msra.mxu0 0.0
    %655 = vmatprep.subr.mxu0 0.0
    %656 = vmatpush1.msra.mxu0 0.0
    %657 = vmatprep.subr.mxu0 0.0
    %658 = vmatpush1.msra.mxu0 0.0
    %659 = vmatprep.subr.mxu0 0.0
    %660 = vmatpush1.msra.mxu0 0.0
    %661 = vmatprep.subr.mxu0 0.0
    %662 = vmatpush1.msra.mxu0 0.0
    %663 = vmatprep.subr.mxu0 0.0
    %664 = vmatpush1.msra.mxu0 0.0
    %665 = vmatprep.subr.mxu0 0.0
    %666 = vmatpush1.msra.mxu0 0.0
    %667 = vmatprep.subr.mxu0 0.0
    %668 = vmatpush1.msra.mxu0 0.0
    %669 = vmatprep.subr.mxu0 0.0
    %670 = vmatpush1.msra.mxu0 0.0
    %671 = vmatprep.subr.mxu0 0.0
    %672 = vmatpush1.msra.mxu0 0.0
    %673 = vmatprep.subr.mxu0 0.0
    %674 = vmatpush1.msra.mxu0 0.0
    %675 = vmatprep.subr.mxu0 0.0
    %676 = vmatpush1.msra.mxu0 0.0
    %677 = vmatprep.subr.mxu0 0.0
    %678 = vmatpush1.msra.mxu0 0.0
    %679 = vmatprep.subr.mxu0 0.0
    %680 = vmatpush1.msra.mxu0 0.0
    %681 = vmatprep.subr.mxu0 0.0
    %682 = vmatpush1.msra.mxu0 0.0
    %683 = vmatprep.subr.mxu0 0.0
    %684 = vmatpush1.msra.mxu0 0.0
    %685 = vmatprep.subr.mxu0 0.0
    %686 = vmatpush1.msra.mxu0 0.0
    %687 = vmatprep.subr.mxu0 0.0
    %688 = vmatpush1.msra.mxu0 0.0
    %689 = vmatprep.subr.mxu0 0.0
    %690 = vmatpush1.msra.mxu0 0.0
    %691 = vmatprep.subr.mxu0 0.0
    %692 = vmatpush1.msra.mxu0 0.0
    %693 = vmatprep.subr.mxu0 0.0
    %694 = vmatpush1.msra.mxu0 0.0
    %695 = vmatprep.subr.mxu0 0.0
    %696 = vmatpush1.msra.mxu0 0.0
    %697 = vmatprep.subr.mxu0 0.0
    %698 = vmatpush1.msra.mxu0 0.0
    %699 = vmatprep.subr.mxu0 0.0
    %700 = vmatpush1.msra.mxu0 0.0
    %701 = vmatprep.subr.mxu0 0.0
    %702 = vmatpush1.msra.mxu0 0.0
    %703 = vmatprep.mubr.f32.mxu0 0.0
    %704 = vmatmul.mubr.f32.gmra.mrb[0].mxu0 %v634
    %v705 = vpop.f32.mrb[0].mxu0
    %v706 = vadd.f32 %v621, %v705
    %v707 = vpop.f32.mrb[0].mxu0
    %708 = vmatprep.mubr.f32.mxu0 0.0
    %709 = vmatmul.mubr.f32.gmra.mrb[0].mxu0 %v637
    %v710 = vpop.f32.mrb[0].mxu0
    %v711 = vadd.f32 %v626, %v710
    %v712 = vpop.f32.mrb[0].mxu0
    %713 = vdwg.mxu0
    %714 = vrot.lane.b32.xlu0 %v128, 112
    %v715 = vpop.permute.xlu0 %714
    %716 = vrot.lane.b32.xlu0 %v133, 112
    %v717 = vpop.permute.xlu0 %716
    %718 = vrot.lane.b32.xlu0 %v128, 80
    %v719 = vpop.permute.xlu0 %718
    %720 = vrot.lane.b32.xlu0 %v133, 80
    %v721 = vpop.permute.xlu0 %720
    %v722 = vsel %vm142, %v715, 0
    %v724 = vsel %vm142, %v717, 0
    %v726 = vsel %vm142, %v719, 0
    %v728 = vsel %vm142, %v721, 0
    %730 = vmatprep.subr.mxu0 0.0
    %731 = vmatpush1.xpose.msra.mxu0 %v726
    %732 = vmatprep.subr.mxu0 0.0
    %733 = vmatpush1.xpose.msra.mxu0 %v728
    %734 = vmatprep.subr.mxu0 0.0
    %735 = vmatpush1.xpose.msra.mxu0 0.0
    %736 = vmatprep.subr.mxu0 0.0
    %737 = vmatpush1.xpose.msra.mxu0 0.0
    %738 = vmatprep.subr.mxu0 0.0
    %739 = vmatpush1.xpose.msra.mxu0 0.0
    %740 = vmatprep.subr.mxu0 0.0
    %741 = vmatpush1.xpose.msra.mxu0 0.0
    %742 = vmatprep.subr.mxu0 0.0
    %743 = vmatpush1.xpose.msra.mxu0 0.0
    %744 = vmatprep.subr.mxu0 0.0
    %745 = vmatpush1.xpose.msra.mxu0 0.0
    %746 = vmatprep.subr.mxu0 0.0
    %747 = vmatpush1.xpose.msra.mxu0 0.0
    %748 = vmatprep.subr.mxu0 0.0
    %749 = vmatpush1.xpose.msra.mxu0 0.0
    %750 = vmatprep.subr.mxu0 0.0
    %751 = vmatpush1.xpose.msra.mxu0 0.0
    %752 = vmatprep.subr.mxu0 0.0
    %753 = vmatpush1.xpose.msra.mxu0 0.0
    %754 = vmatprep.subr.mxu0 0.0
    %755 = vmatpush1.xpose.msra.mxu0 0.0
    %756 = vmatprep.subr.mxu0 0.0
    %757 = vmatpush1.xpose.msra.mxu0 0.0
    %758 = vmatprep.subr.mxu0 0.0
    %759 = vmatpush1.xpose.msra.mxu0 0.0
    %760 = vmatprep.subr.mxu0 0.0
    %761 = vmatpush1.xpose.msra.mxu0 0.0
    %762 = vmatprep.subr.mxu0 0.0
    %763 = vmatpush1.xpose.msra.mxu0 0.0
    %764 = vmatprep.subr.mxu0 0.0
    %765 = vmatpush1.xpose.msra.mxu0 0.0
    %766 = vmatprep.subr.mxu0 0.0
    %767 = vmatpush1.xpose.msra.mxu0 0.0
    %768 = vmatprep.subr.mxu0 0.0
    %769 = vmatpush1.xpose.msra.mxu0 0.0
    %770 = vmatprep.subr.mxu0 0.0
    %771 = vmatpush1.xpose.msra.mxu0 0.0
    %772 = vmatprep.subr.mxu0 0.0
    %773 = vmatpush1.xpose.msra.mxu0 0.0
    %774 = vmatprep.subr.mxu0 0.0
    %775 = vmatpush1.xpose.msra.mxu0 0.0
    %776 = vmatprep.subr.mxu0 0.0
    %777 = vmatpush1.xpose.msra.mxu0 0.0
    %778 = vmatprep.subr.mxu0 0.0
    %779 = vmatpush1.xpose.msra.mxu0 0.0
    %780 = vmatprep.subr.mxu0 0.0
    %781 = vmatpush1.xpose.msra.mxu0 0.0
    %782 = vmatprep.subr.mxu0 0.0
    %783 = vmatpush1.xpose.msra.mxu0 0.0
    %784 = vmatprep.subr.mxu0 0.0
    %785 = vmatpush1.xpose.msra.mxu0 0.0
    %786 = vmatprep.subr.mxu0 0.0
    %787 = vmatpush1.xpose.msra.mxu0 0.0
    %788 = vmatprep.subr.mxu0 0.0
    %789 = vmatpush1.xpose.msra.mxu0 0.0
    %790 = vmatprep.subr.mxu0 0.0
    %791 = vmatpush1.xpose.msra.mxu0 0.0
    %792 = vmatprep.subr.mxu0 0.0
    %793 = vmatpush1.xpose.msra.mxu0 0.0
    %794 = vmatprep.mubr.f32.mxu0 0.0
    %795 = vmatmul.mubr.f32.gmra.mrb[0].mxu0 %v722
    %v796 = vpop.f32.mrb[0].mxu0
    %v797 = vadd.f32 0.0, %v796
    %v798 = vpop.f32.mrb[0].mxu0
    %799 = vmatprep.mubr.f32.mxu0 0.0
    %800 = vmatmul.mubr.f32.gmra.mrb[0].mxu0 %v724
    %v801 = vpop.f32.mrb[0].mxu0
    %v802 = vadd.f32 0.0, %v801
    %v803 = vpop.f32.mrb[0].mxu0
    %804 = vdwg.mxu0
    %v805 = vmul.f32 %v797, 0.35355338
    %v806 = vmul.f32 %v802, 0.35355338
    %v807 = vadd.f32 %v805, %v29
    %v808 = vadd.f32 %v806, %v30
    %v809 = vsel %vm230, %v807, -inf
    %810 = vmax.xlane.f32.xlu0 %v809
    %v811 = vpop.xlane.xlu0 %810
    %v812 = vsel %vm230, %v808, -inf
    %813 = vmax.xlane.f32.xlu0 %v812
    %v814 = vpop.xlane.xlu0 %813
    %v815 = vsub.f32 %v807, %v811
    %v816 = vsub.f32 %v808, %v814
    %v817 = vmul.f32 %v815, 1.442695
    %v818 = vpow.pop %v817
    %v819 = vmul.f32 %v816, 1.442695
    %v820 = vpow.pop %v819
    %v821 = vsel %vm230, %v818, 0.0
    %822 = vadd.xlane.f32.xlu0 %v821
    %v823 = vpop.xlane.xlu0 %822
    %v824 = vsel %vm230, %v820, 0.0
    %825 = vadd.xlane.f32.xlu0 %v824
    %v826 = vpop.xlane.xlu0 %825
    %v827 = vrcp.pop %v823
    %v828 = vrcp.pop %v826
    %v829 = vmul.f32 %v818, %v827
    %v830 = vmul.f32 %v820, %v828
    %831 = vrot.lane.b32.xlu0 %v128, 48
    %v832 = vpop.permute.xlu0 %831
    %833 = vrot.lane.b32.xlu0 %v133, 48
    %v834 = vpop.permute.xlu0 %833
    %v838 = vsel %vm230, %v829, 0
    %v841 = vsel %vm230, %v830, 0
    %843 = vmatprep.subr.mxu0 0.0
    %844 = vmatpush1.msra.mxu0 %v832
    %845 = vmatprep.subr.mxu0 0.0
    %846 = vmatpush1.msra.mxu0 %v834
    %847 = vmatprep.subr.mxu0 0.0
    %848 = vmatpush1.msra.mxu0 0.0
    %849 = vmatprep.subr.mxu0 0.0
    %850 = vmatpush1.msra.mxu0 0.0
    %851 = vmatprep.subr.mxu0 0.0
    %852 = vmatpush1.msra.mxu0 0.0
    %853 = vmatprep.subr.mxu0 0.0
    %854 = vmatpush1.msra.mxu0 0.0
    %855 = vmatprep.subr.mxu0 0.0
    %856 = vmatpush1.msra.mxu0 0.0
    %857 = vmatprep.subr.mxu0 0.0
    %858 = vmatpush1.msra.mxu0 0.0
    %859 = vmatprep.subr.mxu0 0.0
    %860 = vmatpush1.msra.mxu0 0.0
    %861 = vmatprep.subr.mxu0 0.0
    %862 = vmatpush1.msra.mxu0 0.0
    %863 = vmatprep.subr.mxu0 0.0
    %864 = vmatpush1.msra.mxu0 0.0
    %865 = vmatprep.subr.mxu0 0.0
    %866 = vmatpush1.msra.mxu0 0.0
    %867 = vmatprep.subr.mxu0 0.0
    %868 = vmatpush1.msra.mxu0 0.0
    %869 = vmatprep.subr.mxu0 0.0
    %870 = vmatpush1.msra.mxu0 0.0
    %871 = vmatprep.subr.mxu0 0.0
    %872 = vmatpush1.msra.mxu0 0.0
    %873 = vmatprep.subr.mxu0 0.0
    %874 = vmatpush1.msra.mxu0 0.0
    %875 = vmatprep.subr.mxu0 0.0
    %876 = vmatpush1.msra.mxu0 0.0
    %877 = vmatprep.subr.mxu0 0.0
    %878 = vmatpush1.msra.mxu0 0.0
    %879 = vmatprep.subr.mxu0 0.0
    %880 = vmatpush1.msra.mxu0 0.0
    %881 = vmatprep.subr.mxu0 0.0
    %882 = vmatpush1.msra.mxu0 0.0
    %883 = vmatprep.subr.mxu0 0.0
    %884 = vmatpush1.msra.mxu0 0.0
    %885 = vmatprep.subr.mxu0 0.0
    %886 = vmatpush1.msra.mxu0 0.0
    %887 = vmatprep.subr.mxu0 0.0
    %888 = vmatpush1.msra.mxu0 0.0
    %889 = vmatprep.subr.mxu0 0.0
    %890 = vmatpush1.msra.mxu0 0.0
    %891 = vmatprep.subr.mxu0 0.0
    %892 = vmatpush1.msra.mxu0 0.0
    %893 = vmatprep.subr.mxu0 0.0
    %894 = vmatpush1.msra.mxu0 0.0
    %895 = vmatprep.subr.mxu0 0.0
    %896 = vmatpush1.msra.mxu0 0.0
    %897 = vmatprep.subr.mxu0 0.0
    %898 = vmatpush1.msra.mxu0 0.0
    %899 = vmatprep.subr.mxu0 0.0
    %900 = vmatpush1.msra.mxu0 0.0
    %901 = vmatprep.subr.mxu0 0.0
    %902 = vmatpush1.msra.mxu0 0.0
    %903 = vmatprep.subr.mxu0 0.0
    %904 = vmatpush1.msra.mxu0 0.0
    %905 = vmatprep.subr.mxu0 0.0
    %906 = vmatpush1.msra.mxu0 0.0
    %907 = vmatprep.mubr.f32.mxu0 0.0
    %908 = vmatmul.mubr.f32.gmra.mrb[0].mxu0 %v838
    %v909 = vpop.f32.mrb[0].mxu0
    %v910 = vadd.f32 0.0, %v909
    %v911 = vpop.f32.mrb[0].mxu0
    %912 = vmatprep.mubr.f32.mxu0 0.0
    %913 = vmatmul.mubr.f32.gmra.mrb[0].mxu0 %v841
    %v914 = vpop.f32.mrb[0].mxu0
    %v915 = vadd.f32 0.0, %v914
    %v916 = vpop.f32.mrb[0].mxu0
    %917 = vdwg.mxu0
    %919 = vrot.lane.b32.xlu0 %v38, 32
    %v920 = vpop.permute.xlu0 %919
    %v923 = vsel %vm142, %v910, 0
    %v926 = vsel %vm142, %v915, 0
    %928 = vmatprep.subr.mxu0 0.0
    %929 = vmatpush1.msra.mxu0 %v920
    %930 = vmatprep.subr.mxu0 0.0
    %931 = vmatpush1.msra.mxu0 0.0
    %932 = vmatprep.subr.mxu0 0.0
    %933 = vmatpush1.msra.mxu0 0.0
    %934 = vmatprep.subr.mxu0 0.0
    %935 = vmatpush1.msra.mxu0 0.0
    %936 = vmatprep.subr.mxu0 0.0
    %937 = vmatpush1.msra.mxu0 0.0
    %938 = vmatprep.subr.mxu0 0.0
    %939 = vmatpush1.msra.mxu0 0.0
    %940 = vmatprep.subr.mxu0 0.0
    %941 = vmatpush1.msra.mxu0 0.0
    %942 = vmatprep.subr.mxu0 0.0
    %943 = vmatpush1.msra.mxu0 0.0
    %944 = vmatprep.subr.mxu0 0.0
    %945 = vmatpush1.msra.mxu0 0.0
    %946 = vmatprep.subr.mxu0 0.0
    %947 = vmatpush1.msra.mxu0 0.0
    %948 = vmatprep.subr.mxu0 0.0
    %949 = vmatpush1.msra.mxu0 0.0
    %950 = vmatprep.subr.mxu0 0.0
    %951 = vmatpush1.msra.mxu0 0.0
    %952 = vmatprep.subr.mxu0 0.0
    %953 = vmatpush1.msra.mxu0 0.0
    %954 = vmatprep.subr.mxu0 0.0
    %955 = vmatpush1.msra.mxu0 0.0
    %956 = vmatprep.subr.mxu0 0.0
    %957 = vmatpush1.msra.mxu0 0.0
    %958 = vmatprep.subr.mxu0 0.0
    %959 = vmatpush1.msra.mxu0 0.0
    %960 = vmatprep.subr.mxu0 0.0
    %961 = vmatpush1.msra.mxu0 0.0
    %962 = vmatprep.subr.mxu0 0.0
    %963 = vmatpush1.msra.mxu0 0.0
    %964 = vmatprep.subr.mxu0 0.0
    %965 = vmatpush1.msra.mxu0 0.0
    %966 = vmatprep.subr.mxu0 0.0
    %967 = vmatpush1.msra.mxu0 0.0
    %968 = vmatprep.subr.mxu0 0.0
    %969 = vmatpush1.msra.mxu0 0.0
    %970 = vmatprep.subr.mxu0 0.0
    %971 = vmatpush1.msra.mxu0 0.0
    %972 = vmatprep.subr.mxu0 0.0
    %973 = vmatpush1.msra.mxu0 0.0
    %974 = vmatprep.subr.mxu0 0.0
    %975 = vmatpush1.msra.mxu0 0.0
    %976 = vmatprep.subr.mxu0 0.0
    %977 = vmatpush1.msra.mxu0 0.0
    %978 = vmatprep.subr.mxu0 0.0
    %979 = vmatpush1.msra.mxu0 0.0
    %980 = vmatprep.subr.mxu0 0.0
    %981 = vmatpush1.msra.mxu0 0.0
    %982 = vmatprep.subr.mxu0 0.0
    %983 = vmatpush1.msra.mxu0 0.0
    %984 = vmatprep.subr.mxu0 0.0
    %985 = vmatpush1.msra.mxu0 0.0
    %986 = vmatprep.subr.mxu0 0.0
    %987 = vmatpush1.msra.mxu0 0.0
    %988 = vmatprep.subr.mxu0 0.0
    %989 = vmatpush1.msra.mxu0 0.0
    %990 = vmatprep.subr.mxu0 0.0
    %991 = vmatpush1.msra.mxu0 0.0
    %992 = vmatprep.mubr.f32.mxu0 0.0
    %993 = vmatmul.mubr.f32.gmra.mrb[0].mxu0 %v923
    %v994 = vpop.f32.mrb[0].mxu0
    %v995 = vadd.f32 0.0, %v994
    %v996 = vpop.f32.mrb[0].mxu0
    %997 = vmatprep.mubr.f32.mxu0 0.0
    %998 = vmatmul.mubr.f32.gmra.mrb[0].mxu0 %v926
    %v999 = vpop.f32.mrb[0].mxu0
    %v1000 = vadd.f32 0.0, %v999
    %v1001 = vpop.f32.mrb[0].mxu0
    %1002 = vdwg.mxu0
    %v1003 = vadd.f32 %v706, %v995
    %v1004 = vadd.f32 %v711, %v1000
    %1005 = vrot.lane.b32.xlu0 %v128, 104
    %v1006 = vpop.permute.xlu0 %1005
    %1007 = vrot.lane.b32.xlu0 %v133, 104
    %v1008 = vpop.permute.xlu0 %1007
    %1009 = vrot.lane.b32.xlu0 %v128, 72
    %v1010 = vpop.permute.xlu0 %1009
    %1011 = vrot.lane.b32.xlu0 %v133, 72
    %v1012 = vpop.permute.xlu0 %1011
    %v1013 = vsel %vm142, %v1006, 0
    %v1015 = vsel %vm142, %v1008, 0
    %v1017 = vsel %vm142, %v1010, 0
    %v1019 = vsel %vm142, %v1012, 0
    %1021 = vmatprep.subr.mxu0 0.0
    %1022 = vmatpush1.xpose.msra.mxu0 %v1017
    %1023 = vmatprep.subr.mxu0 0.0
    %1024 = vmatpush1.xpose.msra.mxu0 %v1019
    %1025 = vmatprep.subr.mxu0 0.0
    %1026 = vmatpush1.xpose.msra.mxu0 0.0
    %1027 = vmatprep.subr.mxu0 0.0
    %1028 = vmatpush1.xpose.msra.mxu0 0.0
    %1029 = vmatprep.subr.mxu0 0.0
    %1030 = vmatpush1.xpose.msra.mxu0 0.0
    %1031 = vmatprep.subr.mxu0 0.0
    %1032 = vmatpush1.xpose.msra.mxu0 0.0
    %1033 = vmatprep.subr.mxu0 0.0
    %1034 = vmatpush1.xpose.msra.mxu0 0.0
    %1035 = vmatprep.subr.mxu0 0.0
    %1036 = vmatpush1.xpose.msra.mxu0 0.0
    %1037 = vmatprep.subr.mxu0 0.0
    %1038 = vmatpush1.xpose.msra.mxu0 0.0
    %1039 = vmatprep.subr.mxu0 0.0
    %1040 = vmatpush1.xpose.msra.mxu0 0.0
    %1041 = vmatprep.subr.mxu0 0.0
    %1042 = vmatpush1.xpose.msra.mxu0 0.0
    %1043 = vmatprep.subr.mxu0 0.0
    %1044 = vmatpush1.xpose.msra.mxu0 0.0
    %1045 = vmatprep.subr.mxu0 0.0
    %1046 = vmatpush1.xpose.msra.mxu0 0.0
    %1047 = vmatprep.subr.mxu0 0.0
    %1048 = vmatpush1.xpose.msra.mxu0 0.0
    %1049 = vmatprep.subr.mxu0 0.0
    %1050 = vmatpush1.xpose.msra.mxu0 0.0
    %1051 = vmatprep.subr.mxu0 0.0
    %1052 = vmatpush1.xpose.msra.mxu0 0.0
    %1053 = vmatprep.subr.mxu0 0.0
    %1054 = vmatpush1.xpose.msra.mxu0 0.0
    %1055 = vmatprep.subr.mxu0 0.0
    %1056 = vmatpush1.xpose.msra.mxu0 0.0
    %1057 = vmatprep.subr.mxu0 0.0
    %1058 = vmatpush1.xpose.msra.mxu0 0.0
    %1059 = vmatprep.subr.mxu0 0.0
    %1060 = vmatpush1.xpose.msra.mxu0 0.0
    %1061 = vmatprep.subr.mxu0 0.0
    %1062 = vmatpush1.xpose.msra.mxu0 0.0
    %1063 = vmatprep.subr.mxu0 0.0
    %1064 = vmatpush1.xpose.msra.mxu0 0.0
    %1065 = vmatprep.subr.mxu0 0.0
    %1066 = vmatpush1.xpose.msra.mxu0 0.0
    %1067 = vmatprep.subr.mxu0 0.0
    %1068 = vmatpush1.xpose.msra.mxu0 0.0
    %1069 = vmatprep.subr.mxu0 0.0
    %1070 = vmatpush1.xpose.msra.mxu0 0.0
    %1071 = vmatprep.subr.mxu0 0.0
    %1072 = vmatpush1.xpose.msra.mxu0 0.0
    %1073 = vmatprep.subr.mxu0 0.0
    %1074 = vmatpush1.xpose.msra.mxu0 0.0
    %1075 = vmatprep.subr.mxu0 0.0
    %1076 = vmatpush1.xpose.msra.mxu0 0.0
    %1077 = vmatprep.subr.mxu0 0.0
    %1078 = vmatpush1.xpose.msra.mxu0 0.0
    %1079 = vmatprep.subr.mxu0 0.0
    %1080 = vmatpush1.xpose.msra.mxu0 0.0
    %1081 = vmatprep.subr.mxu0 0.0
    %1082 = vmatpush1.xpose.msra.mxu0 0.0
    %1083 = vmatprep.subr.mxu0 0.0
    %1084 = vmatpush1.xpose.msra.mxu0 0.0
    %1085 = vmatprep.mubr.f32.mxu0 0.0
    %1086 = vmatmul.mubr.f32.gmra.mrb[0].mxu0 %v1013
    %v1087 = vpop.f32.mrb[0].mxu0
    %v1088 = vadd.f32 0.0, %v1087
    %v1089 = vpop.f32.mrb[0].mxu0
    %1090 = vmatprep.mubr.f32.mxu0 0.0
    %1091 = vmatmul.mubr.f32.gmra.mrb[0].mxu0 %v1015
    %v1092 = vpop.f32.mrb[0].mxu0
    %v1093 = vadd.f32 0.0, %v1092
    %v1094 = vpop.f32.mrb[0].mxu0
    %1095 = vdwg.mxu0
    %v1096 = vmul.f32 %v1088, 0.35355338
    %v1097 = vmul.f32 %v1093, 0.35355338
    %v1098 = vadd.f32 %v1096, %v29
    %v1099 = vadd.f32 %v1097, %v30
    %v1100 = vsel %vm230, %v1098, -inf
    %1101 = vmax.xlane.f32.xlu0 %v1100
    %v1102 = vpop.xlane.xlu0 %1101
    %v1103 = vsel %vm230, %v1099, -inf
    %1104 = vmax.xlane.f32.xlu0 %v1103
    %v1105 = vpop.xlane.xlu0 %1104
    %v1106 = vsub.f32 %v1098, %v1102
    %v1107 = vsub.f32 %v1099, %v1105
    %v1108 = vmul.f32 %v1106, 1.442695
    %v1109 = vpow.pop %v1108
    %v1110 = vmul.f32 %v1107, 1.442695
    %v1111 = vpow.pop %v1110
    %v1112 = vsel %vm230, %v1109, 0.0
    %1113 = vadd.xlane.f32.xlu0 %v1112
    %v1114 = vpop.xlane.xlu0 %1113
    %v1115 = vsel %vm230, %v1111, 0.0
    %1116 = vadd.xlane.f32.xlu0 %v1115
    %v1117 = vpop.xlane.xlu0 %1116
    %v1118 = vrcp.pop %v1114
    %v1119 = vrcp.pop %v1117
    %v1120 = vmul.f32 %v1109, %v1118
    %v1121 = vmul.f32 %v1111, %v1119
    %1122 = vrot.lane.b32.xlu0 %v128, 40
    %v1123 = vpop.permute.xlu0 %1122
    %1124 = vrot.lane.b32.xlu0 %v133, 40
    %v1125 = vpop.permute.xlu0 %1124
    %v1129 = vsel %vm230, %v1120, 0
    %v1132 = vsel %vm230, %v1121, 0
    %1134 = vmatprep.subr.mxu0 0.0
    %1135 = vmatpush1.msra.mxu0 %v1123
    %1136 = vmatprep.subr.mxu0 0.0
    %1137 = vmatpush1.msra.mxu0 %v1125
    %1138 = vmatprep.subr.mxu0 0.0
    %1139 = vmatpush1.msra.mxu0 0.0
    %1140 = vmatprep.subr.mxu0 0.0
    %1141 = vmatpush1.msra.mxu0 0.0
    %1142 = vmatprep.subr.mxu0 0.0
    %1143 = vmatpush1.msra.mxu0 0.0
    %1144 = vmatprep.subr.mxu0 0.0
    %1145 = vmatpush1.msra.mxu0 0.0
    %1146 = vmatprep.subr.mxu0 0.0
    %1147 = vmatpush1.msra.mxu0 0.0
    %1148 = vmatprep.subr.mxu0 0.0
    %1149 = vmatpush1.msra.mxu0 0.0
    %1150 = vmatprep.subr.mxu0 0.0
    %1151 = vmatpush1.msra.mxu0 0.0
    %1152 = vmatprep.subr.mxu0 0.0
    %1153 = vmatpush1.msra.mxu0 0.0
    %1154 = vmatprep.subr.mxu0 0.0
    %1155 = vmatpush1.msra.mxu0 0.0
    %1156 = vmatprep.subr.mxu0 0.0
    %1157 = vmatpush1.msra.mxu0 0.0
    %1158 = vmatprep.subr.mxu0 0.0
    %1159 = vmatpush1.msra.mxu0 0.0
    %1160 = vmatprep.subr.mxu0 0.0
    %1161 = vmatpush1.msra.mxu0 0.0
    %1162 = vmatprep.subr.mxu0 0.0
    %1163 = vmatpush1.msra.mxu0 0.0
    %1164 = vmatprep.subr.mxu0 0.0
    %1165 = vmatpush1.msra.mxu0 0.0
    %1166 = vmatprep.subr.mxu0 0.0
    %1167 = vmatpush1.msra.mxu0 0.0
    %1168 = vmatprep.subr.mxu0 0.0
    %1169 = vmatpush1.msra.mxu0 0.0
    %1170 = vmatprep.subr.mxu0 0.0
    %1171 = vmatpush1.msra.mxu0 0.0
    %1172 = vmatprep.subr.mxu0 0.0
    %1173 = vmatpush1.msra.mxu0 0.0
    %1174 = vmatprep.subr.mxu0 0.0
    %1175 = vmatpush1.msra.mxu0 0.0
    %1176 = vmatprep.subr.mxu0 0.0
    %1177 = vmatpush1.msra.mxu0 0.0
    %1178 = vmatprep.subr.mxu0 0.0
    %1179 = vmatpush1.msra.mxu0 0.0
    %1180 = vmatprep.subr.mxu0 0.0
    %1181 = vmatpush1.msra.mxu0 0.0
    %1182 = vmatprep.subr.mxu0 0.0
    %1183 = vmatpush1.msra.mxu0 0.0
    %1184 = vmatprep.subr.mxu0 0.0
    %1185 = vmatpush1.msra.mxu0 0.0
    %1186 = vmatprep.subr.mxu0 0.0
    %1187 = vmatpush1.msra.mxu0 0.0
    %1188 = vmatprep.subr.mxu0 0.0
    %1189 = vmatpush1.msra.mxu0 0.0
    %1190 = vmatprep.subr.mxu0 0.0
    %1191 = vmatpush1.msra.mxu0 0.0
    %1192 = vmatprep.subr.mxu0 0.0
    %1193 = vmatpush1.msra.mxu0 0.0
    %1194 = vmatprep.subr.mxu0 0.0
    %1195 = vmatpush1.msra.mxu0 0.0
    %1196 = vmatprep.subr.mxu0 0.0
    %1197 = vmatpush1.msra.mxu0 0.0
    %1198 = vmatprep.mubr.f32.mxu0 0.0
    %1199 = vmatmul.mubr.f32.gmra.mrb[0].mxu0 %v1129
    %v1200 = vpop.f32.mrb[0].mxu0
    %v1201 = vadd.f32 0.0, %v1200
    %v1202 = vpop.f32.mrb[0].mxu0
    %1203 = vmatprep.mubr.f32.mxu0 0.0
    %1204 = vmatmul.mubr.f32.gmra.mrb[0].mxu0 %v1132
    %v1205 = vpop.f32.mrb[0].mxu0
    %v1206 = vadd.f32 0.0, %v1205
    %v1207 = vpop.f32.mrb[0].mxu0
    %1208 = vdwg.mxu0
    %1210 = vrot.lane.b32.xlu0 %v40, 32
    %v1211 = vpop.permute.xlu0 %1210
    %v1214 = vsel %vm142, %v1201, 0
    %v1217 = vsel %vm142, %v1206, 0
    %1219 = vmatprep.subr.mxu0 0.0
    %1220 = vmatpush1.msra.mxu0 %v1211
    %1221 = vmatprep.subr.mxu0 0.0
    %1222 = vmatpush1.msra.mxu0 0.0
    %1223 = vmatprep.subr.mxu0 0.0
    %1224 = vmatpush1.msra.mxu0 0.0
    %1225 = vmatprep.subr.mxu0 0.0
    %1226 = vmatpush1.msra.mxu0 0.0
    %1227 = vmatprep.subr.mxu0 0.0
    %1228 = vmatpush1.msra.mxu0 0.0
    %1229 = vmatprep.subr.mxu0 0.0
    %1230 = vmatpush1.msra.mxu0 0.0
    %1231 = vmatprep.subr.mxu0 0.0
    %1232 = vmatpush1.msra.mxu0 0.0
    %1233 = vmatprep.subr.mxu0 0.0
    %1234 = vmatpush1.msra.mxu0 0.0
    %1235 = vmatprep.subr.mxu0 0.0
    %1236 = vmatpush1.msra.mxu0 0.0
    %1237 = vmatprep.subr.mxu0 0.0
    %1238 = vmatpush1.msra.mxu0 0.0
    %1239 = vmatprep.subr.mxu0 0.0
    %1240 = vmatpush1.msra.mxu0 0.0
    %1241 = vmatprep.subr.mxu0 0.0
    %1242 = vmatpush1.msra.mxu0 0.0
    %1243 = vmatprep.subr.mxu0 0.0
    %1244 = vmatpush1.msra.mxu0 0.0
    %1245 = vmatprep.subr.mxu0 0.0
    %1246 = vmatpush1.msra.mxu0 0.0
    %1247 = vmatprep.subr.mxu0 0.0
    %1248 = vmatpush1.msra.mxu0 0.0
    %1249 = vmatprep.subr.mxu0 0.0
    %1250 = vmatpush1.msra.mxu0 0.0
    %1251 = vmatprep.subr.mxu0 0.0
    %1252 = vmatpush1.msra.mxu0 0.0
    %1253 = vmatprep.subr.mxu0 0.0
    %1254 = vmatpush1.msra.mxu0 0.0
    %1255 = vmatprep.subr.mxu0 0.0
    %1256 = vmatpush1.msra.mxu0 0.0
    %1257 = vmatprep.subr.mxu0 0.0
    %1258 = vmatpush1.msra.mxu0 0.0
    %1259 = vmatprep.subr.mxu0 0.0
    %1260 = vmatpush1.msra.mxu0 0.0
    %1261 = vmatprep.subr.mxu0 0.0
    %1262 = vmatpush1.msra.mxu0 0.0
    %1263 = vmatprep.subr.mxu0 0.0
    %1264 = vmatpush1.msra.mxu0 0.0
    %1265 = vmatprep.subr.mxu0 0.0
    %1266 = vmatpush1.msra.mxu0 0.0
    %1267 = vmatprep.subr.mxu0 0.0
    %1268 = vmatpush1.msra.mxu0 0.0
    %1269 = vmatprep.subr.mxu0 0.0
    %1270 = vmatpush1.msra.mxu0 0.0
    %1271 = vmatprep.subr.mxu0 0.0
    %1272 = vmatpush1.msra.mxu0 0.0
    %1273 = vmatprep.subr.mxu0 0.0
    %1274 = vmatpush1.msra.mxu0 0.0
    %1275 = vmatprep.subr.mxu0 0.0
    %1276 = vmatpush1.msra.mxu0 0.0
    %1277 = vmatprep.subr.mxu0 0.0
    %1278 = vmatpush1.msra.mxu0 0.0
    %1279 = vmatprep.subr.mxu0 0.0
    %1280 = vmatpush1.msra.mxu0 0.0
    %1281 = vmatprep.subr.mxu0 0.0
    %1282 = vmatpush1.msra.mxu0 0.0
    %1283 = vmatprep.mubr.f32.mxu0 0.0
    %1284 = vmatmul.mubr.f32.gmra.mrb[0].mxu0 %v1214
    %v1285 = vpop.f32.mrb[0].mxu0
    %v1286 = vadd.f32 0.0, %v1285
    %v1287 = vpop.f32.mrb[0].mxu0
    %1288 = vmatprep.mubr.f32.mxu0 0.0
    %1289 = vmatmul.mubr.f32.gmra.mrb[0].mxu0 %v1217
    %v1290 = vpop.f32.mrb[0].mxu0
    %v1291 = vadd.f32 0.0, %v1290
    %v1292 = vpop.f32.mrb[0].mxu0
    %1293 = vdwg.mxu0
    %v1294 = vadd.f32 %v1003, %v1286
    %v1295 = vadd.f32 %v1004, %v1291
    %v1296 = vlaneseq
    %v1297 = vshrl.u32 %v1296, 7
    %v1298 = vsub.s32 2, %v1297
    %v1299 = vrot.slane %v31, %v1298
    %v1300 = vadd.f32 %v1294, %v1299
    %v1301 = vadd.f32 %v1295, %v1299
    %v1302 = vadd.f32 %v1300, %v27
    %v1303 = vadd.f32 %v1301, %v28
    %v1304 = vsel %vm54, %v1302, 0.0
    %1305 = vadd.xlane.f32.xlu0 %v1304
    %v1306 = vpop.xlane.xlu0 %1305
    %v1307 = vsel %vm54, %v1303, 0.0
    %1308 = vadd.xlane.f32.xlu0 %v1307
    %v1309 = vpop.xlane.xlu0 %1308
    %v1310 = vrcp.pop 32.0
    %v1311 = vmul.f32 %v1306, %v1310
    %v1312 = vmul.f32 %v1309, %v1310
    %v1313 = vsub.f32 %v1302, %v1311
    %v1314 = vsub.f32 %v1303, %v1312
    %v1315 = vmul.f32 %v1313, %v1313
    %v1316 = vmul.f32 %v1314, %v1314
    %v1317 = vsel %vm54, %v1315, 0.0
    %1318 = vadd.xlane.f32.xlu0 %v1317
    %v1319 = vpop.xlane.xlu0 %1318
    %v1320 = vsel %vm54, %v1316, 0.0
    %1321 = vadd.xlane.f32.xlu0 %v1320
    %v1322 = vpop.xlane.xlu0 %1321
    %v1323 = vmul.f32 %v1319, %v1310
    %v1324 = vmul.f32 %v1322, %v1310
    %v1325 = vadd.f32 %v1323, 1e-12
    %v1326 = vadd.f32 %v1324, 1e-12
    %v1327 = vrsqrt.pop %v1325
    %v1328 = vrsqrt.pop %v1326
    %v1329 = vmul.f32 %v1313, %v1327
    %v1330 = vmul.f32 %v1314, %v1328
    %v1331 = vlaneseq
    %v1332 = vshrl.u32 %v1331, 7
    %v1333 = vsub.s32 3, %v1332
    %v1334 = vrot.slane %v31, %v1333
    %v1335 = vmul.f32 %v1329, %v1334
    %v1336 = vmul.f32 %v1330, %v1334
    %v1337 = vlaneseq
    %v1338 = vshrl.u32 %v1337, 7
    %v1339 = vsub.s32 4, %v1338
    %v1340 = vrot.slane %v31, %v1339
    %v1341 = vadd.f32 %v1335, %v1340
    %v1342 = vadd.f32 %v1336, %v1340
    %v1343 = vlaneseq
    %v1344 = vshrl.u32 %v1343, 7
    %v1345 = vsub.s32 1, %v1344
    %v1346 = vrot.slane %v31, %v1345
    %v1348 = vsel %vm54, %v1341, 0
    %v1351 = vsel %vm54, %v1342, 0
    %1353 = vmatprep.subr.mxu0 0.0
    %1354 = vmatpush1.msra.mxu0 %v35
    %1355 = vmatprep.subr.mxu0 0.0
    %1356 = vmatpush1.msra.mxu0 %v37
    %1357 = vmatprep.subr.mxu0 0.0
    %1358 = vmatpush1.msra.mxu0 %v39
    %1359 = vmatprep.subr.mxu0 0.0
    %1360 = vmatpush1.msra.mxu0 %v41
    %1361 = vmatprep.subr.mxu0 0.0
    %1362 = vmatpush1.msra.mxu0 0.0
    %1363 = vmatprep.subr.mxu0 0.0
    %1364 = vmatpush1.msra.mxu0 0.0
    %1365 = vmatprep.subr.mxu0 0.0
    %1366 = vmatpush1.msra.mxu0 0.0
    %1367 = vmatprep.subr.mxu0 0.0
    %1368 = vmatpush1.msra.mxu0 0.0
    %1369 = vmatprep.subr.mxu0 0.0
    %1370 = vmatpush1.msra.mxu0 0.0
    %1371 = vmatprep.subr.mxu0 0.0
    %1372 = vmatpush1.msra.mxu0 0.0
    %1373 = vmatprep.subr.mxu0 0.0
    %1374 = vmatpush1.msra.mxu0 0.0
    %1375 = vmatprep.subr.mxu0 0.0
    %1376 = vmatpush1.msra.mxu0 0.0
    %1377 = vmatprep.subr.mxu0 0.0
    %1378 = vmatpush1.msra.mxu0 0.0
    %1379 = vmatprep.subr.mxu0 0.0
    %1380 = vmatpush1.msra.mxu0 0.0
    %1381 = vmatprep.subr.mxu0 0.0
    %1382 = vmatpush1.msra.mxu0 0.0
    %1383 = vmatprep.subr.mxu0 0.0
    %1384 = vmatpush1.msra.mxu0 0.0
    %1385 = vmatprep.subr.mxu0 0.0
    %1386 = vmatpush1.msra.mxu0 0.0
    %1387 = vmatprep.subr.mxu0 0.0
    %1388 = vmatpush1.msra.mxu0 0.0
    %1389 = vmatprep.subr.mxu0 0.0
    %1390 = vmatpush1.msra.mxu0 0.0
    %1391 = vmatprep.subr.mxu0 0.0
    %1392 = vmatpush1.msra.mxu0 0.0
    %1393 = vmatprep.subr.mxu0 0.0
    %1394 = vmatpush1.msra.mxu0 0.0
    %1395 = vmatprep.subr.mxu0 0.0
    %1396 = vmatpush1.msra.mxu0 0.0
    %1397 = vmatprep.subr.mxu0 0.0
    %1398 = vmatpush1.msra.mxu0 0.0
    %1399 = vmatprep.subr.mxu0 0.0
    %1400 = vmatpush1.msra.mxu0 0.0
    %1401 = vmatprep.subr.mxu0 0.0
    %1402 = vmatpush1.msra.mxu0 0.0
    %1403 = vmatprep.subr.mxu0 0.0
    %1404 = vmatpush1.msra.mxu0 0.0
    %1405 = vmatprep.subr.mxu0 0.0
    %1406 = vmatpush1.msra.mxu0 0.0
    %1407 = vmatprep.subr.mxu0 0.0
    %1408 = vmatpush1.msra.mxu0 0.0
    %1409 = vmatprep.subr.mxu0 0.0
    %1410 = vmatpush1.msra.mxu0 0.0
    %1411 = vmatprep.subr.mxu0 0.0
    %1412 = vmatpush1.msra.mxu0 0.0
    %1413 = vmatprep.subr.mxu0 0.0
    %1414 = vmatpush1.msra.mxu0 0.0
    %1415 = vmatprep.subr.mxu0 0.0
    %1416 = vmatpush1.msra.mxu0 0.0
    %1417 = vmatprep.mubr.f32.mxu0 0.0
    %1418 = vmatmul.mubr.f32.gmra.mrb[0].mxu0 %v1348
    %v1419 = vpop.f32.mrb[0].mxu0
    %v1420 = vadd.f32 %v1346, %v1419
    %v1421 = vpop.f32.mrb[0].mxu0
    %1422 = vmatprep.mubr.f32.mxu0 0.0
    %1423 = vmatmul.mubr.f32.gmra.mrb[0].mxu0 %v1351
    %v1424 = vpop.f32.mrb[0].mxu0
    %v1425 = vadd.f32 %v1346, %v1424
    %v1426 = vpop.f32.mrb[0].mxu0
    %1427 = vdwg.mxu0
    %v1428 = vmul.f32 %v1420, 0.5
    %v1429 = vmul.f32 %v1425, 0.5
    %v1430 = vmul.f32 %v1420, 0.044715
    %v1431 = vmul.f32 %v1425, 0.044715
    %v1432 = vmul.f32 %v1430, %v1420
    %v1433 = vmul.f32 %v1431, %v1425
    %v1434 = vmul.f32 %v1432, %v1420
    %v1435 = vmul.f32 %v1433, %v1425
    %v1436 = vadd.f32 %v1420, %v1434
    %v1437 = vadd.f32 %v1425, %v1435
    %v1438 = vmul.f32 %v1436, 0.7978846
    %v1439 = vmul.f32 %v1437, 0.7978846
    %v1440 = vtanh.pop %v1438
    %v1441 = vtanh.pop %v1439
    %v1442 = vadd.f32 %v1440, 1.0
    %v1443 = vadd.f32 %v1441, 1.0
    %v1444 = vmul.f32 %v1428, %v1442
    %v1445 = vmul.f32 %v1429, %v1443
    %v1446 = vlaneseq
    %v1447 = vshrl.u32 %v1446, 7
    %v1448 = vsub.s32 5, %v1447
    %v1449 = vrot.slane %v31, %v1448
    %vm1450 = vcmask 523264
    %v1452 = vsel %vm1450, %v1444, 0
    %v1455 = vsel %vm1450, %v1445, 0
    %1457 = vmatprep.subr.mxu0 0.0
    %1458 = vmatpush1.msra.mxu0 %v42
    %1459 = vmatprep.subr.mxu0 0.0
    %1460 = vmatpush1.msra.mxu0 %v43
    %1461 = vmatprep.subr.mxu0 0.0
    %1462 = vmatpush1.msra.mxu0 %v44
    %1463 = vmatprep.subr.mxu0 0.0
    %1464 = vmatpush1.msra.mxu0 %v45
    %1465 = vmatprep.subr.mxu0 0.0
    %1466 = vmatpush1.msra.mxu0 %v46
    %1467 = vmatprep.subr.mxu0 0.0
    %1468 = vmatpush1.msra.mxu0 %v47
    %1469 = vmatprep.subr.mxu0 0.0
    %1470 = vmatpush1.msra.mxu0 %v48
    %1471 = vmatprep.subr.mxu0 0.0
    %1472 = vmatpush1.msra.mxu0 %v49
    %1473 = vmatprep.subr.mxu0 0.0
    %1474 = vmatpush1.msra.mxu0 0.0
    %1475 = vmatprep.subr.mxu0 0.0
    %1476 = vmatpush1.msra.mxu0 0.0
    %1477 = vmatprep.subr.mxu0 0.0
    %1478 = vmatpush1.msra.mxu0 0.0
    %1479 = vmatprep.subr.mxu0 0.0
    %1480 = vmatpush1.msra.mxu0 0.0
    %1481 = vmatprep.subr.mxu0 0.0
    %1482 = vmatpush1.msra.mxu0 0.0
    %1483 = vmatprep.subr.mxu0 0.0
    %1484 = vmatpush1.msra.mxu0 0.0
    %1485 = vmatprep.subr.mxu0 0.0
    %1486 = vmatpush1.msra.mxu0 0.0
    %1487 = vmatprep.subr.mxu0 0.0
    %1488 = vmatpush1.msra.mxu0 0.0
    %1489 = vmatprep.subr.mxu0 0.0
    %1490 = vmatpush1.msra.mxu0 0.0
    %1491 = vmatprep.subr.mxu0 0.0
    %1492 = vmatpush1.msra.mxu0 0.0
    %1493 = vmatprep.subr.mxu0 0.0
    %1494 = vmatpush1.msra.mxu0 0.0
    %1495 = vmatprep.subr.mxu0 0.0
    %1496 = vmatpush1.msra.mxu0 0.0
    %1497 = vmatprep.subr.mxu0 0.0
    %1498 = vmatpush1.msra.mxu0 0.0
    %1499 = vmatprep.subr.mxu0 0.0
    %1500 = vmatpush1.msra.mxu0 0.0
    %1501 = vmatprep.subr.mxu0 0.0
    %1502 = vmatpush1.msra.mxu0 0.0
    %1503 = vmatprep.subr.mxu0 0.0
    %1504 = vmatpush1.msra.mxu0 0.0
    %1505 = vmatprep.subr.mxu0 0.0
    %1506 = vmatpush1.msra.mxu0 0.0
    %1507 = vmatprep.subr.mxu0 0.0
    %1508 = vmatpush1.msra.mxu0 0.0
    %1509 = vmatprep.subr.mxu0 0.0
    %1510 = vmatpush1.msra.mxu0 0.0
    %1511 = vmatprep.subr.mxu0 0.0
    %1512 = vmatpush1.msra.mxu0 0.0
    %1513 = vmatprep.subr.mxu0 0.0
    %1514 = vmatpush1.msra.mxu0 0.0
    %1515 = vmatprep.subr.mxu0 0.0
    %1516 = vmatpush1.msra.mxu0 0.0
    %1517 = vmatprep.subr.mxu0 0.0
    %1518 = vmatpush1.msra.mxu0 0.0
    %1519 = vmatprep.subr.mxu0 0.0
    %1520 = vmatpush1.msra.mxu0 0.0
    %1521 = vmatprep.mubr.f32.mxu0 0.0
    %1522 = vmatmul.mubr.f32.gmra.mrb[0].mxu0 %v1452
    %v1523 = vpop.f32.mrb[0].mxu0
    %v1524 = vadd.f32 %v1449, %v1523
    %v1525 = vpop.f32.mrb[0].mxu0
    %1526 = vmatprep.mubr.f32.mxu0 0.0
    %1527 = vmatmul.mubr.f32.gmra.mrb[0].mxu0 %v1455
    %v1528 = vpop.f32.mrb[0].mxu0
    %v1529 = vadd.f32 %v1449, %v1528
    %v1530 = vpop.f32.mrb[0].mxu0
    %1531 = vdwg.mxu0
    %v1532 = vadd.f32 %v1524, %v1341
    %v1533 = vadd.f32 %v1529, %v1342
    %v1534 = vsel %vm54, %v1532, 0.0
    %1535 = vadd.xlane.f32.xlu0 %v1534
    %v1536 = vpop.xlane.xlu0 %1535
    %v1537 = vsel %vm54, %v1533, 0.0
    %1538 = vadd.xlane.f32.xlu0 %v1537
    %v1539 = vpop.xlane.xlu0 %1538
    %v1540 = vmul.f32 %v1536, %v1310
    %v1541 = vmul.f32 %v1539, %v1310
    %v1542 = vsub.f32 %v1532, %v1540
    %v1543 = vsub.f32 %v1533, %v1541
    %v1544 = vmul.f32 %v1542, %v1542
    %v1545 = vmul.f32 %v1543, %v1543
    %v1546 = vsel %vm54, %v1544, 0.0
    %1547 = vadd.xlane.f32.xlu0 %v1546
    %v1548 = vpop.xlane.xlu0 %1547
    %v1549 = vsel %vm54, %v1545, 0.0
    %1550 = vadd.xlane.f32.xlu0 %v1549
    %v1551 = vpop.xlane.xlu0 %1550
    %v1552 = vmul.f32 %v1548, %v1310
    %v1553 = vmul.f32 %v1551, %v1310
    %v1554 = vadd.f32 %v1552, 1e-12
    %v1555 = vadd.f32 %v1553, 1e-12
    %v1556 = vrsqrt.pop %v1554
    %v1557 = vrsqrt.pop %v1555
    %v1558 = vmul.f32 %v1542, %v1556
    %v1559 = vmul.f32 %v1543, %v1557
    %v1560 = vlaneseq
    %v1561 = vshrl.u32 %v1560, 7
    %v1562 = vsub.s32 6, %v1561
    %v1563 = vrot.slane %v31, %v1562
    %v1564 = vmul.f32 %v1558, %v1563
    %v1565 = vmul.f32 %v1559, %v1563
    %v1566 = vlaneseq
    %v1567 = vshrl.u32 %v1566, 7
    %v1568 = vsub.s32 7, %v1567
    %v1569 = vrot.slane %v31, %v1568
    %v1570 = vadd.f32 %v1564, %v1569
    %v1571 = vadd.f32 %v1565, %v1569
    %s1572 = scalar_lea.vmem %s3, 64
    %v1573 = vld [vmem:[%s1572] sm:$0xff]
    %v1574 = vld [vmem:[%s1572 + $0x8] sm:$0xff]
    %v1575 = vld [vmem:[%s1572 + $0x10] sm:$0xff]
    %v1576 = vld [vmem:[%s1572 + $0x18] sm:$0xff]
    %v1577 = vld [vmem:[%s1572 + $0x20] sm:$0xff]
    %v1578 = vld [vmem:[%s1572 + $0x28] sm:$0xff]
    %v1579 = vld [vmem:[%s1572 + $0x30] sm:$0xff]
    %v1580 = vld [vmem:[%s1572 + $0x38] sm:$0xff]
    %s1581 = scalar_lea.vmem %s4, 64
    %v1582 = vld [vmem:[%s1581] sm:$0xff]
    %v1583 = vld [vmem:[%s1581 + $0x8] sm:$0xff]
    %v1584 = vld [vmem:[%s1581 + $0x10] sm:$0xff]
    %v1585 = vld [vmem:[%s1581 + $0x18] sm:$0xff]
    %v1586 = vld [vmem:[%s1581 + $0x20] sm:$0xff]
    %v1587 = vld [vmem:[%s1581 + $0x28] sm:$0xff]
    %v1588 = vld [vmem:[%s1581 + $0x30] sm:$0xff]
    %v1589 = vld [vmem:[%s1581 + $0x38] sm:$0xff]
    %v1590 = vlaneseq
    %v1591 = vshrl.u32 %v1590, 7
    %v1592 = vsub.s32 0, %v1591
    %v1593 = vrot.slane %v32, %v1592
    %v1595 = vsel %vm54, %v1570, 0
    %v1598 = vsel %vm54, %v1571, 0
    %1600 = vmatprep.subr.mxu0 0.0
    %1601 = vmatpush1.msra.mxu0 %v1573
    %1602 = vmatprep.subr.mxu0 0.0
    %1603 = vmatpush1.msra.mxu0 %v1575
    %1604 = vmatprep.subr.mxu0 0.0
    %1605 = vmatpush1.msra.mxu0 %v1577
    %1606 = vmatprep.subr.mxu0 0.0
    %1607 = vmatpush1.msra.mxu0 %v1579
    %1608 = vmatprep.subr.mxu0 0.0
    %1609 = vmatpush1.msra.mxu0 0.0
    %1610 = vmatprep.subr.mxu0 0.0
    %1611 = vmatpush1.msra.mxu0 0.0
    %1612 = vmatprep.subr.mxu0 0.0
    %1613 = vmatpush1.msra.mxu0 0.0
    %1614 = vmatprep.subr.mxu0 0.0
    %1615 = vmatpush1.msra.mxu0 0.0
    %1616 = vmatprep.subr.mxu0 0.0
    %1617 = vmatpush1.msra.mxu0 0.0
    %1618 = vmatprep.subr.mxu0 0.0
    %1619 = vmatpush1.msra.mxu0 0.0
    %1620 = vmatprep.subr.mxu0 0.0
    %1621 = vmatpush1.msra.mxu0 0.0
    %1622 = vmatprep.subr.mxu0 0.0
    %1623 = vmatpush1.msra.mxu0 0.0
    %1624 = vmatprep.subr.mxu0 0.0
    %1625 = vmatpush1.msra.mxu0 0.0
    %1626 = vmatprep.subr.mxu0 0.0
    %1627 = vmatpush1.msra.mxu0 0.0
    %1628 = vmatprep.subr.mxu0 0.0
    %1629 = vmatpush1.msra.mxu0 0.0
    %1630 = vmatprep.subr.mxu0 0.0
    %1631 = vmatpush1.msra.mxu0 0.0
    %1632 = vmatprep.subr.mxu0 0.0
    %1633 = vmatpush1.msra.mxu0 0.0
    %1634 = vmatprep.subr.mxu0 0.0
    %1635 = vmatpush1.msra.mxu0 0.0
    %1636 = vmatprep.subr.mxu0 0.0
    %1637 = vmatpush1.msra.mxu0 0.0
    %1638 = vmatprep.subr.mxu0 0.0
    %1639 = vmatpush1.msra.mxu0 0.0
    %1640 = vmatprep.subr.mxu0 0.0
    %1641 = vmatpush1.msra.mxu0 0.0
    %1642 = vmatprep.subr.mxu0 0.0
    %1643 = vmatpush1.msra.mxu0 0.0
    %1644 = vmatprep.subr.mxu0 0.0
    %1645 = vmatpush1.msra.mxu0 0.0
    %1646 = vmatprep.subr.mxu0 0.0
    %1647 = vmatpush1.msra.mxu0 0.0
    %1648 = vmatprep.subr.mxu0 0.0
    %1649 = vmatpush1.msra.mxu0 0.0
    %1650 = vmatprep.subr.mxu0 0.0
    %1651 = vmatpush1.msra.mxu0 0.0
    %1652 = vmatprep.subr.mxu0 0.0
    %1653 = vmatpush1.msra.mxu0 0.0
    %1654 = vmatprep.subr.mxu0 0.0
    %1655 = vmatpush1.msra.mxu0 0.0
    %1656 = vmatprep.subr.mxu0 0.0
    %1657 = vmatpush1.msra.mxu0 0.0
    %1658 = vmatprep.subr.mxu0 0.0
    %1659 = vmatpush1.msra.mxu0 0.0
    %1660 = vmatprep.subr.mxu0 0.0
    %1661 = vmatpush1.msra.mxu0 0.0
    %1662 = vmatprep.subr.mxu0 0.0
    %1663 = vmatpush1.msra.mxu0 0.0
    %1664 = vmatprep.mubr.f32.mxu0 0.0
    %1665 = vmatmul.mubr.f32.gmra.mrb[0].mxu0 %v1595
    %v1666 = vpop.f32.mrb[0].mxu0
    %v1667 = vadd.f32 %v1593, %v1666
    %v1668 = vpop.f32.mrb[0].mxu0
    %1669 = vmatprep.mubr.f32.mxu0 0.0
    %1670 = vmatmul.mubr.f32.gmra.mrb[0].mxu0 %v1598
    %v1671 = vpop.f32.mrb[0].mxu0
    %v1672 = vadd.f32 %v1593, %v1671
    %v1673 = vpop.f32.mrb[0].mxu0
    %1674 = vdwg.mxu0
    %1677 = vrot.lane.b32.xlu0 %v1667, 96
    %v1678 = vpop.permute.xlu0 %1677
    %1679 = vrot.lane.b32.xlu0 %v1672, 96
    %v1680 = vpop.permute.xlu0 %1679
    %v1681 = vsel %vm142, %v1667, 0
    %v1683 = vsel %vm142, %v1672, 0
    %v1685 = vsel %vm142, %v1678, 0
    %v1687 = vsel %vm142, %v1680, 0
    %1689 = vmatprep.subr.mxu0 0.0
    %1690 = vmatpush1.xpose.msra.mxu0 %v1685
    %1691 = vmatprep.subr.mxu0 0.0
    %1692 = vmatpush1.xpose.msra.mxu0 %v1687
    %1693 = vmatprep.subr.mxu0 0.0
    %1694 = vmatpush1.xpose.msra.mxu0 0.0
    %1695 = vmatprep.subr.mxu0 0.0
    %1696 = vmatpush1.xpose.msra.mxu0 0.0
    %1697 = vmatprep.subr.mxu0 0.0
    %1698 = vmatpush1.xpose.msra.mxu0 0.0
    %1699 = vmatprep.subr.mxu0 0.0
    %1700 = vmatpush1.xpose.msra.mxu0 0.0
    %1701 = vmatprep.subr.mxu0 0.0
    %1702 = vmatpush1.xpose.msra.mxu0 0.0
    %1703 = vmatprep.subr.mxu0 0.0
    %1704 = vmatpush1.xpose.msra.mxu0 0.0
    %1705 = vmatprep.subr.mxu0 0.0
    %1706 = vmatpush1.xpose.msra.mxu0 0.0
    %1707 = vmatprep.subr.mxu0 0.0
    %1708 = vmatpush1.xpose.msra.mxu0 0.0
    %1709 = vmatprep.subr.mxu0 0.0
    %1710 = vmatpush1.xpose.msra.mxu0 0.0
    %1711 = vmatprep.subr.mxu0 0.0
    %1712 = vmatpush1.xpose.msra.mxu0 0.0
    %1713 = vmatprep.subr.mxu0 0.0
    %1714 = vmatpush1.xpose.msra.mxu0 0.0
    %1715 = vmatprep.subr.mxu0 0.0
    %1716 = vmatpush1.xpose.msra.mxu0 0.0
    %1717 = vmatprep.subr.mxu0 0.0
    %1718 = vmatpush1.xpose.msra.mxu0 0.0
    %1719 = vmatprep.subr.mxu0 0.0
    %1720 = vmatpush1.xpose.msra.mxu0 0.0
    %1721 = vmatprep.subr.mxu0 0.0
    %1722 = vmatpush1.xpose.msra.mxu0 0.0
    %1723 = vmatprep.subr.mxu0 0.0
    %1724 = vmatpush1.xpose.msra.mxu0 0.0
    %1725 = vmatprep.subr.mxu0 0.0
    %1726 = vmatpush1.xpose.msra.mxu0 0.0
    %1727 = vmatprep.subr.mxu0 0.0
    %1728 = vmatpush1.xpose.msra.mxu0 0.0
    %1729 = vmatprep.subr.mxu0 0.0
    %1730 = vmatpush1.xpose.msra.mxu0 0.0
    %1731 = vmatprep.subr.mxu0 0.0
    %1732 = vmatpush1.xpose.msra.mxu0 0.0
    %1733 = vmatprep.subr.mxu0 0.0
    %1734 = vmatpush1.xpose.msra.mxu0 0.0
    %1735 = vmatprep.subr.mxu0 0.0
    %1736 = vmatpush1.xpose.msra.mxu0 0.0
    %1737 = vmatprep.subr.mxu0 0.0
    %1738 = vmatpush1.xpose.msra.mxu0 0.0
    %1739 = vmatprep.subr.mxu0 0.0
    %1740 = vmatpush1.xpose.msra.mxu0 0.0
    %1741 = vmatprep.subr.mxu0 0.0
    %1742 = vmatpush1.xpose.msra.mxu0 0.0
    %1743 = vmatprep.subr.mxu0 0.0
    %1744 = vmatpush1.xpose.msra.mxu0 0.0
    %1745 = vmatprep.subr.mxu0 0.0
    %1746 = vmatpush1.xpose.msra.mxu0 0.0
    %1747 = vmatprep.subr.mxu0 0.0
    %1748 = vmatpush1.xpose.msra.mxu0 0.0
    %1749 = vmatprep.subr.mxu0 0.0
    %1750 = vmatpush1.xpose.msra.mxu0 0.0
    %1751 = vmatprep.subr.mxu0 0.0
    %1752 = vmatpush1.xpose.msra.mxu0 0.0
    %1753 = vmatprep.mubr.f32.mxu0 0.0
    %1754 = vmatmul.mubr.f32.gmra.mrb[0].mxu0 %v1681
    %v1755 = vpop.f32.mrb[0].mxu0
    %v1756 = vadd.f32 0.0, %v1755
    %v1757 = vpop.f32.mrb[0].mxu0
    %1758 = vmatprep.mubr.f32.mxu0 0.0
    %1759 = vmatmul.mubr.f32.gmra.mrb[0].mxu0 %v1683
    %v1760 = vpop.f32.mrb[0].mxu0
    %v1761 = vadd.f32 0.0, %v1760
    %v1762 = vpop.f32.mrb[0].mxu0
    %1763 = vdwg.mxu0
    %v1764 = vmul.f32 %v1756, 0.35355338
    %v1765 = vmul.f32 %v1761, 0.35355338
    %v1766 = vadd.f32 %v1764, %v29
    %v1767 = vadd.f32 %v1765, %v30
    %v1768 = vsel %vm230, %v1766, -inf
    %1769 = vmax.xlane.f32.xlu0 %v1768
    %v1770 = vpop.xlane.xlu0 %1769
    %v1771 = vsel %vm230, %v1767, -inf
    %1772 = vmax.xlane.f32.xlu0 %v1771
    %v1773 = vpop.xlane.xlu0 %1772
    %v1774 = vsub.f32 %v1766, %v1770
    %v1775 = vsub.f32 %v1767, %v1773
    %v1776 = vmul.f32 %v1774, 1.442695
    %v1777 = vpow.pop %v1776
    %v1778 = vmul.f32 %v1775, 1.442695
    %v1779 = vpow.pop %v1778
    %v1780 = vsel %vm230, %v1777, 0.0
    %1781 = vadd.xlane.f32.xlu0 %v1780
    %v1782 = vpop.xlane.xlu0 %1781
    %v1783 = vsel %vm230, %v1779, 0.0
    %1784 = vadd.xlane.f32.xlu0 %v1783
    %v1785 = vpop.xlane.xlu0 %1784
    %v1786 = vrcp.pop %v1782
    %v1787 = vrcp.pop %v1785
    %v1788 = vmul.f32 %v1777, %v1786
    %v1789 = vmul.f32 %v1779, %v1787
    %1790 = vrot.lane.b32.xlu0 %v1667, 64
    %v1791 = vpop.permute.xlu0 %1790
    %1792 = vrot.lane.b32.xlu0 %v1672, 64
    %v1793 = vpop.permute.xlu0 %1792
    %v1797 = vsel %vm230, %v1788, 0
    %v1800 = vsel %vm230, %v1789, 0
    %1802 = vmatprep.subr.mxu0 0.0
    %1803 = vmatpush1.msra.mxu0 %v1791
    %1804 = vmatprep.subr.mxu0 0.0
    %1805 = vmatpush1.msra.mxu0 %v1793
    %1806 = vmatprep.subr.mxu0 0.0
    %1807 = vmatpush1.msra.mxu0 0.0
    %1808 = vmatprep.subr.mxu0 0.0
    %1809 = vmatpush1.msra.mxu0 0.0
    %1810 = vmatprep.subr.mxu0 0.0
    %1811 = vmatpush1.msra.mxu0 0.0
    %1812 = vmatprep.subr.mxu0 0.0
    %1813 = vmatpush1.msra.mxu0 0.0
    %1814 = vmatprep.subr.mxu0 0.0
    %1815 = vmatpush1.msra.mxu0 0.0
    %1816 = vmatprep.subr.mxu0 0.0
    %1817 = vmatpush1.msra.mxu0 0.0
    %1818 = vmatprep.subr.mxu0 0.0
    %1819 = vmatpush1.msra.mxu0 0.0
    %1820 = vmatprep.subr.mxu0 0.0
    %1821 = vmatpush1.msra.mxu0 0.0
    %1822 = vmatprep.subr.mxu0 0.0
    %1823 = vmatpush1.msra.mxu0 0.0
    %1824 = vmatprep.subr.mxu0 0.0
    %1825 = vmatpush1.msra.mxu0 0.0
    %1826 = vmatprep.subr.mxu0 0.0
    %1827 = vmatpush1.msra.mxu0 0.0
    %1828 = vmatprep.subr.mxu0 0.0
    %1829 = vmatpush1.msra.mxu0 0.0
    %1830 = vmatprep.subr.mxu0 0.0
    %1831 = vmatpush1.msra.mxu0 0.0
    %1832 = vmatprep.subr.mxu0 0.0
    %1833 = vmatpush1.msra.mxu0 0.0
    %1834 = vmatprep.subr.mxu0 0.0
    %1835 = vmatpush1.msra.mxu0 0.0
    %1836 = vmatprep.subr.mxu0 0.0
    %1837 = vmatpush1.msra.mxu0 0.0
    %1838 = vmatprep.subr.mxu0 0.0
    %1839 = vmatpush1.msra.mxu0 0.0
    %1840 = vmatprep.subr.mxu0 0.0
    %1841 = vmatpush1.msra.mxu0 0.0
    %1842 = vmatprep.subr.mxu0 0.0
    %1843 = vmatpush1.msra.mxu0 0.0
    %1844 = vmatprep.subr.mxu0 0.0
    %1845 = vmatpush1.msra.mxu0 0.0
    %1846 = vmatprep.subr.mxu0 0.0
    %1847 = vmatpush1.msra.mxu0 0.0
    %1848 = vmatprep.subr.mxu0 0.0
    %1849 = vmatpush1.msra.mxu0 0.0
    %1850 = vmatprep.subr.mxu0 0.0
    %1851 = vmatpush1.msra.mxu0 0.0
    %1852 = vmatprep.subr.mxu0 0.0
    %1853 = vmatpush1.msra.mxu0 0.0
    %1854 = vmatprep.subr.mxu0 0.0
    %1855 = vmatpush1.msra.mxu0 0.0
    %1856 = vmatprep.subr.mxu0 0.0
    %1857 = vmatpush1.msra.mxu0 0.0
    %1858 = vmatprep.subr.mxu0 0.0
    %1859 = vmatpush1.msra.mxu0 0.0
    %1860 = vmatprep.subr.mxu0 0.0
    %1861 = vmatpush1.msra.mxu0 0.0
    %1862 = vmatprep.subr.mxu0 0.0
    %1863 = vmatpush1.msra.mxu0 0.0
    %1864 = vmatprep.subr.mxu0 0.0
    %1865 = vmatpush1.msra.mxu0 0.0
    %1866 = vmatprep.mubr.f32.mxu0 0.0
    %1867 = vmatmul.mubr.f32.gmra.mrb[0].mxu0 %v1797
    %v1868 = vpop.f32.mrb[0].mxu0
    %v1869 = vadd.f32 0.0, %v1868
    %v1870 = vpop.f32.mrb[0].mxu0
    %1871 = vmatprep.mubr.f32.mxu0 0.0
    %1872 = vmatmul.mubr.f32.gmra.mrb[0].mxu0 %v1800
    %v1873 = vpop.f32.mrb[0].mxu0
    %v1874 = vadd.f32 0.0, %v1873
    %v1875 = vpop.f32.mrb[0].mxu0
    %1876 = vdwg.mxu0
    %1877 = vrot.lane.b32.xlu0 %v1667, 120
    %v1878 = vpop.permute.xlu0 %1877
    %1879 = vrot.lane.b32.xlu0 %v1672, 120
    %v1880 = vpop.permute.xlu0 %1879
    %1881 = vrot.lane.b32.xlu0 %v1667, 88
    %v1882 = vpop.permute.xlu0 %1881
    %1883 = vrot.lane.b32.xlu0 %v1672, 88
    %v1884 = vpop.permute.xlu0 %1883
    %v1885 = vsel %vm142, %v1878, 0
    %v1887 = vsel %vm142, %v1880, 0
    %v1889 = vsel %vm142, %v1882, 0
    %v1891 = vsel %vm142, %v1884, 0
    %1893 = vmatprep.subr.mxu0 0.0
    %1894 = vmatpush1.xpose.msra.mxu0 %v1889
    %1895 = vmatprep.subr.mxu0 0.0
    %1896 = vmatpush1.xpose.msra.mxu0 %v1891
    %1897 = vmatprep.subr.mxu0 0.0
    %1898 = vmatpush1.xpose.msra.mxu0 0.0
    %1899 = vmatprep.subr.mxu0 0.0
    %1900 = vmatpush1.xpose.msra.mxu0 0.0
    %1901 = vmatprep.subr.mxu0 0.0
    %1902 = vmatpush1.xpose.msra.mxu0 0.0
    %1903 = vmatprep.subr.mxu0 0.0
    %1904 = vmatpush1.xpose.msra.mxu0 0.0
    %1905 = vmatprep.subr.mxu0 0.0
    %1906 = vmatpush1.xpose.msra.mxu0 0.0
    %1907 = vmatprep.subr.mxu0 0.0
    %1908 = vmatpush1.xpose.msra.mxu0 0.0
    %1909 = vmatprep.subr.mxu0 0.0
    %1910 = vmatpush1.xpose.msra.mxu0 0.0
    %1911 = vmatprep.subr.mxu0 0.0
    %1912 = vmatpush1.xpose.msra.mxu0 0.0
    %1913 = vmatprep.subr.mxu0 0.0
    %1914 = vmatpush1.xpose.msra.mxu0 0.0
    %1915 = vmatprep.subr.mxu0 0.0
    %1916 = vmatpush1.xpose.msra.mxu0 0.0
    %1917 = vmatprep.subr.mxu0 0.0
    %1918 = vmatpush1.xpose.msra.mxu0 0.0
    %1919 = vmatprep.subr.mxu0 0.0
    %1920 = vmatpush1.xpose.msra.mxu0 0.0
    %1921 = vmatprep.subr.mxu0 0.0
    %1922 = vmatpush1.xpose.msra.mxu0 0.0
    %1923 = vmatprep.subr.mxu0 0.0
    %1924 = vmatpush1.xpose.msra.mxu0 0.0
    %1925 = vmatprep.subr.mxu0 0.0
    %1926 = vmatpush1.xpose.msra.mxu0 0.0
    %1927 = vmatprep.subr.mxu0 0.0
    %1928 = vmatpush1.xpose.msra.mxu0 0.0
    %1929 = vmatprep.subr.mxu0 0.0
    %1930 = vmatpush1.xpose.msra.mxu0 0.0
    %1931 = vmatprep.subr.mxu0 0.0
    %1932 = vmatpush1.xpose.msra.mxu0 0.0
    %1933 = vmatprep.subr.mxu0 0.0
    %1934 = vmatpush1.xpose.msra.mxu0 0.0
    %1935 = vmatprep.subr.mxu0 0.0
    %1936 = vmatpush1.xpose.msra.mxu0 0.0
    %1937 = vmatprep.subr.mxu0 0.0
    %1938 = vmatpush1.xpose.msra.mxu0 0.0
    %1939 = vmatprep.subr.mxu0 0.0
    %1940 = vmatpush1.xpose.msra.mxu0 0.0
    %1941 = vmatprep.subr.mxu0 0.0
    %1942 = vmatpush1.xpose.msra.mxu0 0.0
    %1943 = vmatprep.subr.mxu0 0.0
    %1944 = vmatpush1.xpose.msra.mxu0 0.0
    %1945 = vmatprep.subr.mxu0 0.0
    %1946 = vmatpush1.xpose.msra.mxu0 0.0
    %1947 = vmatprep.subr.mxu0 0.0
    %1948 = vmatpush1.xpose.msra.mxu0 0.0
    %1949 = vmatprep.subr.mxu0 0.0
    %1950 = vmatpush1.xpose.msra.mxu0 0.0
    %1951 = vmatprep.subr.mxu0 0.0
    %1952 = vmatpush1.xpose.msra.mxu0 0.0
    %1953 = vmatprep.subr.mxu0 0.0
    %1954 = vmatpush1.xpose.msra.mxu0 0.0
    %1955 = vmatprep.subr.mxu0 0.0
    %1956 = vmatpush1.xpose.msra.mxu0 0.0
    %1957 = vmatprep.mubr.f32.mxu0 0.0
    %1958 = vmatmul.mubr.f32.gmra.mrb[0].mxu0 %v1885
    %v1959 = vpop.f32.mrb[0].mxu0
    %v1960 = vadd.f32 0.0, %v1959
    %v1961 = vpop.f32.mrb[0].mxu0
    %1962 = vmatprep.mubr.f32.mxu0 0.0
    %1963 = vmatmul.mubr.f32.gmra.mrb[0].mxu0 %v1887
    %v1964 = vpop.f32.mrb[0].mxu0
    %v1965 = vadd.f32 0.0, %v1964
    %v1966 = vpop.f32.mrb[0].mxu0
    %1967 = vdwg.mxu0
    %v1968 = vmul.f32 %v1960, 0.35355338
    %v1969 = vmul.f32 %v1965, 0.35355338
    %v1970 = vadd.f32 %v1968, %v29
    %v1971 = vadd.f32 %v1969, %v30
    %v1972 = vsel %vm230, %v1970, -inf
    %1973 = vmax.xlane.f32.xlu0 %v1972
    %v1974 = vpop.xlane.xlu0 %1973
    %v1975 = vsel %vm230, %v1971, -inf
    %1976 = vmax.xlane.f32.xlu0 %v1975
    %v1977 = vpop.xlane.xlu0 %1976
    %v1978 = vsub.f32 %v1970, %v1974
    %v1979 = vsub.f32 %v1971, %v1977
    %v1980 = vmul.f32 %v1978, 1.442695
    %v1981 = vpow.pop %v1980
    %v1982 = vmul.f32 %v1979, 1.442695
    %v1983 = vpow.pop %v1982
    %v1984 = vsel %vm230, %v1981, 0.0
    %1985 = vadd.xlane.f32.xlu0 %v1984
    %v1986 = vpop.xlane.xlu0 %1985
    %v1987 = vsel %vm230, %v1983, 0.0
    %1988 = vadd.xlane.f32.xlu0 %v1987
    %v1989 = vpop.xlane.xlu0 %1988
    %v1990 = vrcp.pop %v1986
    %v1991 = vrcp.pop %v1989
    %v1992 = vmul.f32 %v1981, %v1990
    %v1993 = vmul.f32 %v1983, %v1991
    %1994 = vrot.lane.b32.xlu0 %v1667, 56
    %v1995 = vpop.permute.xlu0 %1994
    %1996 = vrot.lane.b32.xlu0 %v1672, 56
    %v1997 = vpop.permute.xlu0 %1996
    %v2001 = vsel %vm230, %v1992, 0
    %v2004 = vsel %vm230, %v1993, 0
    %2006 = vmatprep.subr.mxu0 0.0
    %2007 = vmatpush1.msra.mxu0 %v1995
    %2008 = vmatprep.subr.mxu0 0.0
    %2009 = vmatpush1.msra.mxu0 %v1997
    %2010 = vmatprep.subr.mxu0 0.0
    %2011 = vmatpush1.msra.mxu0 0.0
    %2012 = vmatprep.subr.mxu0 0.0
    %2013 = vmatpush1.msra.mxu0 0.0
    %2014 = vmatprep.subr.mxu0 0.0
    %2015 = vmatpush1.msra.mxu0 0.0
    %2016 = vmatprep.subr.mxu0 0.0
    %2017 = vmatpush1.msra.mxu0 0.0
    %2018 = vmatprep.subr.mxu0 0.0
    %2019 = vmatpush1.msra.mxu0 0.0
    %2020 = vmatprep.subr.mxu0 0.0
    %2021 = vmatpush1.msra.mxu0 0.0
    %2022 = vmatprep.subr.mxu0 0.0
    %2023 = vmatpush1.msra.mxu0 0.0
    %2024 = vmatprep.subr.mxu0 0.0
    %2025 = vmatpush1.msra.mxu0 0.0
    %2026 = vmatprep.subr.mxu0 0.0
    %2027 = vmatpush1.msra.mxu0 0.0
    %2028 = vmatprep.subr.mxu0 0.0
    %2029 = vmatpush1.msra.mxu0 0.0
    %2030 = vmatprep.subr.mxu0 0.0
    %2031 = vmatpush1.msra.mxu0 0.0
    %2032 = vmatprep.subr.mxu0 0.0
    %2033 = vmatpush1.msra.mxu0 0.0
    %2034 = vmatprep.subr.mxu0 0.0
    %2035 = vmatpush1.msra.mxu0 0.0
    %2036 = vmatprep.subr.mxu0 0.0
    %2037 = vmatpush1.msra.mxu0 0.0
    %2038 = vmatprep.subr.mxu0 0.0
    %2039 = vmatpush1.msra.mxu0 0.0
    %2040 = vmatprep.subr.mxu0 0.0
    %2041 = vmatpush1.msra.mxu0 0.0
    %2042 = vmatprep.subr.mxu0 0.0
    %2043 = vmatpush1.msra.mxu0 0.0
    %2044 = vmatprep.subr.mxu0 0.0
    %2045 = vmatpush1.msra.mxu0 0.0
    %2046 = vmatprep.subr.mxu0 0.0
    %2047 = vmatpush1.msra.mxu0 0.0
    %2048 = vmatprep.subr.mxu0 0.0
    %2049 = vmatpush1.msra.mxu0 0.0
    %2050 = vmatprep.subr.mxu0 0.0
    %2051 = vmatpush1.msra.mxu0 0.0
    %2052 = vmatprep.subr.mxu0 0.0
    %2053 = vmatpush1.msra.mxu0 0.0
    %2054 = vmatprep.subr.mxu0 0.0
    %2055 = vmatpush1.msra.mxu0 0.0
    %2056 = vmatprep.subr.mxu0 0.0
    %2057 = vmatpush1.msra.mxu0 0.0
    %2058 = vmatprep.subr.mxu0 0.0
    %2059 = vmatpush1.msra.mxu0 0.0
    %2060 = vmatprep.subr.mxu0 0.0
    %2061 = vmatpush1.msra.mxu0 0.0
    %2062 = vmatprep.subr.mxu0 0.0
    %2063 = vmatpush1.msra.mxu0 0.0
    %2064 = vmatprep.subr.mxu0 0.0
    %2065 = vmatpush1.msra.mxu0 0.0
    %2066 = vmatprep.subr.mxu0 0.0
    %2067 = vmatpush1.msra.mxu0 0.0
    %2068 = vmatprep.subr.mxu0 0.0
    %2069 = vmatpush1.msra.mxu0 0.0
    %2070 = vmatprep.mubr.f32.mxu0 0.0
    %2071 = vmatmul.mubr.f32.gmra.mrb[0].mxu0 %v2001
    %v2072 = vpop.f32.mrb[0].mxu0
    %v2073 = vadd.f32 0.0, %v2072
    %v2074 = vpop.f32.mrb[0].mxu0
    %2075 = vmatprep.mubr.f32.mxu0 0.0
    %2076 = vmatmul.mubr.f32.gmra.mrb[0].mxu0 %v2004
    %v2077 = vpop.f32.mrb[0].mxu0
    %v2078 = vadd.f32 0.0, %v2077
    %v2079 = vpop.f32.mrb[0].mxu0
    %2080 = vdwg.mxu0
    %2082 = vrot.lane.b32.xlu0 %v1575, 32
    %v2083 = vpop.permute.xlu0 %2082
    %v2086 = vsel %vm142, %v2073, 0
    %v2089 = vsel %vm142, %v2078, 0
    %2091 = vmatprep.subr.mxu0 0.0
    %2092 = vmatpush1.msra.mxu0 %v2083
    %2093 = vmatprep.subr.mxu0 0.0
    %2094 = vmatpush1.msra.mxu0 0.0
    %2095 = vmatprep.subr.mxu0 0.0
    %2096 = vmatpush1.msra.mxu0 0.0
    %2097 = vmatprep.subr.mxu0 0.0
    %2098 = vmatpush1.msra.mxu0 0.0
    %2099 = vmatprep.subr.mxu0 0.0
    %2100 = vmatpush1.msra.mxu0 0.0
    %2101 = vmatprep.subr.mxu0 0.0
    %2102 = vmatpush1.msra.mxu0 0.0
    %2103 = vmatprep.subr.mxu0 0.0
    %2104 = vmatpush1.msra.mxu0 0.0
    %2105 = vmatprep.subr.mxu0 0.0
    %2106 = vmatpush1.msra.mxu0 0.0
    %2107 = vmatprep.subr.mxu0 0.0
    %2108 = vmatpush1.msra.mxu0 0.0
    %2109 = vmatprep.subr.mxu0 0.0
    %2110 = vmatpush1.msra.mxu0 0.0
    %2111 = vmatprep.subr.mxu0 0.0
    %2112 = vmatpush1.msra.mxu0 0.0
    %2113 = vmatprep.subr.mxu0 0.0
    %2114 = vmatpush1.msra.mxu0 0.0
    %2115 = vmatprep.subr.mxu0 0.0
    %2116 = vmatpush1.msra.mxu0 0.0
    %2117 = vmatprep.subr.mxu0 0.0
    %2118 = vmatpush1.msra.mxu0 0.0
    %2119 = vmatprep.subr.mxu0 0.0
    %2120 = vmatpush1.msra.mxu0 0.0
    %2121 = vmatprep.subr.mxu0 0.0
    %2122 = vmatpush1.msra.mxu0 0.0
    %2123 = vmatprep.subr.mxu0 0.0
    %2124 = vmatpush1.msra.mxu0 0.0
    %2125 = vmatprep.subr.mxu0 0.0
    %2126 = vmatpush1.msra.mxu0 0.0
    %2127 = vmatprep.subr.mxu0 0.0
    %2128 = vmatpush1.msra.mxu0 0.0
    %2129 = vmatprep.subr.mxu0 0.0
    %2130 = vmatpush1.msra.mxu0 0.0
    %2131 = vmatprep.subr.mxu0 0.0
    %2132 = vmatpush1.msra.mxu0 0.0
    %2133 = vmatprep.subr.mxu0 0.0
    %2134 = vmatpush1.msra.mxu0 0.0
    %2135 = vmatprep.subr.mxu0 0.0
    %2136 = vmatpush1.msra.mxu0 0.0
    %2137 = vmatprep.subr.mxu0 0.0
    %2138 = vmatpush1.msra.mxu0 0.0
    %2139 = vmatprep.subr.mxu0 0.0
    %2140 = vmatpush1.msra.mxu0 0.0
    %2141 = vmatprep.subr.mxu0 0.0
    %2142 = vmatpush1.msra.mxu0 0.0
    %2143 = vmatprep.subr.mxu0 0.0
    %2144 = vmatpush1.msra.mxu0 0.0
    %2145 = vmatprep.subr.mxu0 0.0
    %2146 = vmatpush1.msra.mxu0 0.0
    %2147 = vmatprep.subr.mxu0 0.0
    %2148 = vmatpush1.msra.mxu0 0.0
    %2149 = vmatprep.subr.mxu0 0.0
    %2150 = vmatpush1.msra.mxu0 0.0
    %2151 = vmatprep.subr.mxu0 0.0
    %2152 = vmatpush1.msra.mxu0 0.0
    %2153 = vmatprep.subr.mxu0 0.0
    %2154 = vmatpush1.msra.mxu0 0.0
    %2155 = vmatprep.mubr.f32.mxu0 0.0
    %2156 = vmatmul.mubr.f32.gmra.mrb[0].mxu0 %v2086
    %v2157 = vpop.f32.mrb[0].mxu0
    %v2158 = vadd.f32 0.0, %v2157
    %v2159 = vpop.f32.mrb[0].mxu0
    %2160 = vmatprep.mubr.f32.mxu0 0.0
    %2161 = vmatmul.mubr.f32.gmra.mrb[0].mxu0 %v2089
    %v2162 = vpop.f32.mrb[0].mxu0
    %v2163 = vadd.f32 0.0, %v2162
    %v2164 = vpop.f32.mrb[0].mxu0
    %2165 = vdwg.mxu0
    %2167 = vrot.lane.b32.xlu0 %v1573, 32
    %v2168 = vpop.permute.xlu0 %2167
    %v2171 = vsel %vm142, %v1869, 0
    %v2174 = vsel %vm142, %v1874, 0
    %2176 = vmatprep.subr.mxu0 0.0
    %2177 = vmatpush1.msra.mxu0 %v2168
    %2178 = vmatprep.subr.mxu0 0.0
    %2179 = vmatpush1.msra.mxu0 0.0
    %2180 = vmatprep.subr.mxu0 0.0
    %2181 = vmatpush1.msra.mxu0 0.0
    %2182 = vmatprep.subr.mxu0 0.0
    %2183 = vmatpush1.msra.mxu0 0.0
    %2184 = vmatprep.subr.mxu0 0.0
    %2185 = vmatpush1.msra.mxu0 0.0
    %2186 = vmatprep.subr.mxu0 0.0
    %2187 = vmatpush1.msra.mxu0 0.0
    %2188 = vmatprep.subr.mxu0 0.0
    %2189 = vmatpush1.msra.mxu0 0.0
    %2190 = vmatprep.subr.mxu0 0.0
    %2191 = vmatpush1.msra.mxu0 0.0
    %2192 = vmatprep.subr.mxu0 0.0
    %2193 = vmatpush1.msra.mxu0 0.0
    %2194 = vmatprep.subr.mxu0 0.0
    %2195 = vmatpush1.msra.mxu0 0.0
    %2196 = vmatprep.subr.mxu0 0.0
    %2197 = vmatpush1.msra.mxu0 0.0
    %2198 = vmatprep.subr.mxu0 0.0
    %2199 = vmatpush1.msra.mxu0 0.0
    %2200 = vmatprep.subr.mxu0 0.0
    %2201 = vmatpush1.msra.mxu0 0.0
    %2202 = vmatprep.subr.mxu0 0.0
    %2203 = vmatpush1.msra.mxu0 0.0
    %2204 = vmatprep.subr.mxu0 0.0
    %2205 = vmatpush1.msra.mxu0 0.0
    %2206 = vmatprep.subr.mxu0 0.0
    %2207 = vmatpush1.msra.mxu0 0.0
    %2208 = vmatprep.subr.mxu0 0.0
    %2209 = vmatpush1.msra.mxu0 0.0
    %2210 = vmatprep.subr.mxu0 0.0
    %2211 = vmatpush1.msra.mxu0 0.0
    %2212 = vmatprep.subr.mxu0 0.0
    %2213 = vmatpush1.msra.mxu0 0.0
    %2214 = vmatprep.subr.mxu0 0.0
    %2215 = vmatpush1.msra.mxu0 0.0
    %2216 = vmatprep.subr.mxu0 0.0
    %2217 = vmatpush1.msra.mxu0 0.0
    %2218 = vmatprep.subr.mxu0 0.0
    %2219 = vmatpush1.msra.mxu0 0.0
    %2220 = vmatprep.subr.mxu0 0.0
    %2221 = vmatpush1.msra.mxu0 0.0
    %2222 = vmatprep.subr.mxu0 0.0
    %2223 = vmatpush1.msra.mxu0 0.0
    %2224 = vmatprep.subr.mxu0 0.0
    %2225 = vmatpush1.msra.mxu0 0.0
    %2226 = vmatprep.subr.mxu0 0.0
    %2227 = vmatpush1.msra.mxu0 0.0
    %2228 = vmatprep.subr.mxu0 0.0
    %2229 = vmatpush1.msra.mxu0 0.0
    %2230 = vmatprep.subr.mxu0 0.0
    %2231 = vmatpush1.msra.mxu0 0.0
    %2232 = vmatprep.subr.mxu0 0.0
    %2233 = vmatpush1.msra.mxu0 0.0
    %2234 = vmatprep.subr.mxu0 0.0
    %2235 = vmatpush1.msra.mxu0 0.0
    %2236 = vmatprep.subr.mxu0 0.0
    %2237 = vmatpush1.msra.mxu0 0.0
    %2238 = vmatprep.subr.mxu0 0.0
    %2239 = vmatpush1.msra.mxu0 0.0
    %2240 = vmatprep.mubr.f32.mxu0 0.0
    %2241 = vmatmul.mubr.f32.gmra.mrb[0].mxu0 %v2171
    %v2242 = vpop.f32.mrb[0].mxu0
    %v2243 = vadd.f32 %v2158, %v2242
    %v2244 = vpop.f32.mrb[0].mxu0
    %2245 = vmatprep.mubr.f32.mxu0 0.0
    %2246 = vmatmul.mubr.f32.gmra.mrb[0].mxu0 %v2174
    %v2247 = vpop.f32.mrb[0].mxu0
    %v2248 = vadd.f32 %v2163, %v2247
    %v2249 = vpop.f32.mrb[0].mxu0
    %2250 = vdwg.mxu0
    %2251 = vrot.lane.b32.xlu0 %v1667, 112
    %v2252 = vpop.permute.xlu0 %2251
    %2253 = vrot.lane.b32.xlu0 %v1672, 112
    %v2254 = vpop.permute.xlu0 %2253
    %2255 = vrot.lane.b32.xlu0 %v1667, 80
    %v2256 = vpop.permute.xlu0 %2255
    %2257 = vrot.lane.b32.xlu0 %v1672, 80
    %v2258 = vpop.permute.xlu0 %2257
    %v2259 = vsel %vm142, %v2252, 0
    %v2261 = vsel %vm142, %v2254, 0
    %v2263 = vsel %vm142, %v2256, 0
    %v2265 = vsel %vm142, %v2258, 0
    %2267 = vmatprep.subr.mxu0 0.0
    %2268 = vmatpush1.xpose.msra.mxu0 %v2263
    %2269 = vmatprep.subr.mxu0 0.0
    %2270 = vmatpush1.xpose.msra.mxu0 %v2265
    %2271 = vmatprep.subr.mxu0 0.0
    %2272 = vmatpush1.xpose.msra.mxu0 0.0
    %2273 = vmatprep.subr.mxu0 0.0
    %2274 = vmatpush1.xpose.msra.mxu0 0.0
    %2275 = vmatprep.subr.mxu0 0.0
    %2276 = vmatpush1.xpose.msra.mxu0 0.0
    %2277 = vmatprep.subr.mxu0 0.0
    %2278 = vmatpush1.xpose.msra.mxu0 0.0
    %2279 = vmatprep.subr.mxu0 0.0
    %2280 = vmatpush1.xpose.msra.mxu0 0.0
    %2281 = vmatprep.subr.mxu0 0.0
    %2282 = vmatpush1.xpose.msra.mxu0 0.0
    %2283 = vmatprep.subr.mxu0 0.0
    %2284 = vmatpush1.xpose.msra.mxu0 0.0
    %2285 = vmatprep.subr.mxu0 0.0
    %2286 = vmatpush1.xpose.msra.mxu0 0.0
    %2287 = vmatprep.subr.mxu0 0.0
    %2288 = vmatpush1.xpose.msra.mxu0 0.0
    %2289 = vmatprep.subr.mxu0 0.0
    %2290 = vmatpush1.xpose.msra.mxu0 0.0
    %2291 = vmatprep.subr.mxu0 0.0
    %2292 = vmatpush1.xpose.msra.mxu0 0.0
    %2293 = vmatprep.subr.mxu0 0.0
    %2294 = vmatpush1.xpose.msra.mxu0 0.0
    %2295 = vmatprep.subr.mxu0 0.0
    %2296 = vmatpush1.xpose.msra.mxu0 0.0
    %2297 = vmatprep.subr.mxu0 0.0
    %2298 = vmatpush1.xpose.msra.mxu0 0.0
    %2299 = vmatprep.subr.mxu0 0.0
    %2300 = vmatpush1.xpose.msra.mxu0 0.0
    %2301 = vmatprep.subr.mxu0 0.0
    %2302 = vmatpush1.xpose.msra.mxu0 0.0
    %2303 = vmatprep.subr.mxu0 0.0
    %2304 = vmatpush1.xpose.msra.mxu0 0.0
    %2305 = vmatprep.subr.mxu0 0.0
    %2306 = vmatpush1.xpose.msra.mxu0 0.0
    %2307 = vmatprep.subr.mxu0 0.0
    %2308 = vmatpush1.xpose.msra.mxu0 0.0
    %2309 = vmatprep.subr.mxu0 0.0
    %2310 = vmatpush1.xpose.msra.mxu0 0.0
    %2311 = vmatprep.subr.mxu0 0.0
    %2312 = vmatpush1.xpose.msra.mxu0 0.0
    %2313 = vmatprep.subr.mxu0 0.0
    %2314 = vmatpush1.xpose.msra.mxu0 0.0
    %2315 = vmatprep.subr.mxu0 0.0
    %2316 = vmatpush1.xpose.msra.mxu0 0.0
    %2317 = vmatprep.subr.mxu0 0.0
    %2318 = vmatpush1.xpose.msra.mxu0 0.0
    %2319 = vmatprep.subr.mxu0 0.0
    %2320 = vmatpush1.xpose.msra.mxu0 0.0
    %2321 = vmatprep.subr.mxu0 0.0
    %2322 = vmatpush1.xpose.msra.mxu0 0.0
    %2323 = vmatprep.subr.mxu0 0.0
    %2324 = vmatpush1.xpose.msra.mxu0 0.0
    %2325 = vmatprep.subr.mxu0 0.0
    %2326 = vmatpush1.xpose.msra.mxu0 0.0
    %2327 = vmatprep.subr.mxu0 0.0
    %2328 = vmatpush1.xpose.msra.mxu0 0.0
    %2329 = vmatprep.subr.mxu0 0.0
    %2330 = vmatpush1.xpose.msra.mxu0 0.0
    %2331 = vmatprep.mubr.f32.mxu0 0.0
    %2332 = vmatmul.mubr.f32.gmra.mrb[0].mxu0 %v2259
    %v2333 = vpop.f32.mrb[0].mxu0
    %v2334 = vadd.f32 0.0, %v2333
    %v2335 = vpop.f32.mrb[0].mxu0
    %2336 = vmatprep.mubr.f32.mxu0 0.0
    %2337 = vmatmul.mubr.f32.gmra.mrb[0].mxu0 %v2261
    %v2338 = vpop.f32.mrb[0].mxu0
    %v2339 = vadd.f32 0.0, %v2338
    %v2340 = vpop.f32.mrb[0].mxu0
    %2341 = vdwg.mxu0
    %v2342 = vmul.f32 %v2334, 0.35355338
    %v2343 = vmul.f32 %v2339, 0.35355338
    %v2344 = vadd.f32 %v2342, %v29
    %v2345 = vadd.f32 %v2343, %v30
    %v2346 = vsel %vm230, %v2344, -inf
    %2347 = vmax.xlane.f32.xlu0 %v2346
    %v2348 = vpop.xlane.xlu0 %2347
    %v2349 = vsel %vm230, %v2345, -inf
    %2350 = vmax.xlane.f32.xlu0 %v2349
    %v2351 = vpop.xlane.xlu0 %2350
    %v2352 = vsub.f32 %v2344, %v2348
    %v2353 = vsub.f32 %v2345, %v2351
    %v2354 = vmul.f32 %v2352, 1.442695
    %v2355 = vpow.pop %v2354
    %v2356 = vmul.f32 %v2353, 1.442695
    %v2357 = vpow.pop %v2356
    %v2358 = vsel %vm230, %v2355, 0.0
    %2359 = vadd.xlane.f32.xlu0 %v2358
    %v2360 = vpop.xlane.xlu0 %2359
    %v2361 = vsel %vm230, %v2357, 0.0
    %2362 = vadd.xlane.f32.xlu0 %v2361
    %v2363 = vpop.xlane.xlu0 %2362
    %v2364 = vrcp.pop %v2360
    %v2365 = vrcp.pop %v2363
    %v2366 = vmul.f32 %v2355, %v2364
    %v2367 = vmul.f32 %v2357, %v2365
    %2368 = vrot.lane.b32.xlu0 %v1667, 48
    %v2369 = vpop.permute.xlu0 %2368
    %2370 = vrot.lane.b32.xlu0 %v1672, 48
    %v2371 = vpop.permute.xlu0 %2370
    %v2375 = vsel %vm230, %v2366, 0
    %v2378 = vsel %vm230, %v2367, 0
    %2380 = vmatprep.subr.mxu0 0.0
    %2381 = vmatpush1.msra.mxu0 %v2369
    %2382 = vmatprep.subr.mxu0 0.0
    %2383 = vmatpush1.msra.mxu0 %v2371
    %2384 = vmatprep.subr.mxu0 0.0
    %2385 = vmatpush1.msra.mxu0 0.0
    %2386 = vmatprep.subr.mxu0 0.0
    %2387 = vmatpush1.msra.mxu0 0.0
    %2388 = vmatprep.subr.mxu0 0.0
    %2389 = vmatpush1.msra.mxu0 0.0
    %2390 = vmatprep.subr.mxu0 0.0
    %2391 = vmatpush1.msra.mxu0 0.0
    %2392 = vmatprep.subr.mxu0 0.0
    %2393 = vmatpush1.msra.mxu0 0.0
    %2394 = vmatprep.subr.mxu0 0.0
    %2395 = vmatpush1.msra.mxu0 0.0
    %2396 = vmatprep.subr.mxu0 0.0
    %2397 = vmatpush1.msra.mxu0 0.0
    %2398 = vmatprep.subr.mxu0 0.0
    %2399 = vmatpush1.msra.mxu0 0.0
    %2400 = vmatprep.subr.mxu0 0.0
    %2401 = vmatpush1.msra.mxu0 0.0
    %2402 = vmatprep.subr.mxu0 0.0
    %2403 = vmatpush1.msra.mxu0 0.0
    %2404 = vmatprep.subr.mxu0 0.0
    %2405 = vmatpush1.msra.mxu0 0.0
    %2406 = vmatprep.subr.mxu0 0.0
    %2407 = vmatpush1.msra.mxu0 0.0
    %2408 = vmatprep.subr.mxu0 0.0
    %2409 = vmatpush1.msra.mxu0 0.0
    %2410 = vmatprep.subr.mxu0 0.0
    %2411 = vmatpush1.msra.mxu0 0.0
    %2412 = vmatprep.subr.mxu0 0.0
    %2413 = vmatpush1.msra.mxu0 0.0
    %2414 = vmatprep.subr.mxu0 0.0
    %2415 = vmatpush1.msra.mxu0 0.0
    %2416 = vmatprep.subr.mxu0 0.0
    %2417 = vmatpush1.msra.mxu0 0.0
    %2418 = vmatprep.subr.mxu0 0.0
    %2419 = vmatpush1.msra.mxu0 0.0
    %2420 = vmatprep.subr.mxu0 0.0
    %2421 = vmatpush1.msra.mxu0 0.0
    %2422 = vmatprep.subr.mxu0 0.0
    %2423 = vmatpush1.msra.mxu0 0.0
    %2424 = vmatprep.subr.mxu0 0.0
    %2425 = vmatpush1.msra.mxu0 0.0
    %2426 = vmatprep.subr.mxu0 0.0
    %2427 = vmatpush1.msra.mxu0 0.0
    %2428 = vmatprep.subr.mxu0 0.0
    %2429 = vmatpush1.msra.mxu0 0.0
    %2430 = vmatprep.subr.mxu0 0.0
    %2431 = vmatpush1.msra.mxu0 0.0
    %2432 = vmatprep.subr.mxu0 0.0
    %2433 = vmatpush1.msra.mxu0 0.0
    %2434 = vmatprep.subr.mxu0 0.0
    %2435 = vmatpush1.msra.mxu0 0.0
    %2436 = vmatprep.subr.mxu0 0.0
    %2437 = vmatpush1.msra.mxu0 0.0
    %2438 = vmatprep.subr.mxu0 0.0
    %2439 = vmatpush1.msra.mxu0 0.0
    %2440 = vmatprep.subr.mxu0 0.0
    %2441 = vmatpush1.msra.mxu0 0.0
    %2442 = vmatprep.subr.mxu0 0.0
    %2443 = vmatpush1.msra.mxu0 0.0
    %2444 = vmatprep.mubr.f32.mxu0 0.0
    %2445 = vmatmul.mubr.f32.gmra.mrb[0].mxu0 %v2375
    %v2446 = vpop.f32.mrb[0].mxu0
    %v2447 = vadd.f32 0.0, %v2446
    %v2448 = vpop.f32.mrb[0].mxu0
    %2449 = vmatprep.mubr.f32.mxu0 0.0
    %2450 = vmatmul.mubr.f32.gmra.mrb[0].mxu0 %v2378
    %v2451 = vpop.f32.mrb[0].mxu0
    %v2452 = vadd.f32 0.0, %v2451
    %v2453 = vpop.f32.mrb[0].mxu0
    %2454 = vdwg.mxu0
    %2456 = vrot.lane.b32.xlu0 %v1577, 32
    %v2457 = vpop.permute.xlu0 %2456
    %v2460 = vsel %vm142, %v2447, 0
    %v2463 = vsel %vm142, %v2452, 0
    %2465 = vmatprep.subr.mxu0 0.0
    %2466 = vmatpush1.msra.mxu0 %v2457
    %2467 = vmatprep.subr.mxu0 0.0
    %2468 = vmatpush1.msra.mxu0 0.0
    %2469 = vmatprep.subr.mxu0 0.0
    %2470 = vmatpush1.msra.mxu0 0.0
    %2471 = vmatprep.subr.mxu0 0.0
    %2472 = vmatpush1.msra.mxu0 0.0
    %2473 = vmatprep.subr.mxu0 0.0
    %2474 = vmatpush1.msra.mxu0 0.0
    %2475 = vmatprep.subr.mxu0 0.0
    %2476 = vmatpush1.msra.mxu0 0.0
    %2477 = vmatprep.subr.mxu0 0.0
    %2478 = vmatpush1.msra.mxu0 0.0
    %2479 = vmatprep.subr.mxu0 0.0
    %2480 = vmatpush1.msra.mxu0 0.0
    %2481 = vmatprep.subr.mxu0 0.0
    %2482 = vmatpush1.msra.mxu0 0.0
    %2483 = vmatprep.subr.mxu0 0.0
    %2484 = vmatpush1.msra.mxu0 0.0
    %2485 = vmatprep.subr.mxu0 0.0
    %2486 = vmatpush1.msra.mxu0 0.0
    %2487 = vmatprep.subr.mxu0 0.0
    %2488 = vmatpush1.msra.mxu0 0.0
    %2489 = vmatprep.subr.mxu0 0.0
    %2490 = vmatpush1.msra.mxu0 0.0
    %2491 = vmatprep.subr.mxu0 0.0
    %2492 = vmatpush1.msra.mxu0 0.0
    %2493 = vmatprep.subr.mxu0 0.0
    %2494 = vmatpush1.msra.mxu0 0.0
    %2495 = vmatprep.subr.mxu0 0.0
    %2496 = vmatpush1.msra.mxu0 0.0
    %2497 = vmatprep.subr.mxu0 0.0
    %2498 = vmatpush1.msra.mxu0 0.0
    %2499 = vmatprep.subr.mxu0 0.0
    %2500 = vmatpush1.msra.mxu0 0.0
    %2501 = vmatprep.subr.mxu0 0.0
    %2502 = vmatpush1.msra.mxu0 0.0
    %2503 = vmatprep.subr.mxu0 0.0
    %2504 = vmatpush1.msra.mxu0 0.0
    %2505 = vmatprep.subr.mxu0 0.0
    %2506 = vmatpush1.msra.mxu0 0.0
    %2507 = vmatprep.subr.mxu0 0.0
    %2508 = vmatpush1.msra.mxu0 0.0
    %2509 = vmatprep.subr.mxu0 0.0
    %2510 = vmatpush1.msra.mxu0 0.0
    %2511 = vmatprep.subr.mxu0 0.0
    %2512 = vmatpush1.msra.mxu0 0.0
    %2513 = vmatprep.subr.mxu0 0.0
    %2514 = vmatpush1.msra.mxu0 0.0
    %2515 = vmatprep.subr.mxu0 0.0
    %2516 = vmatpush1.msra.mxu0 0.0
    %2517 = vmatprep.subr.mxu0 0.0
    %2518 = vmatpush1.msra.mxu0 0.0
    %2519 = vmatprep.subr.mxu0 0.0
    %2520 = vmatpush1.msra.mxu0 0.0
    %2521 = vmatprep.subr.mxu0 0.0
    %2522 = vmatpush1.msra.mxu0 0.0
    %2523 = vmatprep.subr.mxu0 0.0
    %2524 = vmatpush1.msra.mxu0 0.0
    %2525 = vmatprep.subr.mxu0 0.0
    %2526 = vmatpush1.msra.mxu0 0.0
    %2527 = vmatprep.subr.mxu0 0.0
    %2528 = vmatpush1.msra.mxu0 0.0
    %2529 = vmatprep.mubr.f32.mxu0 0.0
    %2530 = vmatmul.mubr.f32.gmra.mrb[0].mxu0 %v2460
    %v2531 = vpop.f32.mrb[0].mxu0
    %v2532 = vadd.f32 0.0, %v2531
    %v2533 = vpop.f32.mrb[0].mxu0
    %2534 = vmatprep.mubr.f32.mxu0 0.0
    %2535 = vmatmul.mubr.f32.gmra.mrb[0].mxu0 %v2463
    %v2536 = vpop.f32.mrb[0].mxu0
    %v2537 = vadd.f32 0.0, %v2536
    %v2538 = vpop.f32.mrb[0].mxu0
    %2539 = vdwg.mxu0
    %v2540 = vadd.f32 %v2243, %v2532
    %v2541 = vadd.f32 %v2248, %v2537
    %2542 = vrot.lane.b32.xlu0 %v1667, 104
    %v2543 = vpop.permute.xlu0 %2542
    %2544 = vrot.lane.b32.xlu0 %v1672, 104
    %v2545 = vpop.permute.xlu0 %2544
    %2546 = vrot.lane.b32.xlu0 %v1667, 72
    %v2547 = vpop.permute.xlu0 %2546
    %2548 = vrot.lane.b32.xlu0 %v1672, 72
    %v2549 = vpop.permute.xlu0 %2548
    %v2550 = vsel %vm142, %v2543, 0
    %v2552 = vsel %vm142, %v2545, 0
    %v2554 = vsel %vm142, %v2547, 0
    %v2556 = vsel %vm142, %v2549, 0
    %2558 = vmatprep.subr.mxu0 0.0
    %2559 = vmatpush1.xpose.msra.mxu0 %v2554
    %2560 = vmatprep.subr.mxu0 0.0
    %2561 = vmatpush1.xpose.msra.mxu0 %v2556
    %2562 = vmatprep.subr.mxu0 0.0
    %2563 = vmatpush1.xpose.msra.mxu0 0.0
    %2564 = vmatprep.subr.mxu0 0.0
    %2565 = vmatpush1.xpose.msra.mxu0 0.0
    %2566 = vmatprep.subr.mxu0 0.0
    %2567 = vmatpush1.xpose.msra.mxu0 0.0
    %2568 = vmatprep.subr.mxu0 0.0
    %2569 = vmatpush1.xpose.msra.mxu0 0.0
    %2570 = vmatprep.subr.mxu0 0.0
    %2571 = vmatpush1.xpose.msra.mxu0 0.0
    %2572 = vmatprep.subr.mxu0 0.0
    %2573 = vmatpush1.xpose.msra.mxu0 0.0
    %2574 = vmatprep.subr.mxu0 0.0
    %2575 = vmatpush1.xpose.msra.mxu0 0.0
    %2576 = vmatprep.subr.mxu0 0.0
    %2577 = vmatpush1.xpose.msra.mxu0 0.0
    %2578 = vmatprep.subr.mxu0 0.0
    %2579 = vmatpush1.xpose.msra.mxu0 0.0
    %2580 = vmatprep.subr.mxu0 0.0
    %2581 = vmatpush1.xpose.msra.mxu0 0.0
    %2582 = vmatprep.subr.mxu0 0.0
    %2583 = vmatpush1.xpose.msra.mxu0 0.0
    %2584 = vmatprep.subr.mxu0 0.0
    %2585 = vmatpush1.xpose.msra.mxu0 0.0
    %2586 = vmatprep.subr.mxu0 0.0
    %2587 = vmatpush1.xpose.msra.mxu0 0.0
    %2588 = vmatprep.subr.mxu0 0.0
    %2589 = vmatpush1.xpose.msra.mxu0 0.0
    %2590 = vmatprep.subr.mxu0 0.0
    %2591 = vmatpush1.xpose.msra.mxu0 0.0
    %2592 = vmatprep.subr.mxu0 0.0
    %2593 = vmatpush1.xpose.msra.mxu0 0.0
    %2594 = vmatprep.subr.mxu0 0.0
    %2595 = vmatpush1.xpose.msra.mxu0 0.0
    %2596 = vmatprep.subr.mxu0 0.0
    %2597 = vmatpush1.xpose.msra.mxu0 0.0
    %2598 = vmatprep.subr.mxu0 0.0
    %2599 = vmatpush1.xpose.msra.mxu0 0.0
    %2600 = vmatprep.subr.mxu0 0.0
    %2601 = vmatpush1.xpose.msra.mxu0 0.0
    %2602 = vmatprep.subr.mxu0 0.0
    %2603 = vmatpush1.xpose.msra.mxu0 0.0
    %2604 = vmatprep.subr.mxu0 0.0
    %2605 = vmatpush1.xpose.msra.mxu0 0.0
    %2606 = vmatprep.subr.mxu0 0.0
    %2607 = vmatpush1.xpose.msra.mxu0 0.0
    %2608 = vmatprep.subr.mxu0 0.0
    %2609 = vmatpush1.xpose.msra.mxu0 0.0
    %2610 = vmatprep.subr.mxu0 0.0
    %2611 = vmatpush1.xpose.msra.mxu0 0.0
    %2612 = vmatprep.subr.mxu0 0.0
    %2613 = vmatpush1.xpose.msra.mxu0 0.0
    %2614 = vmatprep.subr.mxu0 0.0
    %2615 = vmatpush1.xpose.msra.mxu0 0.0
    %2616 = vmatprep.subr.mxu0 0.0
    %2617 = vmatpush1.xpose.msra.mxu0 0.0
    %2618 = vmatprep.subr.mxu0 0.0
    %2619 = vmatpush1.xpose.msra.mxu0 0.0
    %2620 = vmatprep.subr.mxu0 0.0
    %2621 = vmatpush1.xpose.msra.mxu0 0.0
    %2622 = vmatprep.mubr.f32.mxu0 0.0
    %2623 = vmatmul.mubr.f32.gmra.mrb[0].mxu0 %v2550
    %v2624 = vpop.f32.mrb[0].mxu0
    %v2625 = vadd.f32 0.0, %v2624
    %v2626 = vpop.f32.mrb[0].mxu0
    %2627 = vmatprep.mubr.f32.mxu0 0.0
    %2628 = vmatmul.mubr.f32.gmra.mrb[0].mxu0 %v2552
    %v2629 = vpop.f32.mrb[0].mxu0
    %v2630 = vadd.f32 0.0, %v2629
    %v2631 = vpop.f32.mrb[0].mxu0
    %2632 = vdwg.mxu0
    %v2633 = vmul.f32 %v2625, 0.35355338
    %v2634 = vmul.f32 %v2630, 0.35355338
    %v2635 = vadd.f32 %v2633, %v29
    %v2636 = vadd.f32 %v2634, %v30
    %v2637 = vsel %vm230, %v2635, -inf
    %2638 = vmax.xlane.f32.xlu0 %v2637
    %v2639 = vpop.xlane.xlu0 %2638
    %v2640 = vsel %vm230, %v2636, -inf
    %2641 = vmax.xlane.f32.xlu0 %v2640
    %v2642 = vpop.xlane.xlu0 %2641
    %v2643 = vsub.f32 %v2635, %v2639
    %v2644 = vsub.f32 %v2636, %v2642
    %v2645 = vmul.f32 %v2643, 1.442695
    %v2646 = vpow.pop %v2645
    %v2647 = vmul.f32 %v2644, 1.442695
    %v2648 = vpow.pop %v2647
    %v2649 = vsel %vm230, %v2646, 0.0
    %2650 = vadd.xlane.f32.xlu0 %v2649
    %v2651 = vpop.xlane.xlu0 %2650
    %v2652 = vsel %vm230, %v2648, 0.0
    %2653 = vadd.xlane.f32.xlu0 %v2652
    %v2654 = vpop.xlane.xlu0 %2653
    %v2655 = vrcp.pop %v2651
    %v2656 = vrcp.pop %v2654
    %v2657 = vmul.f32 %v2646, %v2655
    %v2658 = vmul.f32 %v2648, %v2656
    %2659 = vrot.lane.b32.xlu0 %v1667, 40
    %v2660 = vpop.permute.xlu0 %2659
    %2661 = vrot.lane.b32.xlu0 %v1672, 40
    %v2662 = vpop.permute.xlu0 %2661
    %v2666 = vsel %vm230, %v2657, 0
    %v2669 = vsel %vm230, %v2658, 0
    %2671 = vmatprep.subr.mxu0 0.0
    %2672 = vmatpush1.msra.mxu0 %v2660
    %2673 = vmatprep.subr.mxu0 0.0
    %2674 = vmatpush1.msra.mxu0 %v2662
    %2675 = vmatprep.subr.mxu0 0.0
    %2676 = vmatpush1.msra.mxu0 0.0
    %2677 = vmatprep.subr.mxu0 0.0
    %2678 = vmatpush1.msra.mxu0 0.0
    %2679 = vmatprep.subr.mxu0 0.0
    %2680 = vmatpush1.msra.mxu0 0.0
    %2681 = vmatprep.subr.mxu0 0.0
    %2682 = vmatpush1.msra.mxu0 0.0
    %2683 = vmatprep.subr.mxu0 0.0
    %2684 = vmatpush1.msra.mxu0 0.0
    %2685 = vmatprep.subr.mxu0 0.0
    %2686 = vmatpush1.msra.mxu0 0.0
    %2687 = vmatprep.subr.mxu0 0.0
    %2688 = vmatpush1.msra.mxu0 0.0
    %2689 = vmatprep.subr.mxu0 0.0
    %2690 = vmatpush1.msra.mxu0 0.0
    %2691 = vmatprep.subr.mxu0 0.0
    %2692 = vmatpush1.msra.mxu0 0.0
    %2693 = vmatprep.subr.mxu0 0.0
    %2694 = vmatpush1.msra.mxu0 0.0
    %2695 = vmatprep.subr.mxu0 0.0
    %2696 = vmatpush1.msra.mxu0 0.0
    %2697 = vmatprep.subr.mxu0 0.0
    %2698 = vmatpush1.msra.mxu0 0.0
    %2699 = vmatprep.subr.mxu0 0.0
    %2700 = vmatpush1.msra.mxu0 0.0
    %2701 = vmatprep.subr.mxu0 0.0
    %2702 = vmatpush1.msra.mxu0 0.0
    %2703 = vmatprep.subr.mxu0 0.0
    %2704 = vmatpush1.msra.mxu0 0.0
    %2705 = vmatprep.subr.mxu0 0.0
    %2706 = vmatpush1.msra.mxu0 0.0
    %2707 = vmatprep.subr.mxu0 0.0
    %2708 = vmatpush1.msra.mxu0 0.0
    %2709 = vmatprep.subr.mxu0 0.0
    %2710 = vmatpush1.msra.mxu0 0.0
    %2711 = vmatprep.subr.mxu0 0.0
    %2712 = vmatpush1.msra.mxu0 0.0
    %2713 = vmatprep.subr.mxu0 0.0
    %2714 = vmatpush1.msra.mxu0 0.0
    %2715 = vmatprep.subr.mxu0 0.0
    %2716 = vmatpush1.msra.mxu0 0.0
    %2717 = vmatprep.subr.mxu0 0.0
    %2718 = vmatpush1.msra.mxu0 0.0
    %2719 = vmatprep.subr.mxu0 0.0
    %2720 = vmatpush1.msra.mxu0 0.0
    %2721 = vmatprep.subr.mxu0 0.0
    %2722 = vmatpush1.msra.mxu0 0.0
    %2723 = vmatprep.subr.mxu0 0.0
    %2724 = vmatpush1.msra.mxu0 0.0
    %2725 = vmatprep.subr.mxu0 0.0
    %2726 = vmatpush1.msra.mxu0 0.0
    %2727 = vmatprep.subr.mxu0 0.0
    %2728 = vmatpush1.msra.mxu0 0.0
    %2729 = vmatprep.subr.mxu0 0.0
    %2730 = vmatpush1.msra.mxu0 0.0
    %2731 = vmatprep.subr.mxu0 0.0
    %2732 = vmatpush1.msra.mxu0 0.0
    %2733 = vmatprep.subr.mxu0 0.0
    %2734 = vmatpush1.msra.mxu0 0.0
    %2735 = vmatprep.mubr.f32.mxu0 0.0
    %2736 = vmatmul.mubr.f32.gmra.mrb[0].mxu0 %v2666
    %v2737 = vpop.f32.mrb[0].mxu0
    %v2738 = vadd.f32 0.0, %v2737
    %v2739 = vpop.f32.mrb[0].mxu0
    %2740 = vmatprep.mubr.f32.mxu0 0.0
    %2741 = vmatmul.mubr.f32.gmra.mrb[0].mxu0 %v2669
    %v2742 = vpop.f32.mrb[0].mxu0
    %v2743 = vadd.f32 0.0, %v2742
    %v2744 = vpop.f32.mrb[0].mxu0
    %2745 = vdwg.mxu0
    %2747 = vrot.lane.b32.xlu0 %v1579, 32
    %v2748 = vpop.permute.xlu0 %2747
    %v2751 = vsel %vm142, %v2738, 0
    %v2754 = vsel %vm142, %v2743, 0
    %2756 = vmatprep.subr.mxu0 0.0
    %2757 = vmatpush1.msra.mxu0 %v2748
    %2758 = vmatprep.subr.mxu0 0.0
    %2759 = vmatpush1.msra.mxu0 0.0
    %2760 = vmatprep.subr.mxu0 0.0
    %2761 = vmatpush1.msra.mxu0 0.0
    %2762 = vmatprep.subr.mxu0 0.0
    %2763 = vmatpush1.msra.mxu0 0.0
    %2764 = vmatprep.subr.mxu0 0.0
    %2765 = vmatpush1.msra.mxu0 0.0
    %2766 = vmatprep.subr.mxu0 0.0
    %2767 = vmatpush1.msra.mxu0 0.0
    %2768 = vmatprep.subr.mxu0 0.0
    %2769 = vmatpush1.msra.mxu0 0.0
    %2770 = vmatprep.subr.mxu0 0.0
    %2771 = vmatpush1.msra.mxu0 0.0
    %2772 = vmatprep.subr.mxu0 0.0
    %2773 = vmatpush1.msra.mxu0 0.0
    %2774 = vmatprep.subr.mxu0 0.0
    %2775 = vmatpush1.msra.mxu0 0.0
    %2776 = vmatprep.subr.mxu0 0.0
    %2777 = vmatpush1.msra.mxu0 0.0
    %2778 = vmatprep.subr.mxu0 0.0
    %2779 = vmatpush1.msra.mxu0 0.0
    %2780 = vmatprep.subr.mxu0 0.0
    %2781 = vmatpush1.msra.mxu0 0.0
    %2782 = vmatprep.subr.mxu0 0.0
    %2783 = vmatpush1.msra.mxu0 0.0
    %2784 = vmatprep.subr.mxu0 0.0
    %2785 = vmatpush1.msra.mxu0 0.0
    %2786 = vmatprep.subr.mxu0 0.0
    %2787 = vmatpush1.msra.mxu0 0.0
    %2788 = vmatprep.subr.mxu0 0.0
    %2789 = vmatpush1.msra.mxu0 0.0
    %2790 = vmatprep.subr.mxu0 0.0
    %2791 = vmatpush1.msra.mxu0 0.0
    %2792 = vmatprep.subr.mxu0 0.0
    %2793 = vmatpush1.msra.mxu0 0.0
    %2794 = vmatprep.subr.mxu0 0.0
    %2795 = vmatpush1.msra.mxu0 0.0
    %2796 = vmatprep.subr.mxu0 0.0
    %2797 = vmatpush1.msra.mxu0 0.0
    %2798 = vmatprep.subr.mxu0 0.0
    %2799 = vmatpush1.msra.mxu0 0.0
    %2800 = vmatprep.subr.mxu0 0.0
    %2801 = vmatpush1.msra.mxu0 0.0
    %2802 = vmatprep.subr.mxu0 0.0
    %2803 = vmatpush1.msra.mxu0 0.0
    %2804 = vmatprep.subr.mxu0 0.0
    %2805 = vmatpush1.msra.mxu0 0.0
    %2806 = vmatprep.subr.mxu0 0.0
    %2807 = vmatpush1.msra.mxu0 0.0
    %2808 = vmatprep.subr.mxu0 0.0
    %2809 = vmatpush1.msra.mxu0 0.0
    %2810 = vmatprep.subr.mxu0 0.0
    %2811 = vmatpush1.msra.mxu0 0.0
    %2812 = vmatprep.subr.mxu0 0.0
    %2813 = vmatpush1.msra.mxu0 0.0
    %2814 = vmatprep.subr.mxu0 0.0
    %2815 = vmatpush1.msra.mxu0 0.0
    %2816 = vmatprep.subr.mxu0 0.0
    %2817 = vmatpush1.msra.mxu0 0.0
    %2818 = vmatprep.subr.mxu0 0.0
    %2819 = vmatpush1.msra.mxu0 0.0
    %2820 = vmatprep.mubr.f32.mxu0 0.0
    %2821 = vmatmul.mubr.f32.gmra.mrb[0].mxu0 %v2751
    %v2822 = vpop.f32.mrb[0].mxu0
    %v2823 = vadd.f32 0.0, %v2822
    %v2824 = vpop.f32.mrb[0].mxu0
    %2825 = vmatprep.mubr.f32.mxu0 0.0
    %2826 = vmatmul.mubr.f32.gmra.mrb[0].mxu0 %v2754
    %v2827 = vpop.f32.mrb[0].mxu0
    %v2828 = vadd.f32 0.0, %v2827
    %v2829 = vpop.f32.mrb[0].mxu0
    %2830 = vdwg.mxu0
    %v2831 = vadd.f32 %v2540, %v2823
    %v2832 = vadd.f32 %v2541, %v2828
    %v2833 = vlaneseq
    %v2834 = vshrl.u32 %v2833, 7
    %v2835 = vsub.s32 2, %v2834
    %v2836 = vrot.slane %v32, %v2835
    %v2837 = vadd.f32 %v2831, %v2836
    %v2838 = vadd.f32 %v2832, %v2836
    %v2839 = vadd.f32 %v2837, %v1570
    %v2840 = vadd.f32 %v2838, %v1571
    %v2841 = vsel %vm54, %v2839, 0.0
    %2842 = vadd.xlane.f32.xlu0 %v2841
    %v2843 = vpop.xlane.xlu0 %2842
    %v2844 = vsel %vm54, %v2840, 0.0
    %2845 = vadd.xlane.f32.xlu0 %v2844
    %v2846 = vpop.xlane.xlu0 %2845
    %v2847 = vmul.f32 %v2843, %v1310
    %v2848 = vmul.f32 %v2846, %v1310
    %v2849 = vsub.f32 %v2839, %v2847
    %v2850 = vsub.f32 %v2840, %v2848
    %v2851 = vmul.f32 %v2849, %v2849
    %v2852 = vmul.f32 %v2850, %v2850
    %v2853 = vsel %vm54, %v2851, 0.0
    %2854 = vadd.xlane.f32.xlu0 %v2853
    %v2855 = vpop.xlane.xlu0 %2854
    %v2856 = vsel %vm54, %v2852, 0.0
    %2857 = vadd.xlane.f32.xlu0 %v2856
    %v2858 = vpop.xlane.xlu0 %2857
    %v2859 = vmul.f32 %v2855, %v1310
    %v2860 = vmul.f32 %v2858, %v1310
    %v2861 = vadd.f32 %v2859, 1e-12
    %v2862 = vadd.f32 %v2860, 1e-12
    %v2863 = vrsqrt.pop %v2861
    %v2864 = vrsqrt.pop %v2862
    %v2865 = vmul.f32 %v2849, %v2863
    %v2866 = vmul.f32 %v2850, %v2864
    %v2867 = vlaneseq
    %v2868 = vshrl.u32 %v2867, 7
    %v2869 = vsub.s32 3, %v2868
    %v2870 = vrot.slane %v32, %v2869
    %v2871 = vmul.f32 %v2865, %v2870
    %v2872 = vmul.f32 %v2866, %v2870
    %v2873 = vlaneseq
    %v2874 = vshrl.u32 %v2873, 7
    %v2875 = vsub.s32 4, %v2874
    %v2876 = vrot.slane %v32, %v2875
    %v2877 = vadd.f32 %v2871, %v2876
    %v2878 = vadd.f32 %v2872, %v2876
    %v2879 = vlaneseq
    %v2880 = vshrl.u32 %v2879, 7
    %v2881 = vsub.s32 1, %v2880
    %v2882 = vrot.slane %v32, %v2881
    %v2884 = vsel %vm54, %v2877, 0
    %v2887 = vsel %vm54, %v2878, 0
    %2889 = vmatprep.subr.mxu0 0.0
    %2890 = vmatpush1.msra.mxu0 %v1574
    %2891 = vmatprep.subr.mxu0 0.0
    %2892 = vmatpush1.msra.mxu0 %v1576
    %2893 = vmatprep.subr.mxu0 0.0
    %2894 = vmatpush1.msra.mxu0 %v1578
    %2895 = vmatprep.subr.mxu0 0.0
    %2896 = vmatpush1.msra.mxu0 %v1580
    %2897 = vmatprep.subr.mxu0 0.0
    %2898 = vmatpush1.msra.mxu0 0.0
    %2899 = vmatprep.subr.mxu0 0.0
    %2900 = vmatpush1.msra.mxu0 0.0
    %2901 = vmatprep.subr.mxu0 0.0
    %2902 = vmatpush1.msra.mxu0 0.0
    %2903 = vmatprep.subr.mxu0 0.0
    %2904 = vmatpush1.msra.mxu0 0.0
    %2905 = vmatprep.subr.mxu0 0.0
    %2906 = vmatpush1.msra.mxu0 0.0
    %2907 = vmatprep.subr.mxu0 0.0
    %2908 = vmatpush1.msra.mxu0 0.0
    %2909 = vmatprep.subr.mxu0 0.0
    %2910 = vmatpush1.msra.mxu0 0.0
    %2911 = vmatprep.subr.mxu0 0.0
    %2912 = vmatpush1.msra.mxu0 0.0
    %2913 = vmatprep.subr.mxu0 0.0
    %2914 = vmatpush1.msra.mxu0 0.0
    %2915 = vmatprep.subr.mxu0 0.0
    %2916 = vmatpush1.msra.mxu0 0.0
    %2917 = vmatprep.subr.mxu0 0.0
    %2918 = vmatpush1.msra.mxu0 0.0
    %2919 = vmatprep.subr.mxu0 0.0
    %2920 = vmatpush1.msra.mxu0 0.0
    %2921 = vmatprep.subr.mxu0 0.0
    %2922 = vmatpush1.msra.mxu0 0.0
    %2923 = vmatprep.subr.mxu0 0.0
    %2924 = vmatpush1.msra.mxu0 0.0
    %2925 = vmatprep.subr.mxu0 0.0
    %2926 = vmatpush1.msra.mxu0 0.0
    %2927 = vmatprep.subr.mxu0 0.0
    %2928 = vmatpush1.msra.mxu0 0.0
    %2929 = vmatprep.subr.mxu0 0.0
    %2930 = vmatpush1.msra.mxu0 0.0
    %2931 = vmatprep.subr.mxu0 0.0
    %2932 = vmatpush1.msra.mxu0 0.0
    %2933 = vmatprep.subr.mxu0 0.0
    %2934 = vmatpush1.msra.mxu0 0.0
    %2935 = vmatprep.subr.mxu0 0.0
    %2936 = vmatpush1.msra.mxu0 0.0
    %2937 = vmatprep.subr.mxu0 0.0
    %2938 = vmatpush1.msra.mxu0 0.0
    %2939 = vmatprep.subr.mxu0 0.0
    %2940 = vmatpush1.msra.mxu0 0.0
    %2941 = vmatprep.subr.mxu0 0.0
    %2942 = vmatpush1.msra.mxu0 0.0
    %2943 = vmatprep.subr.mxu0 0.0
    %2944 = vmatpush1.msra.mxu0 0.0
    %2945 = vmatprep.subr.mxu0 0.0
    %2946 = vmatpush1.msra.mxu0 0.0
    %2947 = vmatprep.subr.mxu0 0.0
    %2948 = vmatpush1.msra.mxu0 0.0
    %2949 = vmatprep.subr.mxu0 0.0
    %2950 = vmatpush1.msra.mxu0 0.0
    %2951 = vmatprep.subr.mxu0 0.0
    %2952 = vmatpush1.msra.mxu0 0.0
    %2953 = vmatprep.mubr.f32.mxu0 0.0
    %2954 = vmatmul.mubr.f32.gmra.mrb[0].mxu0 %v2884
    %v2955 = vpop.f32.mrb[0].mxu0
    %v2956 = vadd.f32 %v2882, %v2955
    %v2957 = vpop.f32.mrb[0].mxu0
    %2958 = vmatprep.mubr.f32.mxu0 0.0
    %2959 = vmatmul.mubr.f32.gmra.mrb[0].mxu0 %v2887
    %v2960 = vpop.f32.mrb[0].mxu0
    %v2961 = vadd.f32 %v2882, %v2960
    %v2962 = vpop.f32.mrb[0].mxu0
    %2963 = vdwg.mxu0
    %v2964 = vmul.f32 %v2956, 0.5
    %v2965 = vmul.f32 %v2961, 0.5
    %v2966 = vmul.f32 %v2956, 0.044715
    %v2967 = vmul.f32 %v2961, 0.044715
    %v2968 = vmul.f32 %v2966, %v2956
    %v2969 = vmul.f32 %v2967, %v2961
    %v2970 = vmul.f32 %v2968, %v2956
    %v2971 = vmul.f32 %v2969, %v2961
    %v2972 = vadd.f32 %v2956, %v2970
    %v2973 = vadd.f32 %v2961, %v2971
    %v2974 = vmul.f32 %v2972, 0.7978846
    %v2975 = vmul.f32 %v2973, 0.7978846
    %v2976 = vtanh.pop %v2974
    %v2977 = vtanh.pop %v2975
    %v2978 = vadd.f32 %v2976, 1.0
    %v2979 = vadd.f32 %v2977, 1.0
    %v2980 = vmul.f32 %v2964, %v2978
    %v2981 = vmul.f32 %v2965, %v2979
    %v2982 = vlaneseq
    %v2983 = vshrl.u32 %v2982, 7
    %v2984 = vsub.s32 5, %v2983
    %v2985 = vrot.slane %v32, %v2984
    %v2987 = vsel %vm1450, %v2980, 0
    %v2990 = vsel %vm1450, %v2981, 0
    %2992 = vmatprep.subr.mxu0 0.0
    %2993 = vmatpush1.msra.mxu0 %v1582
    %2994 = vmatprep.subr.mxu0 0.0
    %2995 = vmatpush1.msra.mxu0 %v1583
    %2996 = vmatprep.subr.mxu0 0.0
    %2997 = vmatpush1.msra.mxu0 %v1584
    %2998 = vmatprep.subr.mxu0 0.0
    %2999 = vmatpush1.msra.mxu0 %v1585
    %3000 = vmatprep.subr.mxu0 0.0
    %3001 = vmatpush1.msra.mxu0 %v1586
    %3002 = vmatprep.subr.mxu0 0.0
    %3003 = vmatpush1.msra.mxu0 %v1587
    %3004 = vmatprep.subr.mxu0 0.0
    %3005 = vmatpush1.msra.mxu0 %v1588
    %3006 = vmatprep.subr.mxu0 0.0
    %3007 = vmatpush1.msra.mxu0 %v1589
    %3008 = vmatprep.subr.mxu0 0.0
    %3009 = vmatpush1.msra.mxu0 0.0
    %3010 = vmatprep.subr.mxu0 0.0
    %3011 = vmatpush1.msra.mxu0 0.0
    %3012 = vmatprep.subr.mxu0 0.0
    %3013 = vmatpush1.msra.mxu0 0.0
    %3014 = vmatprep.subr.mxu0 0.0
    %3015 = vmatpush1.msra.mxu0 0.0
    %3016 = vmatprep.subr.mxu0 0.0
    %3017 = vmatpush1.msra.mxu0 0.0
    %3018 = vmatprep.subr.mxu0 0.0
    %3019 = vmatpush1.msra.mxu0 0.0
    %3020 = vmatprep.subr.mxu0 0.0
    %3021 = vmatpush1.msra.mxu0 0.0
    %3022 = vmatprep.subr.mxu0 0.0
    %3023 = vmatpush1.msra.mxu0 0.0
    %3024 = vmatprep.subr.mxu0 0.0
    %3025 = vmatpush1.msra.mxu0 0.0
    %3026 = vmatprep.subr.mxu0 0.0
    %3027 = vmatpush1.msra.mxu0 0.0
    %3028 = vmatprep.subr.mxu0 0.0
    %3029 = vmatpush1.msra.mxu0 0.0
    %3030 = vmatprep.subr.mxu0 0.0
    %3031 = vmatpush1.msra.mxu0 0.0
    %3032 = vmatprep.subr.mxu0 0.0
    %3033 = vmatpush1.msra.mxu0 0.0
    %3034 = vmatprep.subr.mxu0 0.0
    %3035 = vmatpush1.msra.mxu0 0.0
    %3036 = vmatprep.subr.mxu0 0.0
    %3037 = vmatpush1.msra.mxu0 0.0
    %3038 = vmatprep.subr.mxu0 0.0
    %3039 = vmatpush1.msra.mxu0 0.0
    %3040 = vmatprep.subr.mxu0 0.0
    %3041 = vmatpush1.msra.mxu0 0.0
    %3042 = vmatprep.subr.mxu0 0.0
    %3043 = vmatpush1.msra.mxu0 0.0
    %3044 = vmatprep.subr.mxu0 0.0
    %3045 = vmatpush1.msra.mxu0 0.0
    %3046 = vmatprep.subr.mxu0 0.0
    %3047 = vmatpush1.msra.mxu0 0.0
    %3048 = vmatprep.subr.mxu0 0.0
    %3049 = vmatpush1.msra.mxu0 0.0
    %3050 = vmatprep.subr.mxu0 0.0
    %3051 = vmatpush1.msra.mxu0 0.0
    %3052 = vmatprep.subr.mxu0 0.0
    %3053 = vmatpush1.msra.mxu0 0.0
    %3054 = vmatprep.subr.mxu0 0.0
    %3055 = vmatpush1.msra.mxu0 0.0
    %3056 = vmatprep.mubr.f32.mxu0 0.0
    %3057 = vmatmul.mubr.f32.gmra.mrb[0].mxu0 %v2987
    %v3058 = vpop.f32.mrb[0].mxu0
    %v3059 = vadd.f32 %v2985, %v3058
    %v3060 = vpop.f32.mrb[0].mxu0
    %3061 = vmatprep.mubr.f32.mxu0 0.0
    %3062 = vmatmul.mubr.f32.gmra.mrb[0].mxu0 %v2990
    %v3063 = vpop.f32.mrb[0].mxu0
    %v3064 = vadd.f32 %v2985, %v3063
    %v3065 = vpop.f32.mrb[0].mxu0
    %3066 = vdwg.mxu0
    %v3067 = vadd.f32 %v3059, %v2877
    %v3068 = vadd.f32 %v3064, %v2878
    %v3069 = vsel %vm54, %v3067, 0.0
    %3070 = vadd.xlane.f32.xlu0 %v3069
    %v3071 = vpop.xlane.xlu0 %3070
    %v3072 = vsel %vm54, %v3068, 0.0
    %3073 = vadd.xlane.f32.xlu0 %v3072
    %v3074 = vpop.xlane.xlu0 %3073
    %v3075 = vmul.f32 %v3071, %v1310
    %v3076 = vmul.f32 %v3074, %v1310
    %v3077 = vsub.f32 %v3067, %v3075
    %v3078 = vsub.f32 %v3068, %v3076
    %v3079 = vmul.f32 %v3077, %v3077
    %v3080 = vmul.f32 %v3078, %v3078
    %v3081 = vsel %vm54, %v3079, 0.0
    %3082 = vadd.xlane.f32.xlu0 %v3081
    %v3083 = vpop.xlane.xlu0 %3082
    %v3084 = vsel %vm54, %v3080, 0.0
    %3085 = vadd.xlane.f32.xlu0 %v3084
    %v3086 = vpop.xlane.xlu0 %3085
    %v3087 = vmul.f32 %v3083, %v1310
    %v3088 = vmul.f32 %v3086, %v1310
    %v3089 = vadd.f32 %v3087, 1e-12
    %v3090 = vadd.f32 %v3088, 1e-12
    %v3091 = vrsqrt.pop %v3089
    %v3092 = vrsqrt.pop %v3090
    %v3093 = vmul.f32 %v3077, %v3091
    %v3094 = vmul.f32 %v3078, %v3092
    %v3095 = vlaneseq
    %v3096 = vshrl.u32 %v3095, 7
    %v3097 = vsub.s32 6, %v3096
    %v3098 = vrot.slane %v32, %v3097
    %v3099 = vmul.f32 %v3093, %v3098
    %v3100 = vmul.f32 %v3094, %v3098
    %v3101 = vlaneseq
    %v3102 = vshrl.u32 %v3101, 7
    %v3103 = vsub.s32 7, %v3102
    %v3104 = vrot.slane %v32, %v3103
    %v3105 = vadd.f32 %v3099, %v3104
    %v3106 = vadd.f32 %v3100, %v3104
    %v3107 = vld [vmem:[%s5] sm:$0xff]
    %v3108 = vld [vmem:[%s5 + $0x8] sm:$0xff]
    %v3109 = vld [vmem:[%s5 + $0x10] sm:$0xff]
    %v3110 = vld [vmem:[%s5 + $0x18] sm:$0xff]
    %v3111 = vld [vmem:[%s5 + $0x20] sm:$0xff]
    %v3112 = vld [vmem:[%s5 + $0x28] sm:$0xff]
    %v3113 = vld [vmem:[%s5 + $0x30] sm:$0xff]
    %v3114 = vld [vmem:[%s5 + $0x38] sm:$0xff]
    %v3115 = vld [vmem:[%s5 + $0x40] sm:$0xff]
    %v3116 = vld [vmem:[%s5 + $0x48] sm:$0xff]
    %v3117 = vld [vmem:[%s5 + $0x50] sm:$0xff]
    %v3118 = vld [vmem:[%s5 + $0x58] sm:$0xff]
    %v3119 = vld [vmem:[%s2] sm:$0xff]
    %v3120 = vld [vmem:[%s2 + $0x8] sm:$0xff]
    %v3122 = vsel %vm1450, %v3119, 0
    %v3125 = vsel %vm1450, %v3120, 0
    %3127 = vmatprep.subr.mxu0 0.0
    %3128 = vmatpush1.msra.mxu0 %v3111
    %3129 = vmatprep.subr.mxu0 0.0
    %3130 = vmatpush1.msra.mxu0 %v3112
    %3131 = vmatprep.subr.mxu0 0.0
    %3132 = vmatpush1.msra.mxu0 %v3113
    %3133 = vmatprep.subr.mxu0 0.0
    %3134 = vmatpush1.msra.mxu0 %v3114
    %3135 = vmatprep.subr.mxu0 0.0
    %3136 = vmatpush1.msra.mxu0 %v3115
    %3137 = vmatprep.subr.mxu0 0.0
    %3138 = vmatpush1.msra.mxu0 %v3116
    %3139 = vmatprep.subr.mxu0 0.0
    %3140 = vmatpush1.msra.mxu0 %v3117
    %3141 = vmatprep.subr.mxu0 0.0
    %3142 = vmatpush1.msra.mxu0 %v3118
    %3143 = vmatprep.subr.mxu0 0.0
    %3144 = vmatpush1.msra.mxu0 0.0
    %3145 = vmatprep.subr.mxu0 0.0
    %3146 = vmatpush1.msra.mxu0 0.0
    %3147 = vmatprep.subr.mxu0 0.0
    %3148 = vmatpush1.msra.mxu0 0.0
    %3149 = vmatprep.subr.mxu0 0.0
    %3150 = vmatpush1.msra.mxu0 0.0
    %3151 = vmatprep.subr.mxu0 0.0
    %3152 = vmatpush1.msra.mxu0 0.0
    %3153 = vmatprep.subr.mxu0 0.0
    %3154 = vmatpush1.msra.mxu0 0.0
    %3155 = vmatprep.subr.mxu0 0.0
    %3156 = vmatpush1.msra.mxu0 0.0
    %3157 = vmatprep.subr.mxu0 0.0
    %3158 = vmatpush1.msra.mxu0 0.0
    %3159 = vmatprep.subr.mxu0 0.0
    %3160 = vmatpush1.msra.mxu0 0.0
    %3161 = vmatprep.subr.mxu0 0.0
    %3162 = vmatpush1.msra.mxu0 0.0
    %3163 = vmatprep.subr.mxu0 0.0
    %3164 = vmatpush1.msra.mxu0 0.0
    %3165 = vmatprep.subr.mxu0 0.0
    %3166 = vmatpush1.msra.mxu0 0.0
    %3167 = vmatprep.subr.mxu0 0.0
    %3168 = vmatpush1.msra.mxu0 0.0
    %3169 = vmatprep.subr.mxu0 0.0
    %3170 = vmatpush1.msra.mxu0 0.0
    %3171 = vmatprep.subr.mxu0 0.0
    %3172 = vmatpush1.msra.mxu0 0.0
    %3173 = vmatprep.subr.mxu0 0.0
    %3174 = vmatpush1.msra.mxu0 0.0
    %3175 = vmatprep.subr.mxu0 0.0
    %3176 = vmatpush1.msra.mxu0 0.0
    %3177 = vmatprep.subr.mxu0 0.0
    %3178 = vmatpush1.msra.mxu0 0.0
    %3179 = vmatprep.subr.mxu0 0.0
    %3180 = vmatpush1.msra.mxu0 0.0
    %3181 = vmatprep.subr.mxu0 0.0
    %3182 = vmatpush1.msra.mxu0 0.0
    %3183 = vmatprep.subr.mxu0 0.0
    %3184 = vmatpush1.msra.mxu0 0.0
    %3185 = vmatprep.subr.mxu0 0.0
    %3186 = vmatpush1.msra.mxu0 0.0
    %3187 = vmatprep.subr.mxu0 0.0
    %3188 = vmatpush1.msra.mxu0 0.0
    %3189 = vmatprep.subr.mxu0 0.0
    %3190 = vmatpush1.msra.mxu0 0.0
    %3191 = vmatprep.mubr.f32.mxu0 0.0
    %3192 = vmatmul.mubr.f32.gmra.mrb[0].mxu0 %v3122
    %v3193 = vpop.f32.mrb[0].mxu0
    %v3194 = vadd.f32 0.0, %v3193
    %v3195 = vpop.f32.mrb[0].mxu0
    %3196 = vmatprep.mubr.f32.mxu0 0.0
    %3197 = vmatmul.mubr.f32.gmra.mrb[0].mxu0 %v3125
    %v3198 = vpop.f32.mrb[0].mxu0
    %v3199 = vadd.f32 0.0, %v3198
    %v3200 = vpop.f32.mrb[0].mxu0
    %3201 = vdwg.mxu0
    %v3203 = vsel %vm54, %v3105, 0
    %v3206 = vsel %vm54, %v3106, 0
    %3208 = vmatprep.subr.mxu0 0.0
    %3209 = vmatpush1.msra.mxu0 %v3107
    %3210 = vmatprep.subr.mxu0 0.0
    %3211 = vmatpush1.msra.mxu0 %v3108
    %3212 = vmatprep.subr.mxu0 0.0
    %3213 = vmatpush1.msra.mxu0 %v3109
    %3214 = vmatprep.subr.mxu0 0.0
    %3215 = vmatpush1.msra.mxu0 %v3110
    %3216 = vmatprep.subr.mxu0 0.0
    %3217 = vmatpush1.msra.mxu0 0.0
    %3218 = vmatprep.subr.mxu0 0.0
    %3219 = vmatpush1.msra.mxu0 0.0
    %3220 = vmatprep.subr.mxu0 0.0
    %3221 = vmatpush1.msra.mxu0 0.0
    %3222 = vmatprep.subr.mxu0 0.0
    %3223 = vmatpush1.msra.mxu0 0.0
    %3224 = vmatprep.subr.mxu0 0.0
    %3225 = vmatpush1.msra.mxu0 0.0
    %3226 = vmatprep.subr.mxu0 0.0
    %3227 = vmatpush1.msra.mxu0 0.0
    %3228 = vmatprep.subr.mxu0 0.0
    %3229 = vmatpush1.msra.mxu0 0.0
    %3230 = vmatprep.subr.mxu0 0.0
    %3231 = vmatpush1.msra.mxu0 0.0
    %3232 = vmatprep.subr.mxu0 0.0
    %3233 = vmatpush1.msra.mxu0 0.0
    %3234 = vmatprep.subr.mxu0 0.0
    %3235 = vmatpush1.msra.mxu0 0.0
    %3236 = vmatprep.subr.mxu0 0.0
    %3237 = vmatpush1.msra.mxu0 0.0
    %3238 = vmatprep.subr.mxu0 0.0
    %3239 = vmatpush1.msra.mxu0 0.0
    %3240 = vmatprep.subr.mxu0 0.0
    %3241 = vmatpush1.msra.mxu0 0.0
    %3242 = vmatprep.subr.mxu0 0.0
    %3243 = vmatpush1.msra.mxu0 0.0
    %3244 = vmatprep.subr.mxu0 0.0
    %3245 = vmatpush1.msra.mxu0 0.0
    %3246 = vmatprep.subr.mxu0 0.0
    %3247 = vmatpush1.msra.mxu0 0.0
    %3248 = vmatprep.subr.mxu0 0.0
    %3249 = vmatpush1.msra.mxu0 0.0
    %3250 = vmatprep.subr.mxu0 0.0
    %3251 = vmatpush1.msra.mxu0 0.0
    %3252 = vmatprep.subr.mxu0 0.0
    %3253 = vmatpush1.msra.mxu0 0.0
    %3254 = vmatprep.subr.mxu0 0.0
    %3255 = vmatpush1.msra.mxu0 0.0
    %3256 = vmatprep.subr.mxu0 0.0
    %3257 = vmatpush1.msra.mxu0 0.0
    %3258 = vmatprep.subr.mxu0 0.0
    %3259 = vmatpush1.msra.mxu0 0.0
    %3260 = vmatprep.subr.mxu0 0.0
    %3261 = vmatpush1.msra.mxu0 0.0
    %3262 = vmatprep.subr.mxu0 0.0
    %3263 = vmatpush1.msra.mxu0 0.0
    %3264 = vmatprep.subr.mxu0 0.0
    %3265 = vmatpush1.msra.mxu0 0.0
    %3266 = vmatprep.subr.mxu0 0.0
    %3267 = vmatpush1.msra.mxu0 0.0
    %3268 = vmatprep.subr.mxu0 0.0
    %3269 = vmatpush1.msra.mxu0 0.0
    %3270 = vmatprep.subr.mxu0 0.0
    %3271 = vmatpush1.msra.mxu0 0.0
    %3272 = vmatprep.mubr.f32.mxu0 0.0
    %3273 = vmatmul.mubr.f32.gmra.mrb[0].mxu0 %v3203
    %v3274 = vpop.f32.mrb[0].mxu0
    %v3275 = vadd.f32 %v3194, %v3274
    %v3276 = vpop.f32.mrb[0].mxu0
    %3277 = vmatprep.mubr.f32.mxu0 0.0
    %3278 = vmatmul.mubr.f32.gmra.mrb[0].mxu0 %v3206
    %v3279 = vpop.f32.mrb[0].mxu0
    %v3280 = vadd.f32 %v3199, %v3279
    %v3281 = vpop.f32.mrb[0].mxu0
    %3282 = vdwg.mxu0
    %v3283 = vlaneseq
    %v3284 = vshrl.u32 %v3283, 7
    %v3285 = vsub.s32 0, %v3284
    %v3286 = vrot.slane %v33, %v3285
    %v3287 = vadd.f32 %v3275, %v3286
    %v3288 = vadd.f32 %v3280, %v3286
    %v3289 = vsel %vm54, %v3287, 0.0
    %3290 = vadd.xlane.f32.xlu0 %v3289
    %v3291 = vpop.xlane.xlu0 %3290
    %v3292 = vsel %vm54, %v3288, 0.0
    %3293 = vadd.xlane.f32.xlu0 %v3292
    %v3294 = vpop.xlane.xlu0 %3293
    %v3295 = vmul.f32 %v3291, %v1310
    %v3296 = vmul.f32 %v3294, %v1310
    %v3297 = vsub.f32 %v3287, %v3295
    %v3298 = vsub.f32 %v3288, %v3296
    %v3299 = vmul.f32 %v3297, %v3297
    %v3300 = vmul.f32 %v3298, %v3298
    %v3301 = vsel %vm54, %v3299, 0.0
    %3302 = vadd.xlane.f32.xlu0 %v3301
    %v3303 = vpop.xlane.xlu0 %3302
    %v3304 = vsel %vm54, %v3300, 0.0
    %3305 = vadd.xlane.f32.xlu0 %v3304
    %v3306 = vpop.xlane.xlu0 %3305
    %v3307 = vmul.f32 %v3303, %v1310
    %v3308 = vmul.f32 %v3306, %v1310
    %v3309 = vadd.f32 %v3307, 1e-12
    %v3310 = vadd.f32 %v3308, 1e-12
    %v3311 = vrsqrt.pop %v3309
    %v3312 = vrsqrt.pop %v3310
    %v3313 = vmul.f32 %v3297, %v3311
    %v3314 = vmul.f32 %v3298, %v3312
    %v3315 = vlaneseq
    %v3316 = vshrl.u32 %v3315, 7
    %v3317 = vsub.s32 1, %v3316
    %v3318 = vrot.slane %v33, %v3317
    %v3319 = vmul.f32 %v3313, %v3318
    %v3320 = vmul.f32 %v3314, %v3318
    %v3321 = vlaneseq
    %v3322 = vshrl.u32 %v3321, 7
    %v3323 = vsub.s32 2, %v3322
    %v3324 = vrot.slane %v33, %v3323
    %v3325 = vadd.f32 %v3319, %v3324
    %v3326 = vadd.f32 %v3320, %v3324
    %3327 = vst.msk [vmem:[#allocation2] sm:$0xff] %vm54, %v3325
    %3328 = vst.msk [vmem:[#allocation2 + $0x8] sm:$0xff] %vm54, %v3326
    // Predicated region
    $region30: #{language_encoder_do_forward.1} parent=1 // pred_check
      _
    $region31: #{language_encoder_do_forward.1} parent=1 // pred_check_branch
      %3330 = sbr.rel (0) target = $region33
    $region32: #{language_encoder_do_forward.1} parent=1 // pred_region
      %s3332 = ssub.s32 256, 256
      %3333 = vsyncadd [#allocation3], %s3332
      %s3334 = sshll.u32 [#allocation2], 4
      %s3335 = int_to_ptr.vmem [resolvable:$true] %s3334
      %3340 = dma.vmem_to_hbm [thread:$0]  %s3335, 256, %s7, [#allocation3], 128, 128, 8
    $region33: #{language_encoder_do_forward.1} parent=1 // pred_fallthru
      _
    // Predicated region
    $region34: #{language_encoder_do_forward.1} parent=1 // pred_check
      _
    $region35: #{language_encoder_do_forward.1} parent=1 // pred_check_branch
      %3342 = sbr.rel (0) target = $region37
    $region36: #{language_encoder_do_forward.1} parent=1 // pred_region
      %3343 = dma.done [#allocation3], 256
    $region37: #{language_encoder_do_forward.1} parent=1 // pred_fallthru
      _
    %3344 = vsyncpa [#allocation3], 1

</llo_original>
